<compile_context>
chip_gen: v6e
topology: v6e:2x2x1
jax: 0.10.0
libtpu: 0.0.40
codegen_flags: <defaults>
</compile_context>

<pallas_src>
import math
import jax
import jax.numpy as jnp
from jax.experimental import pallas as pl
from jax.experimental.pallas import tpu as pltpu


_VMEM_SPEC = pl.BlockSpec(memory_space=pltpu.MemorySpace.VMEM)
_SUBLANE = 8  # f32 sublane tile


# ----------------------------------------------------------------------------
# Fused kernel
# ----------------------------------------------------------------------------
def _fused_lstm_model_kernel(
    xcomb_ref,                              # (T*Bp, 2D)  row t*Bp+b = [x[t,b] | x[T-1-t,b]]
    wih0_ref, whh0_ref, b0_ref,             # combined layer 0: (2D,8H), (2H,8H), (1,8H)
    wih1f_ref, whh1f_ref, b1f_ref,          # layer 1 forward: (2H,4H), (H,4H), (1,4H)
    wih1b_ref, b1b_ref,                     # layer 1 reverse (single step): (2H,4H), (1,4H)
    fw1_ref, fb1_ref, fw2_ref, fb2_ref, fw3_ref, fb3_ref,   # MLP head
    out_ref,                                # (Bp, 1)
    seq_scr,                                # (T*Bp, 2H) packed, time-aligned layer-0 outputs
):
    f32 = jnp.float32
    Bp = out_ref.shape[0]
    H2 = whh0_ref.shape[0]                  # 2H
    H = H2 // 2
    T = xcomb_ref.shape[0] // Bp

    # ---------------------------------------------------------------- layer 0
    # Hoisted combined input projection (both directions, all timesteps) in a
    # single MXU matmul; bias folded in once.
    pre0 = jnp.dot(xcomb_ref[...], wih0_ref[...],
                   preferred_element_type=f32) + b0_ref[...]          # (T*Bp, 8H)

    whh0 = whh0_ref[...]                                              # (2H, 8H), block-diag
    h = jnp.zeros((Bp, H2), f32)            # packed [h_fwd | h_bwd]
    c = jnp.zeros((Bp, H2), f32)
    h0b_last = h[:, H:H2]
    for t in range(T):
        s = T - 1 - t                       # position processed by the reverse direction
        # ONE block-diagonal recurrent matmul covering both directions.
        gates = pre0[t * Bp:(t + 1) * Bp, :] + jnp.dot(
            h, whh0, preferred_element_type=f32)                      # (Bp, 8H)
        # combined gate layout: [i_f i_b | f_f f_b | g_f g_b | o_f o_b]
        sig = jax.nn.sigmoid(gates)
        tnh = jnp.tanh(gates)
        i = sig[:, 0 * H2:1 * H2]
        f = sig[:, 1 * H2:2 * H2]
        g = tnh[:, 2 * H2:3 * H2]
        o = sig[:, 3 * H2:4 * H2]
        c = f * c + i * g
        h = o * jnp.tanh(c)
        # Time-aligned packed staging (fwd half at position t, bwd half at s).
        # These stores are off the critical path: nothing reads seq_scr until
        # after the loop.
        seq_scr[t * Bp:(t + 1) * Bp, 0:H] = h[:, 0:H]
        seq_scr[s * Bp:(s + 1) * Bp, H:H2] = h[:, H:H2]
        if t == 0:
            h0b_last = h[:, H:H2]           # reverse-direction hidden at position T-1
    h0f_last = h[:, 0:H]                    # forward-direction hidden at position T-1

    # ---------------------------------------------------------------- layer 1
    # Forward direction: one hoisted input projection on the packed staging
    # buffer, then the serial recurrence (only the final hidden is consumed).
    seq_cat = seq_scr[...]                                            # (T*Bp, 2H)
    pre1 = jnp.dot(seq_cat, wih1f_ref[...],
                   preferred_element_type=f32) + b1f_ref[...]         # (T*Bp, 4H)
    whh1 = whh1f_ref[...]
    h1 = jnp.zeros((Bp, H), f32)
    c1 = jnp.zeros((Bp, H), f32)
    for t in range(T):
        gates = pre1[t * Bp:(t + 1) * Bp, :] + jnp.dot(
            h1, whh1, preferred_element_type=f32)                     # (Bp, 4H)
        sig = jax.nn.sigmoid(gates)
        tnh = jnp.tanh(gates)
        i = sig[:, 0 * H:1 * H]
        f = sig[:, 1 * H:2 * H]
        g = tnh[:, 2 * H:3 * H]
        o = sig[:, 3 * H:4 * H]
        c1 = f * c1 + i * g
        h1 = o * jnp.tanh(c1)
    h1f_last = h1

    # Reverse direction of the last layer: only its hidden at position T-1 is
    # consumed; that is its FIRST step from (h0, c0) = 0, so one cell update
    # with the h @ W_hh and f * c terms identically zero is exact.
    gates1b = (jnp.dot(h0f_last, wih1b_ref[0:H, :], preferred_element_type=f32)
               + jnp.dot(h0b_last, wih1b_ref[H:H2, :], preferred_element_type=f32)
               + b1b_ref[...])
    sigb = jax.nn.sigmoid(gates1b)
    tnhb = jnp.tanh(gates1b)
    i_b = sigb[:, 0 * H:1 * H]
    g_b = tnhb[:, 2 * H:3 * H]
    o_b = sigb[:, 3 * H:4 * H]
    h1b_last = o_b * jnp.tanh(i_b * g_b)

    # -------------------------------------------------------------- MLP head
    # dropout = identity (inference).  fc1's weight rows are split instead of
    # concatenating the two hidden halves.
    z = (jnp.dot(h1f_last, fw1_ref[0:H, :], preferred_element_type=f32)
         + jnp.dot(h1b_last, fw1_ref[H:H2, :], preferred_element_type=f32)
         + fb1_ref[...])
    z = jnp.maximum(z, 0.0)
    z = jnp.dot(z, fw2_ref[...], preferred_element_type=f32) + fb2_ref[...]
    z = jnp.maximum(z, 0.0)
    out_ref[...] = jnp.dot(z, fw3_ref[...], preferred_element_type=f32) + fb3_ref[...]


# ----------------------------------------------------------------------------
# Wrapper (weight packing + batch padding + pallas_call)
# ----------------------------------------------------------------------------
def _pack_fwd_gate_cols(w, H):
    """(R, 4H) -> (R, 8H): gate g placed at combined column block 2g (fwd slot)."""
    zeros = jnp.zeros((w.shape[0], H), w.dtype)
    parts = []
    for g in range(4):
        parts.append(w[:, g * H:(g + 1) * H])
        parts.append(zeros)
    return jnp.concatenate(parts, axis=1)


def _pack_bwd_gate_cols(w, H):
    """(R, 4H) -> (R, 8H): gate g placed at combined column block 2g+1 (bwd slot)."""
    zeros = jnp.zeros((w.shape[0], H), w.dtype)
    parts = []
    for g in range(4):
        parts.append(zeros)
        parts.append(w[:, g * H:(g + 1) * H])
    return jnp.concatenate(parts, axis=1)


def lstm_model_forward(params, x):
    """x: (B, T, input_size) batch-first, float32 -> (B, 1)."""
    B, T, D = x.shape
    l0, l1 = params["lstm"]
    fc = params["fc"]
    H = l0["fwd"][1].shape[0]

    # Pad batch to the f32 sublane tile so every in-kernel per-timestep access
    # is whole-sublane aligned.  Padded rows are computed (harmlessly, batch
    # entries are independent) and sliced off below.
    Bp = max(_SUBLANE, ((B + _SUBLANE - 1) // _SUBLANE) * _SUBLANE)

    x_t = jnp.transpose(x, (1, 0, 2)).astype(jnp.float32)             # (T, B, D)
    if Bp != B:
        x_t = jnp.pad(x_t, ((0, 0), (0, Bp - B), (0, 0)))
    # row t*Bp+b = [x[t, b] | x[T-1-t, b]]: one matmul yields both directions'
    # pre-gates with the reverse direction already time-reversed.
    x_comb = jnp.concatenate([x_t, x_t[::-1]], axis=-1).reshape(T * Bp, 2 * D)

    # Layer 0: fuse the two directions into block-diagonal weights whose gate
    # columns are interleaved as [i_f i_b | f_f f_b | g_f g_b | o_f o_b].
    wih0f, whh0f, b0f = l0["fwd"]
    wih0b, whh0b, b0b = l0["bwd"]
    wih0_comb = jnp.concatenate([_pack_fwd_gate_cols(wih0f, H),
                                 _pack_bwd_gate_cols(wih0b, H)], axis=0)   # (2D, 8H)
    whh0_comb = jnp.concatenate([_pack_fwd_gate_cols(whh0f, H),
                                 _pack_bwd_gate_cols(whh0b, H)], axis=0)   # (2H, 8H)
    b0_comb = _pack_fwd_gate_cols(b0f, H) + _pack_bwd_gate_cols(b0b, H)    # (1, 8H)

    wih1f, whh1f, b1f = l1["fwd"]
    # weight_hh of the last layer's reverse direction is mathematically unused:
    # only lstm_out[:, -1, :] is consumed, and that reverse hidden comes from
    # its first step with h0 = 0 (h @ W_hh == 0).
    wih1b, _whh1b_unused, b1b = l1["bwd"]

    operands = (
        x_comb,
        wih0_comb, whh0_comb, b0_comb,
        wih1f, whh1f, b1f,
        wih1b, b1b,
        fc["w1"], fc["b1"], fc["w2"], fc["b2"], fc["w3"], fc["b3"],
    )

    flops = int(
        2 * (T * Bp) * (2 * D) * (8 * H)            # layer-0 combined input projection
        + T * 2 * Bp * (2 * H) * (8 * H)            # layer-0 combined recurrent matmuls
        + 2 * (T * Bp) * (2 * H) * (4 * H)          # layer-1 fwd input projection
        + T * 2 * Bp * H * (4 * H)                  # layer-1 fwd recurrent matmuls
        + 2 * Bp * (2 * H) * (4 * H)                # layer-1 bwd single step
        + 2 * Bp * ((2 * H) * 32 + 32 * 16 + 16)    # MLP head
    )
    transcendentals = int(T * Bp * (2 * 8 * H + 2 * H)
                          + T * Bp * (2 * 4 * H + H)
                          + Bp * (2 * 4 * H + H))
    bytes_accessed = int(sum(a.size * a.dtype.itemsize for a in operands) + Bp * 4)

    out_padded = pl.pallas_call(
        _fused_lstm_model_kernel,
        out_shape=jax.ShapeDtypeStruct((Bp, 1), jnp.float32),
        in_specs=[_VMEM_SPEC] * len(operands),
        out_specs=_VMEM_SPEC,
        scratch_shapes=[pltpu.VMEM((T * Bp, 2 * H), jnp.float32)],
        cost_estimate=pl.CostEstimate(flops=flops,
                                      transcendentals=transcendentals,
                                      bytes_accessed=bytes_accessed),
    )(*operands)
    return out_padded[:B]


# ----------------------------------------------------------------------------
# Deterministic parameter init (PyTorch-style uniform(-1/sqrt(fan), 1/sqrt(fan)))
# ----------------------------------------------------------------------------
def _uniform(key, shape, bound):
    return jax.random.uniform(key, shape, jnp.float32, -bound, bound)


def init_params(key, input_size, hidden_size=32, num_layers=2):
    H = hidden_size
    k_lstm = 1.0 / math.sqrt(H)
    params = {"lstm": [], "fc": {}}
    for layer in range(num_layers):
        d_in = input_size if layer == 0 else 2 * H
        layer_p = {}
        for direction in ("fwd", "bwd"):
            key, k1, k2, k3, k4 = jax.random.split(key, 5)
            w_ih = _uniform(k1, (d_in, 4 * H), k_lstm)     # (D, 4H)
            w_hh = _uniform(k2, (H, 4 * H), k_lstm)        # (H, 4H)
            b_ih = _uniform(k3, (1, 4 * H), k_lstm)
            b_hh = _uniform(k4, (1, 4 * H), k_lstm)
            layer_p[direction] = (w_ih, w_hh, b_ih + b_hh)
        params["lstm"].append(layer_p)

    dims = [(2 * H, 32), (32, 16), (16, 1)]
    for idx, (fan_in, fan_out) in enumerate(dims, start=1):
        key, kw, kb = jax.random.split(key, 3)
        bound = 1.0 / math.sqrt(fan_in)
        params["fc"][f"w{idx}"] = _uniform(kw, (fan_in, fan_out), bound)
        params["fc"][f"b{idx}"] = _uniform(kb, (1, fan_out), bound)
    return params


# ----------------------------------------------------------------------------
# Pure-JAX reference (same math, un-fused) for a correctness check
# ----------------------------------------------------------------------------
def _reference_forward(params, x):
    def cell_seq(x_tm, w_ih, w_hh, b, reverse):
        T = x_tm.shape[0]
        H = w_hh.shape[0]
        h = jnp.zeros((x_tm.shape[1], H), jnp.float32)
        c = jnp.zeros_like(h)
        idx = range(T - 1, -1, -1) if reverse else range(T)
        outs = [None] * T
        for t in idx:
            gates = x_tm[t] @ w_ih + h @ w_hh + b
            i = jax.nn.sigmoid(gates[:, :H])
            f = jax.nn.sigmoid(gates[:, H:2 * H])
            g = jnp.tanh(gates[:, 2 * H:3 * H])
            o = jax.nn.sigmoid(gates[:, 3 * H:])
            c = f * c + i * g
            h = o * jnp.tanh(c)
            outs[t] = h
        return jnp.stack(outs, axis=0)

    h = jnp.transpose(x, (1, 0, 2)).astype(jnp.float32)
    for layer in params["lstm"]:
        fwd = cell_seq(h, *layer["fwd"], reverse=False)
        bwd = cell_seq(h, *layer["bwd"], reverse=True)
        h = jnp.concatenate([fwd, bwd], axis=-1)
    last = h[-1]
    fc = params["fc"]
    z = jnp.maximum(last @ fc["w1"] + fc["b1"], 0.0)
    z = jnp.maximum(z @ fc["w2"] + fc["b2"], 0.0)
    return z @ fc["w3"] + fc["b3"]


# ----------------------------------------------------------------------------
if __name__ == "__main__":
    INPUT_SIZE = 8
    HIDDEN = 32
    BATCH = 2
    SEQ = 8

    key = jax.random.PRNGKey(0)
    key, pkey, xkey = jax.random.split(key, 3)
    params = init_params(pkey, INPUT_SIZE, HIDDEN, num_layers=2)
    x = jax.random.normal(xkey, (BATCH, SEQ, INPUT_SIZE), jnp.float32)

    out = jax.jit(lambda xx: lstm_model_forward(params, xx))(x)
    out = jax.block_until_ready(out)
    assert out.shape == (BATCH, 1), out.shape
    assert bool(jnp.all(jnp.isfinite(out)))

    ref = _reference_forward(params, x)
    assert bool(jnp.allclose(out, ref, rtol=1e-3, atol=1e-3)), (out, ref)

    print("KERNEL_OK")
</pallas_src>

<mosaic_0001>
module attributes {stable_mosaic.version = 11 : i64} {
  func.func @_fused_lstm_model_kernel(%arg0: memref<64x16xf32, #tpu.memory_space<vmem>>, %arg1: memref<16x256xf32, #tpu.memory_space<vmem>>, %arg2: memref<64x256xf32, #tpu.memory_space<vmem>>, %arg3: memref<1x256xf32, #tpu.memory_space<vmem>>, %arg4: memref<64x128xf32, #tpu.memory_space<vmem>>, %arg5: memref<32x128xf32, #tpu.memory_space<vmem>>, %arg6: memref<1x128xf32, #tpu.memory_space<vmem>>, %arg7: memref<64x128xf32, #tpu.memory_space<vmem>>, %arg8: memref<1x128xf32, #tpu.memory_space<vmem>>, %arg9: memref<64x32xf32, #tpu.memory_space<vmem>>, %arg10: memref<1x32xf32, #tpu.memory_space<vmem>>, %arg11: memref<32x16xf32, #tpu.memory_space<vmem>>, %arg12: memref<1x16xf32, #tpu.memory_space<vmem>>, %arg13: memref<16x1xf32, #tpu.memory_space<vmem>>, %arg14: memref<1x1xf32, #tpu.memory_space<vmem>>, %arg15: memref<8x1xf32, #tpu.memory_space<vmem>>, %arg16: memref<64x64xf32, #tpu.memory_space<vmem>>) attributes {dimension_semantics = [], scalar_prefetch = 0 : i64, scratch_operands = 1 : i64, tpu.core_type = #tpu.core_type<tc>} {
    %c0 = arith.constant 0 : index
    %c0_0 = arith.constant 0 : index
    %0 = vector.load %arg0[%c0, %c0_0] : memref<64x16xf32, #tpu.memory_space<vmem>>, vector<64x16xf32>
    %c0_1 = arith.constant 0 : index
    %c0_2 = arith.constant 0 : index
    %1 = vector.load %arg1[%c0_1, %c0_2] : memref<16x256xf32, #tpu.memory_space<vmem>>, vector<16x256xf32>
    %cst = arith.constant dense<0.000000e+00> : vector<64x256xf32>
    %2 = tpu.matmul %0, %1, %cst {dimension_numbers = #tpu.dot_dimension_numbers<[1], [0], [0], [1], [0, 0, 1, 1], [], []>} : vector<64x16xf32>, vector<16x256xf32>, vector<64x256xf32> -> vector<64x256xf32>
    %c0_3 = arith.constant 0 : index
    %c0_4 = arith.constant 0 : index
    %3 = vector.load %arg3[%c0_3, %c0_4] : memref<1x256xf32, #tpu.memory_space<vmem>>, vector<1x256xf32>
    %4 = vector.broadcast %3 : vector<1x256xf32> to vector<64x256xf32>
    %5 = arith.addf %2, %4 : vector<64x256xf32>
    %c0_5 = arith.constant 0 : index
    %c0_6 = arith.constant 0 : index
    %6 = vector.load %arg2[%c0_5, %c0_6] : memref<64x256xf32, #tpu.memory_space<vmem>>, vector<64x256xf32>
    %cst_7 = arith.constant 0.000000e+00 : f32
    %7 = vector.broadcast %cst_7 : f32 to vector<8x64xf32>
    %cst_8 = arith.constant 0.000000e+00 : f32
    %8 = vector.broadcast %cst_8 : f32 to vector<8x64xf32>
    %9 = vector.extract_strided_slice %5 {offsets = [0, 0], sizes = [8, 256], strides = [1, 1]} : vector<64x256xf32> to vector<8x256xf32>
    %cst_9 = arith.constant dense<0.000000e+00> : vector<8x256xf32>
    %10 = tpu.matmul %7, %6, %cst_9 {dimension_numbers = #tpu.dot_dimension_numbers<[1], [0], [0], [1], [0, 0, 1, 1], [], []>} : vector<8x64xf32>, vector<64x256xf32>, vector<8x256xf32> -> vector<8x256xf32>
    %11 = arith.addf %9, %10 : vector<8x256xf32>
    %12 = arith.negf %11 : vector<8x256xf32>
    %13 = math.exp %12 : vector<8x256xf32>
    %cst_10 = arith.constant 1.000000e+00 : f32
    %14 = vector.broadcast %cst_10 : f32 to vector<8x256xf32>
    %15 = arith.addf %14, %13 : vector<8x256xf32>
    %16 = arith.divf %14, %15 : vector<8x256xf32>
    %17 = math.tanh %11 : vector<8x256xf32>
    %18 = vector.extract_strided_slice %16 {offsets = [0, 0], sizes = [8, 64], strides = [1, 1]} : vector<8x256xf32> to vector<8x64xf32>
    %19 = vector.extract_strided_slice %16 {offsets = [0, 64], sizes = [8, 64], strides = [1, 1]} : vector<8x256xf32> to vector<8x64xf32>
    %20 = vector.extract_strided_slice %17 {offsets = [0, 128], sizes = [8, 64], strides = [1, 1]} : vector<8x256xf32> to vector<8x64xf32>
    %21 = vector.extract_strided_slice %16 {offsets = [0, 192], sizes = [8, 64], strides = [1, 1]} : vector<8x256xf32> to vector<8x64xf32>
    %22 = arith.mulf %19, %8 : vector<8x64xf32>
    %23 = arith.mulf %18, %20 : vector<8x64xf32>
    %24 = arith.addf %22, %23 : vector<8x64xf32>
    %25 = math.tanh %24 : vector<8x64xf32>
    %26 = arith.mulf %21, %25 : vector<8x64xf32>
    %27 = vector.extract_strided_slice %26 {offsets = [0, 0], sizes = [8, 32], strides = [1, 1]} : vector<8x64xf32> to vector<8x32xf32>
    %c0_11 = arith.constant 0 : index
    %c0_12 = arith.constant 0 : index
    %28 = vector.load %arg16[%c0_11, %c0_12] : memref<64x64xf32, #tpu.memory_space<vmem>>, vector<8x32xf32>
    tpu.vector_store %arg16[%c0_11, %c0_12], %27 {strides = array<i32>} : memref<64x64xf32, #tpu.memory_space<vmem>>, vector<8x32xf32>,
    %29 = vector.extract_strided_slice %26 {offsets = [0, 32], sizes = [8, 32], strides = [1, 1]} : vector<8x64xf32> to vector<8x32xf32>
    %c56 = arith.constant 56 : index
    %c32 = arith.constant 32 : index
    %30 = vector.load %arg16[%c56, %c32] : memref<64x64xf32, #tpu.memory_space<vmem>>, vector<8x32xf32>
    tpu.vector_store %arg16[%c56, %c32], %29 {strides = array<i32>} : memref<64x64xf32, #tpu.memory_space<vmem>>, vector<8x32xf32>,
    %31 = vector.extract_strided_slice %26 {offsets = [0, 32], sizes = [8, 32], strides = [1, 1]} : vector<8x64xf32> to vector<8x32xf32>
    %32 = vector.extract_strided_slice %5 {offsets = [8, 0], sizes = [8, 256], strides = [1, 1]} : vector<64x256xf32> to vector<8x256xf32>
    %cst_13 = arith.constant dense<0.000000e+00> : vector<8x256xf32>
    %33 = tpu.matmul %26, %6, %cst_13 {dimension_numbers = #tpu.dot_dimension_numbers<[1], [0], [0], [1], [0, 0, 1, 1], [], []>} : vector<8x64xf32>, vector<64x256xf32>, vector<8x256xf32> -> vector<8x256xf32>
    %34 = arith.addf %32, %33 : vector<8x256xf32>
    %35 = arith.negf %34 : vector<8x256xf32>
    %36 = math.exp %35 : vector<8x256xf32>
    %cst_14 = arith.constant 1.000000e+00 : f32
    %37 = vector.broadcast %cst_14 : f32 to vector<8x256xf32>
    %38 = arith.addf %37, %36 : vector<8x256xf32>
    %39 = arith.divf %37, %38 : vector<8x256xf32>
    %40 = math.tanh %34 : vector<8x256xf32>
    %41 = vector.extract_strided_slice %39 {offsets = [0, 0], sizes = [8, 64], strides = [1, 1]} : vector<8x256xf32> to vector<8x64xf32>
    %42 = vector.extract_strided_slice %39 {offsets = [0, 64], sizes = [8, 64], strides = [1, 1]} : vector<8x256xf32> to vector<8x64xf32>
    %43 = vector.extract_strided_slice %40 {offsets = [0, 128], sizes = [8, 64], strides = [1, 1]} : vector<8x256xf32> to vector<8x64xf32>
    %44 = vector.extract_strided_slice %39 {offsets = [0, 192], sizes = [8, 64], strides = [1, 1]} : vector<8x256xf32> to vector<8x64xf32>
    %45 = arith.mulf %42, %24 : vector<8x64xf32>
    %46 = arith.mulf %41, %43 : vector<8x64xf32>
    %47 = arith.addf %45, %46 : vector<8x64xf32>
    %48 = math.tanh %47 : vector<8x64xf32>
    %49 = arith.mulf %44, %48 : vector<8x64xf32>
    %50 = vector.extract_strided_slice %49 {offsets = [0, 0], sizes = [8, 32], strides = [1, 1]} : vector<8x64xf32> to vector<8x32xf32>
    %c8 = arith.constant 8 : index
    %c0_15 = arith.constant 0 : index
    %51 = vector.load %arg16[%c8, %c0_15] : memref<64x64xf32, #tpu.memory_space<vmem>>, vector<8x32xf32>
    tpu.vector_store %arg16[%c8, %c0_15], %50 {strides = array<i32>} : memref<64x64xf32, #tpu.memory_space<vmem>>, vector<8x32xf32>,
    %52 = vector.extract_strided_slice %49 {offsets = [0, 32], sizes = [8, 32], strides = [1, 1]} : vector<8x64xf32> to vector<8x32xf32>
    %c48 = arith.constant 48 : index
    %c32_16 = arith.constant 32 : index
    %53 = vector.load %arg16[%c48, %c32_16] : memref<64x64xf32, #tpu.memory_space<vmem>>, vector<8x32xf32>
    tpu.vector_store %arg16[%c48, %c32_16], %52 {strides = array<i32>} : memref<64x64xf32, #tpu.memory_space<vmem>>, vector<8x32xf32>,
    %54 = vector.extract_strided_slice %5 {offsets = [16, 0], sizes = [8, 256], strides = [1, 1]} : vector<64x256xf32> to vector<8x256xf32>
    %cst_17 = arith.constant dense<0.000000e+00> : vector<8x256xf32>
    %55 = tpu.matmul %49, %6, %cst_17 {dimension_numbers = #tpu.dot_dimension_numbers<[1], [0], [0], [1], [0, 0, 1, 1], [], []>} : vector<8x64xf32>, vector<64x256xf32>, vector<8x256xf32> -> vector<8x256xf32>
    %56 = arith.addf %54, %55 : vector<8x256xf32>
    %57 = arith.negf %56 : vector<8x256xf32>
    %58 = math.exp %57 : vector<8x256xf32>
    %cst_18 = arith.constant 1.000000e+00 : f32
    %59 = vector.broadcast %cst_18 : f32 to vector<8x256xf32>
    %60 = arith.addf %59, %58 : vector<8x256xf32>
    %61 = arith.divf %59, %60 : vector<8x256xf32>
    %62 = math.tanh %56 : vector<8x256xf32>
    %63 = vector.extract_strided_slice %61 {offsets = [0, 0], sizes = [8, 64], strides = [1, 1]} : vector<8x256xf32> to vector<8x64xf32>
    %64 = vector.extract_strided_slice %61 {offsets = [0, 64], sizes = [8, 64], strides = [1, 1]} : vector<8x256xf32> to vector<8x64xf32>
    %65 = vector.extract_strided_slice %62 {offsets = [0, 128], sizes = [8, 64], strides = [1, 1]} : vector<8x256xf32> to vector<8x64xf32>
    %66 = vector.extract_strided_slice %61 {offsets = [0, 192], sizes = [8, 64], strides = [1, 1]} : vector<8x256xf32> to vector<8x64xf32>
    %67 = arith.mulf %64, %47 : vector<8x64xf32>
    %68 = arith.mulf %63, %65 : vector<8x64xf32>
    %69 = arith.addf %67, %68 : vector<8x64xf32>
    %70 = math.tanh %69 : vector<8x64xf32>
    %71 = arith.mulf %66, %70 : vector<8x64xf32>
    %72 = vector.extract_strided_slice %71 {offsets = [0, 0], sizes = [8, 32], strides = [1, 1]} : vector<8x64xf32> to vector<8x32xf32>
    %c16 = arith.constant 16 : index
    %c0_19 = arith.constant 0 : index
    %73 = vector.load %arg16[%c16, %c0_19] : memref<64x64xf32, #tpu.memory_space<vmem>>, vector<8x32xf32>
    tpu.vector_store %arg16[%c16, %c0_19], %72 {strides = array<i32>} : memref<64x64xf32, #tpu.memory_space<vmem>>, vector<8x32xf32>,
    %74 = vector.extract_strided_slice %71 {offsets = [0, 32], sizes = [8, 32], strides = [1, 1]} : vector<8x64xf32> to vector<8x32xf32>
    %c40 = arith.constant 40 : index
    %c32_20 = arith.constant 32 : index
    %75 = vector.load %arg16[%c40, %c32_20] : memref<64x64xf32, #tpu.memory_space<vmem>>, vector<8x32xf32>
    tpu.vector_store %arg16[%c40, %c32_20], %74 {strides = array<i32>} : memref<64x64xf32, #tpu.memory_space<vmem>>, vector<8x32xf32>,
    %76 = vector.extract_strided_slice %5 {offsets = [24, 0], sizes = [8, 256], strides = [1, 1]} : vector<64x256xf32> to vector<8x256xf32>
    %cst_21 = arith.constant dense<0.000000e+00> : vector<8x256xf32>
    %77 = tpu.matmul %71, %6, %cst_21 {dimension_numbers = #tpu.dot_dimension_numbers<[1], [0], [0], [1], [0, 0, 1, 1], [], []>} : vector<8x64xf32>, vector<64x256xf32>, vector<8x256xf32> -> vector<8x256xf32>
    %78 = arith.addf %76, %77 : vector<8x256xf32>
    %79 = arith.negf %78 : vector<8x256xf32>
    %80 = math.exp %79 : vector<8x256xf32>
    %cst_22 = arith.constant 1.000000e+00 : f32
    %81 = vector.broadcast %cst_22 : f32 to vector<8x256xf32>
    %82 = arith.addf %81, %80 : vector<8x256xf32>
    %83 = arith.divf %81, %82 : vector<8x256xf32>
    %84 = math.tanh %78 : vector<8x256xf32>
    %85 = vector.extract_strided_slice %83 {offsets = [0, 0], sizes = [8, 64], strides = [1, 1]} : vector<8x256xf32> to vector<8x64xf32>
    %86 = vector.extract_strided_slice %83 {offsets = [0, 64], sizes = [8, 64], strides = [1, 1]} : vector<8x256xf32> to vector<8x64xf32>
    %87 = vector.extract_strided_slice %84 {offsets = [0, 128], sizes = [8, 64], strides = [1, 1]} : vector<8x256xf32> to vector<8x64xf32>
    %88 = vector.extract_strided_slice %83 {offsets = [0, 192], sizes = [8, 64], strides = [1, 1]} : vector<8x256xf32> to vector<8x64xf32>
    %89 = arith.mulf %86, %69 : vector<8x64xf32>
    %90 = arith.mulf %85, %87 : vector<8x64xf32>
    %91 = arith.addf %89, %90 : vector<8x64xf32>
    %92 = math.tanh %91 : vector<8x64xf32>
    %93 = arith.mulf %88, %92 : vector<8x64xf32>
    %94 = vector.extract_strided_slice %93 {offsets = [0, 0], sizes = [8, 32], strides = [1, 1]} : vector<8x64xf32> to vector<8x32xf32>
    %c24 = arith.constant 24 : index
    %c0_23 = arith.constant 0 : index
    %95 = vector.load %arg16[%c24, %c0_23] : memref<64x64xf32, #tpu.memory_space<vmem>>, vector<8x32xf32>
    tpu.vector_store %arg16[%c24, %c0_23], %94 {strides = array<i32>} : memref<64x64xf32, #tpu.memory_space<vmem>>, vector<8x32xf32>,
    %96 = vector.extract_strided_slice %93 {offsets = [0, 32], sizes = [8, 32], strides = [1, 1]} : vector<8x64xf32> to vector<8x32xf32>
    %c32_24 = arith.constant 32 : index
    %c32_25 = arith.constant 32 : index
    %97 = vector.load %arg16[%c32_24, %c32_25] : memref<64x64xf32, #tpu.memory_space<vmem>>, vector<8x32xf32>
    tpu.vector_store %arg16[%c32_24, %c32_25], %96 {strides = array<i32>} : memref<64x64xf32, #tpu.memory_space<vmem>>, vector<8x32xf32>,
    %98 = vector.extract_strided_slice %5 {offsets = [32, 0], sizes = [8, 256], strides = [1, 1]} : vector<64x256xf32> to vector<8x256xf32>
    %cst_26 = arith.constant dense<0.000000e+00> : vector<8x256xf32>
    %99 = tpu.matmul %93, %6, %cst_26 {dimension_numbers = #tpu.dot_dimension_numbers<[1], [0], [0], [1], [0, 0, 1, 1], [], []>} : vector<8x64xf32>, vector<64x256xf32>, vector<8x256xf32> -> vector<8x256xf32>
    %100 = arith.addf %98, %99 : vector<8x256xf32>
    %101 = arith.negf %100 : vector<8x256xf32>
    %102 = math.exp %101 : vector<8x256xf32>
    %cst_27 = arith.constant 1.000000e+00 : f32
    %103 = vector.broadcast %cst_27 : f32 to vector<8x256xf32>
    %104 = arith.addf %103, %102 : vector<8x256xf32>
    %105 = arith.divf %103, %104 : vector<8x256xf32>
    %106 = math.tanh %100 : vector<8x256xf32>
    %107 = vector.extract_strided_slice %105 {offsets = [0, 0], sizes = [8, 64], strides = [1, 1]} : vector<8x256xf32> to vector<8x64xf32>
    %108 = vector.extract_strided_slice %105 {offsets = [0, 64], sizes = [8, 64], strides = [1, 1]} : vector<8x256xf32> to vector<8x64xf32>
    %109 = vector.extract_strided_slice %106 {offsets = [0, 128], sizes = [8, 64], strides = [1, 1]} : vector<8x256xf32> to vector<8x64xf32>
    %110 = vector.extract_strided_slice %105 {offsets = [0, 192], sizes = [8, 64], strides = [1, 1]} : vector<8x256xf32> to vector<8x64xf32>
    %111 = arith.mulf %108, %91 : vector<8x64xf32>
    %112 = arith.mulf %107, %109 : vector<8x64xf32>
    %113 = arith.addf %111, %112 : vector<8x64xf32>
    %114 = math.tanh %113 : vector<8x64xf32>
    %115 = arith.mulf %110, %114 : vector<8x64xf32>
    %116 = vector.extract_strided_slice %115 {offsets = [0, 0], sizes = [8, 32], strides = [1, 1]} : vector<8x64xf32> to vector<8x32xf32>
    %c32_28 = arith.constant 32 : index
    %c0_29 = arith.constant 0 : index
    %117 = vector.load %arg16[%c32_28, %c0_29] : memref<64x64xf32, #tpu.memory_space<vmem>>, vector<8x32xf32>
    tpu.vector_store %arg16[%c32_28, %c0_29], %116 {strides = array<i32>} : memref<64x64xf32, #tpu.memory_space<vmem>>, vector<8x32xf32>,
    %118 = vector.extract_strided_slice %115 {offsets = [0, 32], sizes = [8, 32], strides = [1, 1]} : vector<8x64xf32> to vector<8x32xf32>
    %c24_30 = arith.constant 24 : index
    %c32_31 = arith.constant 32 : index
    %119 = vector.load %arg16[%c24_30, %c32_31] : memref<64x64xf32, #tpu.memory_space<vmem>>, vector<8x32xf32>
    tpu.vector_store %arg16[%c24_30, %c32_31], %118 {strides = array<i32>} : memref<64x64xf32, #tpu.memory_space<vmem>>, vector<8x32xf32>,
    %120 = vector.extract_strided_slice %5 {offsets = [40, 0], sizes = [8, 256], strides = [1, 1]} : vector<64x256xf32> to vector<8x256xf32>
    %cst_32 = arith.constant dense<0.000000e+00> : vector<8x256xf32>
    %121 = tpu.matmul %115, %6, %cst_32 {dimension_numbers = #tpu.dot_dimension_numbers<[1], [0], [0], [1], [0, 0, 1, 1], [], []>} : vector<8x64xf32>, vector<64x256xf32>, vector<8x256xf32> -> vector<8x256xf32>
    %122 = arith.addf %120, %121 : vector<8x256xf32>
    %123 = arith.negf %122 : vector<8x256xf32>
    %124 = math.exp %123 : vector<8x256xf32>
    %cst_33 = arith.constant 1.000000e+00 : f32
    %125 = vector.broadcast %cst_33 : f32 to vector<8x256xf32>
    %126 = arith.addf %125, %124 : vector<8x256xf32>
    %127 = arith.divf %125, %126 : vector<8x256xf32>
    %128 = math.tanh %122 : vector<8x256xf32>
    %129 = vector.extract_strided_slice %127 {offsets = [0, 0], sizes = [8, 64], strides = [1, 1]} : vector<8x256xf32> to vector<8x64xf32>
    %130 = vector.extract_strided_slice %127 {offsets = [0, 64], sizes = [8, 64], strides = [1, 1]} : vector<8x256xf32> to vector<8x64xf32>
    %131 = vector.extract_strided_slice %128 {offsets = [0, 128], sizes = [8, 64], strides = [1, 1]} : vector<8x256xf32> to vector<8x64xf32>
    %132 = vector.extract_strided_slice %127 {offsets = [0, 192], sizes = [8, 64], strides = [1, 1]} : vector<8x256xf32> to vector<8x64xf32>
    %133 = arith.mulf %130, %113 : vector<8x64xf32>
    %134 = arith.mulf %129, %131 : vector<8x64xf32>
    %135 = arith.addf %133, %134 : vector<8x64xf32>
    %136 = math.tanh %135 : vector<8x64xf32>
    %137 = arith.mulf %132, %136 : vector<8x64xf32>
    %138 = vector.extract_strided_slice %137 {offsets = [0, 0], sizes = [8, 32], strides = [1, 1]} : vector<8x64xf32> to vector<8x32xf32>
    %c40_34 = arith.constant 40 : index
    %c0_35 = arith.constant 0 : index
    %139 = vector.load %arg16[%c40_34, %c0_35] : memref<64x64xf32, #tpu.memory_space<vmem>>, vector<8x32xf32>
    tpu.vector_store %arg16[%c40_34, %c0_35], %138 {strides = array<i32>} : memref<64x64xf32, #tpu.memory_space<vmem>>, vector<8x32xf32>,
    %140 = vector.extract_strided_slice %137 {offsets = [0, 32], sizes = [8, 32], strides = [1, 1]} : vector<8x64xf32> to vector<8x32xf32>
    %c16_36 = arith.constant 16 : index
    %c32_37 = arith.constant 32 : index
    %141 = vector.load %arg16[%c16_36, %c32_37] : memref<64x64xf32, #tpu.memory_space<vmem>>, vector<8x32xf32>
    tpu.vector_store %arg16[%c16_36, %c32_37], %140 {strides = array<i32>} : memref<64x64xf32, #tpu.memory_space<vmem>>, vector<8x32xf32>,
    %142 = vector.extract_strided_slice %5 {offsets = [48, 0], sizes = [8, 256], strides = [1, 1]} : vector<64x256xf32> to vector<8x256xf32>
    %cst_38 = arith.constant dense<0.000000e+00> : vector<8x256xf32>
    %143 = tpu.matmul %137, %6, %cst_38 {dimension_numbers = #tpu.dot_dimension_numbers<[1], [0], [0], [1], [0, 0, 1, 1], [], []>} : vector<8x64xf32>, vector<64x256xf32>, vector<8x256xf32> -> vector<8x256xf32>
    %144 = arith.addf %142, %143 : vector<8x256xf32>
    %145 = arith.negf %144 : vector<8x256xf32>
    %146 = math.exp %145 : vector<8x256xf32>
    %cst_39 = arith.constant 1.000000e+00 : f32
    %147 = vector.broadcast %cst_39 : f32 to vector<8x256xf32>
    %148 = arith.addf %147, %146 : vector<8x256xf32>
    %149 = arith.divf %147, %148 : vector<8x256xf32>
    %150 = math.tanh %144 : vector<8x256xf32>
    %151 = vector.extract_strided_slice %149 {offsets = [0, 0], sizes = [8, 64], strides = [1, 1]} : vector<8x256xf32> to vector<8x64xf32>
    %152 = vector.extract_strided_slice %149 {offsets = [0, 64], sizes = [8, 64], strides = [1, 1]} : vector<8x256xf32> to vector<8x64xf32>
    %153 = vector.extract_strided_slice %150 {offsets = [0, 128], sizes = [8, 64], strides = [1, 1]} : vector<8x256xf32> to vector<8x64xf32>
    %154 = vector.extract_strided_slice %149 {offsets = [0, 192], sizes = [8, 64], strides = [1, 1]} : vector<8x256xf32> to vector<8x64xf32>
    %155 = arith.mulf %152, %135 : vector<8x64xf32>
    %156 = arith.mulf %151, %153 : vector<8x64xf32>
    %157 = arith.addf %155, %156 : vector<8x64xf32>
    %158 = math.tanh %157 : vector<8x64xf32>
    %159 = arith.mulf %154, %158 : vector<8x64xf32>
    %160 = vector.extract_strided_slice %159 {offsets = [0, 0], sizes = [8, 32], strides = [1, 1]} : vector<8x64xf32> to vector<8x32xf32>
    %c48_40 = arith.constant 48 : index
    %c0_41 = arith.constant 0 : index
    %161 = vector.load %arg16[%c48_40, %c0_41] : memref<64x64xf32, #tpu.memory_space<vmem>>, vector<8x32xf32>
    tpu.vector_store %arg16[%c48_40, %c0_41], %160 {strides = array<i32>} : memref<64x64xf32, #tpu.memory_space<vmem>>, vector<8x32xf32>,
    %162 = vector.extract_strided_slice %159 {offsets = [0, 32], sizes = [8, 32], strides = [1, 1]} : vector<8x64xf32> to vector<8x32xf32>
    %c8_42 = arith.constant 8 : index
    %c32_43 = arith.constant 32 : index
    %163 = vector.load %arg16[%c8_42, %c32_43] : memref<64x64xf32, #tpu.memory_space<vmem>>, vector<8x32xf32>
    tpu.vector_store %arg16[%c8_42, %c32_43], %162 {strides = array<i32>} : memref<64x64xf32, #tpu.memory_space<vmem>>, vector<8x32xf32>,
    %164 = vector.extract_strided_slice %5 {offsets = [56, 0], sizes = [8, 256], strides = [1, 1]} : vector<64x256xf32> to vector<8x256xf32>
    %cst_44 = arith.constant dense<0.000000e+00> : vector<8x256xf32>
    %165 = tpu.matmul %159, %6, %cst_44 {dimension_numbers = #tpu.dot_dimension_numbers<[1], [0], [0], [1], [0, 0, 1, 1], [], []>} : vector<8x64xf32>, vector<64x256xf32>, vector<8x256xf32> -> vector<8x256xf32>
    %166 = arith.addf %164, %165 : vector<8x256xf32>
    %167 = arith.negf %166 : vector<8x256xf32>
    %168 = math.exp %167 : vector<8x256xf32>
    %cst_45 = arith.constant 1.000000e+00 : f32
    %169 = vector.broadcast %cst_45 : f32 to vector<8x256xf32>
    %170 = arith.addf %169, %168 : vector<8x256xf32>
    %171 = arith.divf %169, %170 : vector<8x256xf32>
    %172 = math.tanh %166 : vector<8x256xf32>
    %173 = vector.extract_strided_slice %171 {offsets = [0, 0], sizes = [8, 64], strides = [1, 1]} : vector<8x256xf32> to vector<8x64xf32>
    %174 = vector.extract_strided_slice %171 {offsets = [0, 64], sizes = [8, 64], strides = [1, 1]} : vector<8x256xf32> to vector<8x64xf32>
    %175 = vector.extract_strided_slice %172 {offsets = [0, 128], sizes = [8, 64], strides = [1, 1]} : vector<8x256xf32> to vector<8x64xf32>
    %176 = vector.extract_strided_slice %171 {offsets = [0, 192], sizes = [8, 64], strides = [1, 1]} : vector<8x256xf32> to vector<8x64xf32>
    %177 = arith.mulf %174, %157 : vector<8x64xf32>
    %178 = arith.mulf %173, %175 : vector<8x64xf32>
    %179 = arith.addf %177, %178 : vector<8x64xf32>
    %180 = math.tanh %179 : vector<8x64xf32>
    %181 = arith.mulf %176, %180 : vector<8x64xf32>
    %182 = vector.extract_strided_slice %181 {offsets = [0, 0], sizes = [8, 32], strides = [1, 1]} : vector<8x64xf32> to vector<8x32xf32>
    %c56_46 = arith.constant 56 : index
    %c0_47 = arith.constant 0 : index
    %183 = vector.load %arg16[%c56_46, %c0_47] : memref<64x64xf32, #tpu.memory_space<vmem>>, vector<8x32xf32>
    tpu.vector_store %arg16[%c56_46, %c0_47], %182 {strides = array<i32>} : memref<64x64xf32, #tpu.memory_space<vmem>>, vector<8x32xf32>,
    %184 = vector.extract_strided_slice %181 {offsets = [0, 32], sizes = [8, 32], strides = [1, 1]} : vector<8x64xf32> to vector<8x32xf32>
    %c0_48 = arith.constant 0 : index
    %c32_49 = arith.constant 32 : index
    %185 = vector.load %arg16[%c0_48, %c32_49] : memref<64x64xf32, #tpu.memory_space<vmem>>, vector<8x32xf32>
    tpu.vector_store %arg16[%c0_48, %c32_49], %184 {strides = array<i32>} : memref<64x64xf32, #tpu.memory_space<vmem>>, vector<8x32xf32>,
    %186 = vector.extract_strided_slice %181 {offsets = [0, 0], sizes = [8, 32], strides = [1, 1]} : vector<8x64xf32> to vector<8x32xf32>
    %c0_50 = arith.constant 0 : index
    %c0_51 = arith.constant 0 : index
    %187 = vector.load %arg16[%c0_50, %c0_51] : memref<64x64xf32, #tpu.memory_space<vmem>>, vector<64x64xf32>
    %c0_52 = arith.constant 0 : index
    %c0_53 = arith.constant 0 : index
    %188 = vector.load %arg4[%c0_52, %c0_53] : memref<64x128xf32, #tpu.memory_space<vmem>>, vector<64x128xf32>
    %cst_54 = arith.constant dense<0.000000e+00> : vector<64x128xf32>
    %189 = tpu.matmul %187, %188, %cst_54 {dimension_numbers = #tpu.dot_dimension_numbers<[1], [0], [0], [1], [0, 0, 1, 1], [], []>} : vector<64x64xf32>, vector<64x128xf32>, vector<64x128xf32> -> vector<64x128xf32>
    %c0_55 = arith.constant 0 : index
    %c0_56 = arith.constant 0 : index
    %190 = vector.load %arg6[%c0_55, %c0_56] : memref<1x128xf32, #tpu.memory_space<vmem>>, vector<1x128xf32>
    %191 = vector.broadcast %190 : vector<1x128xf32> to vector<64x128xf32>
    %192 = arith.addf %189, %191 : vector<64x128xf32>
    %c0_57 = arith.constant 0 : index
    %c0_58 = arith.constant 0 : index
    %193 = vector.load %arg5[%c0_57, %c0_58] : memref<32x128xf32, #tpu.memory_space<vmem>>, vector<32x128xf32>
    %cst_59 = arith.constant 0.000000e+00 : f32
    %194 = vector.broadcast %cst_59 : f32 to vector<8x32xf32>
    %cst_60 = arith.constant 0.000000e+00 : f32
    %195 = vector.broadcast %cst_60 : f32 to vector<8x32xf32>
    %196 = vector.extract_strided_slice %192 {offsets = [0, 0], sizes = [8, 128], strides = [1, 1]} : vector<64x128xf32> to vector<8x128xf32>
    %cst_61 = arith.constant dense<0.000000e+00> : vector<8x128xf32>
    %197 = tpu.matmul %194, %193, %cst_61 {dimension_numbers = #tpu.dot_dimension_numbers<[1], [0], [0], [1], [0, 0, 1, 1], [], []>} : vector<8x32xf32>, vector<32x128xf32>, vector<8x128xf32> -> vector<8x128xf32>
    %198 = arith.addf %196, %197 : vector<8x128xf32>
    %199 = arith.negf %198 : vector<8x128xf32>
    %200 = math.exp %199 : vector<8x128xf32>
    %cst_62 = arith.constant 1.000000e+00 : f32
    %201 = vector.broadcast %cst_62 : f32 to vector<8x128xf32>
    %202 = arith.addf %201, %200 : vector<8x128xf32>
    %203 = arith.divf %201, %202 : vector<8x128xf32>
    %204 = math.tanh %198 : vector<8x128xf32>
    %205 = vector.extract_strided_slice %203 {offsets = [0, 0], sizes = [8, 32], strides = [1, 1]} : vector<8x128xf32> to vector<8x32xf32>
    %206 = vector.extract_strided_slice %203 {offsets = [0, 32], sizes = [8, 32], strides = [1, 1]} : vector<8x128xf32> to vector<8x32xf32>
    %207 = vector.extract_strided_slice %204 {offsets = [0, 64], sizes = [8, 32], strides = [1, 1]} : vector<8x128xf32> to vector<8x32xf32>
    %208 = vector.extract_strided_slice %203 {offsets = [0, 96], sizes = [8, 32], strides = [1, 1]} : vector<8x128xf32> to vector<8x32xf32>
    %209 = arith.mulf %206, %195 : vector<8x32xf32>
    %210 = arith.mulf %205, %207 : vector<8x32xf32>
    %211 = arith.addf %209, %210 : vector<8x32xf32>
    %212 = math.tanh %211 : vector<8x32xf32>
    %213 = arith.mulf %208, %212 : vector<8x32xf32>
    %214 = vector.extract_strided_slice %192 {offsets = [8, 0], sizes = [8, 128], strides = [1, 1]} : vector<64x128xf32> to vector<8x128xf32>
    %cst_63 = arith.constant dense<0.000000e+00> : vector<8x128xf32>
    %215 = tpu.matmul %213, %193, %cst_63 {dimension_numbers = #tpu.dot_dimension_numbers<[1], [0], [0], [1], [0, 0, 1, 1], [], []>} : vector<8x32xf32>, vector<32x128xf32>, vector<8x128xf32> -> vector<8x128xf32>
    %216 = arith.addf %214, %215 : vector<8x128xf32>
    %217 = arith.negf %216 : vector<8x128xf32>
    %218 = math.exp %217 : vector<8x128xf32>
    %cst_64 = arith.constant 1.000000e+00 : f32
    %219 = vector.broadcast %cst_64 : f32 to vector<8x128xf32>
    %220 = arith.addf %219, %218 : vector<8x128xf32>
    %221 = arith.divf %219, %220 : vector<8x128xf32>
    %222 = math.tanh %216 : vector<8x128xf32>
    %223 = vector.extract_strided_slice %221 {offsets = [0, 0], sizes = [8, 32], strides = [1, 1]} : vector<8x128xf32> to vector<8x32xf32>
    %224 = vector.extract_strided_slice %221 {offsets = [0, 32], sizes = [8, 32], strides = [1, 1]} : vector<8x128xf32> to vector<8x32xf32>
    %225 = vector.extract_strided_slice %222 {offsets = [0, 64], sizes = [8, 32], strides = [1, 1]} : vector<8x128xf32> to vector<8x32xf32>
    %226 = vector.extract_strided_slice %221 {offsets = [0, 96], sizes = [8, 32], strides = [1, 1]} : vector<8x128xf32> to vector<8x32xf32>
    %227 = arith.mulf %224, %211 : vector<8x32xf32>
    %228 = arith.mulf %223, %225 : vector<8x32xf32>
    %229 = arith.addf %227, %228 : vector<8x32xf32>
    %230 = math.tanh %229 : vector<8x32xf32>
    %231 = arith.mulf %226, %230 : vector<8x32xf32>
    %232 = vector.extract_strided_slice %192 {offsets = [16, 0], sizes = [8, 128], strides = [1, 1]} : vector<64x128xf32> to vector<8x128xf32>
    %cst_65 = arith.constant dense<0.000000e+00> : vector<8x128xf32>
    %233 = tpu.matmul %231, %193, %cst_65 {dimension_numbers = #tpu.dot_dimension_numbers<[1], [0], [0], [1], [0, 0, 1, 1], [], []>} : vector<8x32xf32>, vector<32x128xf32>, vector<8x128xf32> -> vector<8x128xf32>
    %234 = arith.addf %232, %233 : vector<8x128xf32>
    %235 = arith.negf %234 : vector<8x128xf32>
    %236 = math.exp %235 : vector<8x128xf32>
    %cst_66 = arith.constant 1.000000e+00 : f32
    %237 = vector.broadcast %cst_66 : f32 to vector<8x128xf32>
    %238 = arith.addf %237, %236 : vector<8x128xf32>
    %239 = arith.divf %237, %238 : vector<8x128xf32>
    %240 = math.tanh %234 : vector<8x128xf32>
    %241 = vector.extract_strided_slice %239 {offsets = [0, 0], sizes = [8, 32], strides = [1, 1]} : vector<8x128xf32> to vector<8x32xf32>
    %242 = vector.extract_strided_slice %239 {offsets = [0, 32], sizes = [8, 32], strides = [1, 1]} : vector<8x128xf32> to vector<8x32xf32>
    %243 = vector.extract_strided_slice %240 {offsets = [0, 64], sizes = [8, 32], strides = [1, 1]} : vector<8x128xf32> to vector<8x32xf32>
    %244 = vector.extract_strided_slice %239 {offsets = [0, 96], sizes = [8, 32], strides = [1, 1]} : vector<8x128xf32> to vector<8x32xf32>
    %245 = arith.mulf %242, %229 : vector<8x32xf32>
    %246 = arith.mulf %241, %243 : vector<8x32xf32>
    %247 = arith.addf %245, %246 : vector<8x32xf32>
    %248 = math.tanh %247 : vector<8x32xf32>
    %249 = arith.mulf %244, %248 : vector<8x32xf32>
    %250 = vector.extract_strided_slice %192 {offsets = [24, 0], sizes = [8, 128], strides = [1, 1]} : vector<64x128xf32> to vector<8x128xf32>
    %cst_67 = arith.constant dense<0.000000e+00> : vector<8x128xf32>
    %251 = tpu.matmul %249, %193, %cst_67 {dimension_numbers = #tpu.dot_dimension_numbers<[1], [0], [0], [1], [0, 0, 1, 1], [], []>} : vector<8x32xf32>, vector<32x128xf32>, vector<8x128xf32> -> vector<8x128xf32>
    %252 = arith.addf %250, %251 : vector<8x128xf32>
    %253 = arith.negf %252 : vector<8x128xf32>
    %254 = math.exp %253 : vector<8x128xf32>
    %cst_68 = arith.constant 1.000000e+00 : f32
    %255 = vector.broadcast %cst_68 : f32 to vector<8x128xf32>
    %256 = arith.addf %255, %254 : vector<8x128xf32>
    %257 = arith.divf %255, %256 : vector<8x128xf32>
    %258 = math.tanh %252 : vector<8x128xf32>
    %259 = vector.extract_strided_slice %257 {offsets = [0, 0], sizes = [8, 32], strides = [1, 1]} : vector<8x128xf32> to vector<8x32xf32>
    %260 = vector.extract_strided_slice %257 {offsets = [0, 32], sizes = [8, 32], strides = [1, 1]} : vector<8x128xf32> to vector<8x32xf32>
    %261 = vector.extract_strided_slice %258 {offsets = [0, 64], sizes = [8, 32], strides = [1, 1]} : vector<8x128xf32> to vector<8x32xf32>
    %262 = vector.extract_strided_slice %257 {offsets = [0, 96], sizes = [8, 32], strides = [1, 1]} : vector<8x128xf32> to vector<8x32xf32>
    %263 = arith.mulf %260, %247 : vector<8x32xf32>
    %264 = arith.mulf %259, %261 : vector<8x32xf32>
    %265 = arith.addf %263, %264 : vector<8x32xf32>
    %266 = math.tanh %265 : vector<8x32xf32>
    %267 = arith.mulf %262, %266 : vector<8x32xf32>
    %268 = vector.extract_strided_slice %192 {offsets = [32, 0], sizes = [8, 128], strides = [1, 1]} : vector<64x128xf32> to vector<8x128xf32>
    %cst_69 = arith.constant dense<0.000000e+00> : vector<8x128xf32>
    %269 = tpu.matmul %267, %193, %cst_69 {dimension_numbers = #tpu.dot_dimension_numbers<[1], [0], [0], [1], [0, 0, 1, 1], [], []>} : vector<8x32xf32>, vector<32x128xf32>, vector<8x128xf32> -> vector<8x128xf32>
    %270 = arith.addf %268, %269 : vector<8x128xf32>
    %271 = arith.negf %270 : vector<8x128xf32>
    %272 = math.exp %271 : vector<8x128xf32>
    %cst_70 = arith.constant 1.000000e+00 : f32
    %273 = vector.broadcast %cst_70 : f32 to vector<8x128xf32>
    %274 = arith.addf %273, %272 : vector<8x128xf32>
    %275 = arith.divf %273, %274 : vector<8x128xf32>
    %276 = math.tanh %270 : vector<8x128xf32>
    %277 = vector.extract_strided_slice %275 {offsets = [0, 0], sizes = [8, 32], strides = [1, 1]} : vector<8x128xf32> to vector<8x32xf32>
    %278 = vector.extract_strided_slice %275 {offsets = [0, 32], sizes = [8, 32], strides = [1, 1]} : vector<8x128xf32> to vector<8x32xf32>
    %279 = vector.extract_strided_slice %276 {offsets = [0, 64], sizes = [8, 32], strides = [1, 1]} : vector<8x128xf32> to vector<8x32xf32>
    %280 = vector.extract_strided_slice %275 {offsets = [0, 96], sizes = [8, 32], strides = [1, 1]} : vector<8x128xf32> to vector<8x32xf32>
    %281 = arith.mulf %278, %265 : vector<8x32xf32>
    %282 = arith.mulf %277, %279 : vector<8x32xf32>
    %283 = arith.addf %281, %282 : vector<8x32xf32>
    %284 = math.tanh %283 : vector<8x32xf32>
    %285 = arith.mulf %280, %284 : vector<8x32xf32>
    %286 = vector.extract_strided_slice %192 {offsets = [40, 0], sizes = [8, 128], strides = [1, 1]} : vector<64x128xf32> to vector<8x128xf32>
    %cst_71 = arith.constant dense<0.000000e+00> : vector<8x128xf32>
    %287 = tpu.matmul %285, %193, %cst_71 {dimension_numbers = #tpu.dot_dimension_numbers<[1], [0], [0], [1], [0, 0, 1, 1], [], []>} : vector<8x32xf32>, vector<32x128xf32>, vector<8x128xf32> -> vector<8x128xf32>
    %288 = arith.addf %286, %287 : vector<8x128xf32>
    %289 = arith.negf %288 : vector<8x128xf32>
    %290 = math.exp %289 : vector<8x128xf32>
    %cst_72 = arith.constant 1.000000e+00 : f32
    %291 = vector.broadcast %cst_72 : f32 to vector<8x128xf32>
    %292 = arith.addf %291, %290 : vector<8x128xf32>
    %293 = arith.divf %291, %292 : vector<8x128xf32>
    %294 = math.tanh %288 : vector<8x128xf32>
    %295 = vector.extract_strided_slice %293 {offsets = [0, 0], sizes = [8, 32], strides = [1, 1]} : vector<8x128xf32> to vector<8x32xf32>
    %296 = vector.extract_strided_slice %293 {offsets = [0, 32], sizes = [8, 32], strides = [1, 1]} : vector<8x128xf32> to vector<8x32xf32>
    %297 = vector.extract_strided_slice %294 {offsets = [0, 64], sizes = [8, 32], strides = [1, 1]} : vector<8x128xf32> to vector<8x32xf32>
    %298 = vector.extract_strided_slice %293 {offsets = [0, 96], sizes = [8, 32], strides = [1, 1]} : vector<8x128xf32> to vector<8x32xf32>
    %299 = arith.mulf %296, %283 : vector<8x32xf32>
    %300 = arith.mulf %295, %297 : vector<8x32xf32>
    %301 = arith.addf %299, %300 : vector<8x32xf32>
    %302 = math.tanh %301 : vector<8x32xf32>
    %303 = arith.mulf %298, %302 : vector<8x32xf32>
    %304 = vector.extract_strided_slice %192 {offsets = [48, 0], sizes = [8, 128], strides = [1, 1]} : vector<64x128xf32> to vector<8x128xf32>
    %cst_73 = arith.constant dense<0.000000e+00> : vector<8x128xf32>
    %305 = tpu.matmul %303, %193, %cst_73 {dimension_numbers = #tpu.dot_dimension_numbers<[1], [0], [0], [1], [0, 0, 1, 1], [], []>} : vector<8x32xf32>, vector<32x128xf32>, vector<8x128xf32> -> vector<8x128xf32>
    %306 = arith.addf %304, %305 : vector<8x128xf32>
    %307 = arith.negf %306 : vector<8x128xf32>
    %308 = math.exp %307 : vector<8x128xf32>
    %cst_74 = arith.constant 1.000000e+00 : f32
    %309 = vector.broadcast %cst_74 : f32 to vector<8x128xf32>
    %310 = arith.addf %309, %308 : vector<8x128xf32>
    %311 = arith.divf %309, %310 : vector<8x128xf32>
    %312 = math.tanh %306 : vector<8x128xf32>
    %313 = vector.extract_strided_slice %311 {offsets = [0, 0], sizes = [8, 32], strides = [1, 1]} : vector<8x128xf32> to vector<8x32xf32>
    %314 = vector.extract_strided_slice %311 {offsets = [0, 32], sizes = [8, 32], strides = [1, 1]} : vector<8x128xf32> to vector<8x32xf32>
    %315 = vector.extract_strided_slice %312 {offsets = [0, 64], sizes = [8, 32], strides = [1, 1]} : vector<8x128xf32> to vector<8x32xf32>
    %316 = vector.extract_strided_slice %311 {offsets = [0, 96], sizes = [8, 32], strides = [1, 1]} : vector<8x128xf32> to vector<8x32xf32>
    %317 = arith.mulf %314, %301 : vector<8x32xf32>
    %318 = arith.mulf %313, %315 : vector<8x32xf32>
    %319 = arith.addf %317, %318 : vector<8x32xf32>
    %320 = math.tanh %319 : vector<8x32xf32>
    %321 = arith.mulf %316, %320 : vector<8x32xf32>
    %322 = vector.extract_strided_slice %192 {offsets = [56, 0], sizes = [8, 128], strides = [1, 1]} : vector<64x128xf32> to vector<8x128xf32>
    %cst_75 = arith.constant dense<0.000000e+00> : vector<8x128xf32>
    %323 = tpu.matmul %321, %193, %cst_75 {dimension_numbers = #tpu.dot_dimension_numbers<[1], [0], [0], [1], [0, 0, 1, 1], [], []>} : vector<8x32xf32>, vector<32x128xf32>, vector<8x128xf32> -> vector<8x128xf32>
    %324 = arith.addf %322, %323 : vector<8x128xf32>
    %325 = arith.negf %324 : vector<8x128xf32>
    %326 = math.exp %325 : vector<8x128xf32>
    %cst_76 = arith.constant 1.000000e+00 : f32
    %327 = vector.broadcast %cst_76 : f32 to vector<8x128xf32>
    %328 = arith.addf %327, %326 : vector<8x128xf32>
    %329 = arith.divf %327, %328 : vector<8x128xf32>
    %330 = math.tanh %324 : vector<8x128xf32>
    %331 = vector.extract_strided_slice %329 {offsets = [0, 0], sizes = [8, 32], strides = [1, 1]} : vector<8x128xf32> to vector<8x32xf32>
    %332 = vector.extract_strided_slice %329 {offsets = [0, 32], sizes = [8, 32], strides = [1, 1]} : vector<8x128xf32> to vector<8x32xf32>
    %333 = vector.extract_strided_slice %330 {offsets = [0, 64], sizes = [8, 32], strides = [1, 1]} : vector<8x128xf32> to vector<8x32xf32>
    %334 = vector.extract_strided_slice %329 {offsets = [0, 96], sizes = [8, 32], strides = [1, 1]} : vector<8x128xf32> to vector<8x32xf32>
    %335 = arith.mulf %332, %319 : vector<8x32xf32>
    %336 = arith.mulf %331, %333 : vector<8x32xf32>
    %337 = arith.addf %335, %336 : vector<8x32xf32>
    %338 = math.tanh %337 : vector<8x32xf32>
    %339 = arith.mulf %334, %338 : vector<8x32xf32>
    %c0_77 = arith.constant 0 : index
    %c0_78 = arith.constant 0 : index
    %340 = vector.load %arg7[%c0_77, %c0_78] : memref<64x128xf32, #tpu.memory_space<vmem>>, vector<32x128xf32>
    %cst_79 = arith.constant dense<0.000000e+00> : vector<8x128xf32>
    %341 = tpu.matmul %186, %340, %cst_79 {dimension_numbers = #tpu.dot_dimension_numbers<[1], [0], [0], [1], [0, 0, 1, 1], [], []>} : vector<8x32xf32>, vector<32x128xf32>, vector<8x128xf32> -> vector<8x128xf32>
    %c32_80 = arith.constant 32 : index
    %c0_81 = arith.constant 0 : index
    %342 = vector.load %arg7[%c32_80, %c0_81] : memref<64x128xf32, #tpu.memory_space<vmem>>, vector<32x128xf32>
    %cst_82 = arith.constant dense<0.000000e+00> : vector<8x128xf32>
    %343 = tpu.matmul %31, %342, %cst_82 {dimension_numbers = #tpu.dot_dimension_numbers<[1], [0], [0], [1], [0, 0, 1, 1], [], []>} : vector<8x32xf32>, vector<32x128xf32>, vector<8x128xf32> -> vector<8x128xf32>
    %344 = arith.addf %341, %343 : vector<8x128xf32>
    %c0_83 = arith.constant 0 : index
    %c0_84 = arith.constant 0 : index
    %345 = vector.load %arg8[%c0_83, %c0_84] : memref<1x128xf32, #tpu.memory_space<vmem>>, vector<1x128xf32>
    %346 = vector.broadcast %345 : vector<1x128xf32> to vector<8x128xf32>
    %347 = arith.addf %344, %346 : vector<8x128xf32>
    %348 = arith.negf %347 : vector<8x128xf32>
    %349 = math.exp %348 : vector<8x128xf32>
    %cst_85 = arith.constant 1.000000e+00 : f32
    %350 = vector.broadcast %cst_85 : f32 to vector<8x128xf32>
    %351 = arith.addf %350, %349 : vector<8x128xf32>
    %352 = arith.divf %350, %351 : vector<8x128xf32>
    %353 = math.tanh %347 : vector<8x128xf32>
    %354 = vector.extract_strided_slice %352 {offsets = [0, 0], sizes = [8, 32], strides = [1, 1]} : vector<8x128xf32> to vector<8x32xf32>
    %355 = vector.extract_strided_slice %353 {offsets = [0, 64], sizes = [8, 32], strides = [1, 1]} : vector<8x128xf32> to vector<8x32xf32>
    %356 = vector.extract_strided_slice %352 {offsets = [0, 96], sizes = [8, 32], strides = [1, 1]} : vector<8x128xf32> to vector<8x32xf32>
    %357 = arith.mulf %354, %355 : vector<8x32xf32>
    %358 = math.tanh %357 : vector<8x32xf32>
    %359 = arith.mulf %356, %358 : vector<8x32xf32>
    %c0_86 = arith.constant 0 : index
    %c0_87 = arith.constant 0 : index
    %360 = vector.load %arg9[%c0_86, %c0_87] : memref<64x32xf32, #tpu.memory_space<vmem>>, vector<32x32xf32>
    %cst_88 = arith.constant dense<0.000000e+00> : vector<8x32xf32>
    %361 = tpu.matmul %339, %360, %cst_88 {dimension_numbers = #tpu.dot_dimension_numbers<[1], [0], [0], [1], [0, 0, 1, 1], [], []>} : vector<8x32xf32>, vector<32x32xf32>, vector<8x32xf32> -> vector<8x32xf32>
    %c32_89 = arith.constant 32 : index
    %c0_90 = arith.constant 0 : index
    %362 = vector.load %arg9[%c32_89, %c0_90] : memref<64x32xf32, #tpu.memory_space<vmem>>, vector<32x32xf32>
    %cst_91 = arith.constant dense<0.000000e+00> : vector<8x32xf32>
    %363 = tpu.matmul %359, %362, %cst_91 {dimension_numbers = #tpu.dot_dimension_numbers<[1], [0], [0], [1], [0, 0, 1, 1], [], []>} : vector<8x32xf32>, vector<32x32xf32>, vector<8x32xf32> -> vector<8x32xf32>
    %364 = arith.addf %361, %363 : vector<8x32xf32>
    %c0_92 = arith.constant 0 : index
    %c0_93 = arith.constant 0 : index
    %365 = vector.load %arg10[%c0_92, %c0_93] : memref<1x32xf32, #tpu.memory_space<vmem>>, vector<1x32xf32>
    %366 = vector.broadcast %365 : vector<1x32xf32> to vector<8x32xf32>
    %367 = arith.addf %364, %366 : vector<8x32xf32>
    %cst_94 = arith.constant 0.000000e+00 : f32
    %368 = vector.broadcast %cst_94 : f32 to vector<8x32xf32>
    %369 = arith.maximumf %367, %368 : vector<8x32xf32>
    %c0_95 = arith.constant 0 : index
    %c0_96 = arith.constant 0 : index
    %370 = vector.load %arg11[%c0_95, %c0_96] : memref<32x16xf32, #tpu.memory_space<vmem>>, vector<32x16xf32>
    %cst_97 = arith.constant dense<0.000000e+00> : vector<8x16xf32>
    %371 = tpu.matmul %369, %370, %cst_97 {dimension_numbers = #tpu.dot_dimension_numbers<[1], [0], [0], [1], [0, 0, 1, 1], [], []>} : vector<8x32xf32>, vector<32x16xf32>, vector<8x16xf32> -> vector<8x16xf32>
    %c0_98 = arith.constant 0 : index
    %c0_99 = arith.constant 0 : index
    %372 = vector.load %arg12[%c0_98, %c0_99] : memref<1x16xf32, #tpu.memory_space<vmem>>, vector<1x16xf32>
    %373 = vector.broadcast %372 : vector<1x16xf32> to vector<8x16xf32>
    %374 = arith.addf %371, %373 : vector<8x16xf32>
    %cst_100 = arith.constant 0.000000e+00 : f32
    %375 = vector.broadcast %cst_100 : f32 to vector<8x16xf32>
    %376 = arith.maximumf %374, %375 : vector<8x16xf32>
    %c0_101 = arith.constant 0 : index
    %c0_102 = arith.constant 0 : index
    %377 = vector.load %arg13[%c0_101, %c0_102] : memref<16x1xf32, #tpu.memory_space<vmem>>, vector<16x1xf32>
    %cst_103 = arith.constant dense<0.000000e+00> : vector<8x1xf32>
    %378 = tpu.matmul %376, %377, %cst_103 {dimension_numbers = #tpu.dot_dimension_numbers<[1], [0], [0], [1], [0, 0, 1, 1], [], []>} : vector<8x16xf32>, vector<16x1xf32>, vector<8x1xf32> -> vector<8x1xf32>
    %c0_104 = arith.constant 0 : index
    %c0_105 = arith.constant 0 : index
    %379 = vector.load %arg14[%c0_104, %c0_105] : memref<1x1xf32, #tpu.memory_space<vmem>>, vector<1x1xf32>
    %380 = vector.broadcast %379 : vector<1x1xf32> to vector<8x1xf32>
    %381 = arith.addf %378, %380 : vector<8x1xf32>
    %c0_106 = arith.constant 0 : index
    %c0_107 = arith.constant 0 : index
    %382 = vector.load %arg15[%c0_106, %c0_107] : memref<8x1xf32, #tpu.memory_space<vmem>>, vector<8x1xf32>
    tpu.vector_store %arg15[%c0_106, %c0_107], %381 {strides = array<i32>} : memref<8x1xf32, #tpu.memory_space<vmem>>, vector<8x1xf32>,
    return
  }
}

</mosaic_0001>

<llo_original>
// kernel: _lambda_.1
$region0: #{_lambda_.1}
  #allocation0 [shape = 'u32[]', space=smem, size = 0x4, offset = 0x4, fixed_abs, tag = 'smem constant byte address 0x4 - core index']
  #allocation1 [shape = 'u32[144,128]{1,0:T(1,128)}', space=vmem, size = 0x12000, scoped, tag = 'internal scratch']
  #allocation2 [shape = 'f32[64,64]{1,0:T(8,128)}', space=vmem, size = 0x8000, scoped, tag = 'scratch operand']
  #allocation3 [shape = 'f32[1,1]{1,0:T(1,128)S(1)}', space=vmem, size = 0x200, scoped, tag = 'scoped memory for _lambda_.1']
  %s0 = inlined_call_operand.vmem [shape: f32[64,16], index: 0, kind: input, shape index: {}]
  %s1 = inlined_call_operand.vmem [shape: f32[16,256], index: 1, kind: input, shape index: {}]
  %s2 = inlined_call_operand.vmem [shape: f32[64,256], index: 2, kind: input, shape index: {}]
  %s3 = inlined_call_operand.vmem [shape: f32[1,256], index: 3, kind: input, shape index: {}]
  %s4 = inlined_call_operand.vmem [shape: f32[64,128], index: 4, kind: input, shape index: {}]
  %s5 = inlined_call_operand.vmem [shape: f32[32,128], index: 5, kind: input, shape index: {}]
  %s6 = inlined_call_operand.vmem [shape: f32[1,128], index: 6, kind: input, shape index: {}]
  %s7 = inlined_call_operand.vmem [shape: f32[64,128], index: 7, kind: input, shape index: {}]
  %s8 = inlined_call_operand.vmem [shape: f32[1,128], index: 8, kind: input, shape index: {}]
  %s9 = inlined_call_operand.vmem [shape: f32[64,32], index: 9, kind: input, shape index: {}]
  %s10 = inlined_call_operand.vmem [shape: f32[1,32], index: 10, kind: input, shape index: {}]
  %s11 = inlined_call_operand.vmem [shape: f32[32,16], index: 11, kind: input, shape index: {}]
  %s12 = inlined_call_operand.vmem [shape: f32[1,16], index: 12, kind: input, shape index: {}]
  %s13 = inlined_call_operand.vmem [shape: f32[16,1], index: 13, kind: input, shape index: {}]
  %s14 = inlined_call_operand.<no memory space> [shape: f32[1,1], index: 14, kind: input, shape index: {}]
  %s15 = inlined_call_operand.vmem [shape: f32[8,1], index: 15, kind: output, shape index: {}]
  %s16 = sld [smem:[#allocation0]]
  $region70: #{_lambda_.1} parent=0
    _
  %s18 = ssub.s32 1, %s16
  %s19 = scalar_select 0, %s18, %s16
  %v20 = vstv %s14
  %21 = vst [vmem:[#allocation3] sm:$0x1] %v20
  // Predicated region
  $region2: #{_lambda_.1} parent=0 // pred_check
    _
  $region3: #{_lambda_.1} parent=0 // pred_check_branch
    %23 = sbr.rel (0) target = $region5
  $region4: #{_lambda_.1} parent=0 // pred_region
    _
  $region5: #{_lambda_.1} parent=0 // pred_fallthru
    _
  // Predicated region
  $region6: #{_lambda_.1} parent=0 // pred_check
    _
  $region7: #{_lambda_.1} parent=0 // pred_check_branch
    %25 = sbr.rel (0) target = $region9
  $region8: #{_lambda_.1} parent=0 // pred_region
    _
  $region9: #{_lambda_.1} parent=0 // pred_fallthru
    _
  // Predicated region
  $region10: #{_lambda_.1} parent=0 // pred_check
    _
  $region11: #{_lambda_.1} parent=0 // pred_check_branch
    %27 = sbr.rel (0) target = $region13
  $region12: #{_lambda_.1} parent=0 // pred_region
    _
  $region13: #{_lambda_.1} parent=0 // pred_fallthru
    _
  // Predicated region
  $region14: #{_lambda_.1} parent=0 // pred_check
    _
  $region15: #{_lambda_.1} parent=0 // pred_check_branch
    %29 = sbr.rel (0) target = $region17
  $region16: #{_lambda_.1} parent=0 // pred_region
    _
  $region17: #{_lambda_.1} parent=0 // pred_fallthru
    _
  // Predicated region
  $region18: #{_lambda_.1} parent=0 // pred_check
    _
  $region19: #{_lambda_.1} parent=0 // pred_check_branch
    %31 = sbr.rel (0) target = $region21
  $region20: #{_lambda_.1} parent=0 // pred_region
    _
  $region21: #{_lambda_.1} parent=0 // pred_fallthru
    _
  // Predicated region
  $region22: #{_lambda_.1} parent=0 // pred_check
    _
  $region23: #{_lambda_.1} parent=0 // pred_check_branch
    %33 = sbr.rel (0) target = $region25
  $region24: #{_lambda_.1} parent=0 // pred_region
    _
  $region25: #{_lambda_.1} parent=0 // pred_fallthru
    _
  // Predicated region
  $region26: #{_lambda_.1} parent=0 // pred_check
    _
  $region27: #{_lambda_.1} parent=0 // pred_check_branch
    %35 = sbr.rel (0) target = $region29
  $region28: #{_lambda_.1} parent=0 // pred_region
    _
  $region29: #{_lambda_.1} parent=0 // pred_fallthru
    _
  // Predicated region
  $region30: #{_lambda_.1} parent=0 // pred_check
    _
  $region31: #{_lambda_.1} parent=0 // pred_check_branch
    %37 = sbr.rel (0) target = $region33
  $region32: #{_lambda_.1} parent=0 // pred_region
    _
  $region33: #{_lambda_.1} parent=0 // pred_fallthru
    _
  // Predicated region
  $region34: #{_lambda_.1} parent=0 // pred_check
    _
  $region35: #{_lambda_.1} parent=0 // pred_check_branch
    %39 = sbr.rel (0) target = $region37
  $region36: #{_lambda_.1} parent=0 // pred_region
    _
  $region37: #{_lambda_.1} parent=0 // pred_fallthru
    _
  // Predicated region
  $region38: #{_lambda_.1} parent=0 // pred_check
    _
  $region39: #{_lambda_.1} parent=0 // pred_check_branch
    %41 = sbr.rel (0) target = $region41
  $region40: #{_lambda_.1} parent=0 // pred_region
    _
  $region41: #{_lambda_.1} parent=0 // pred_fallthru
    _
  // Predicated region
  $region42: #{_lambda_.1} parent=0 // pred_check
    _
  $region43: #{_lambda_.1} parent=0 // pred_check_branch
    %43 = sbr.rel (0) target = $region45
  $region44: #{_lambda_.1} parent=0 // pred_region
    _
  $region45: #{_lambda_.1} parent=0 // pred_fallthru
    _
  // Predicated region
  $region46: #{_lambda_.1} parent=0 // pred_check
    _
  $region47: #{_lambda_.1} parent=0 // pred_check_branch
    %45 = sbr.rel (0) target = $region49
  $region48: #{_lambda_.1} parent=0 // pred_region
    _
  $region49: #{_lambda_.1} parent=0 // pred_fallthru
    _
  // Predicated region
  $region50: #{_lambda_.1} parent=0 // pred_check
    _
  $region51: #{_lambda_.1} parent=0 // pred_check_branch
    %47 = sbr.rel (0) target = $region53
  $region52: #{_lambda_.1} parent=0 // pred_region
    _
  $region53: #{_lambda_.1} parent=0 // pred_fallthru
    _
  // Predicated region
  $region54: #{_lambda_.1} parent=0 // pred_check
    _
  $region55: #{_lambda_.1} parent=0 // pred_check_branch
    %49 = sbr.rel (0) target = $region57
  $region56: #{_lambda_.1} parent=0 // pred_region
    _
  $region57: #{_lambda_.1} parent=0 // pred_fallthru
    _
  // Predicated region
  $region58: #{_lambda_.1} parent=0 // pred_check
    _
  $region59: #{_lambda_.1} parent=0 // pred_check_branch
    %51 = sbr.rel (0) target = $region61
  $region60: #{_lambda_.1} parent=0 // pred_region
    _
  $region61: #{_lambda_.1} parent=0 // pred_fallthru
    _
  %v52 = vld [vmem:[%s0] sm:$0xff]
  %v53 = vld [vmem:[%s0 + $0x8] sm:$0xff]
  %v54 = vld [vmem:[%s0 + $0x10] sm:$0xff]
  %v55 = vld [vmem:[%s0 + $0x18] sm:$0xff]
  %v56 = vld [vmem:[%s0 + $0x20] sm:$0xff]
  %v57 = vld [vmem:[%s0 + $0x28] sm:$0xff]
  %v58 = vld [vmem:[%s0 + $0x30] sm:$0xff]
  %v59 = vld [vmem:[%s0 + $0x38] sm:$0xff]
  %v60 = vld [vmem:[%s1] sm:$0xff]
  %v61 = vld [vmem:[%s1 + $0x8] sm:$0xff]
  %v62 = vld [vmem:[%s1 + $0x10] sm:$0xff]
  %v63 = vld [vmem:[%s1 + $0x18] sm:$0xff]
  %v64 = vld [vmem:[%s3] sm:$0x3]
  %v66 = vlaneseq
  %v67 = vshrl.u32 %v66, 7
  %v68 = vsub.s32 0, %v67
  %v69 = vrot.slane %v64, %v68
  %v70 = vlaneseq
  %v71 = vshrl.u32 %v70, 7
  %v72 = vsub.s32 1, %v71
  %v73 = vrot.slane %v64, %v72
  %vm76 = vcmask 130048
  %v78 = vsel %vm76, %v52, 0
  %v81 = vsel %vm76, %v53, 0
  %v84 = vsel %vm76, %v54, 0
  %v87 = vsel %vm76, %v55, 0
  %v90 = vsel %vm76, %v56, 0
  %v93 = vsel %vm76, %v57, 0
  %v96 = vsel %vm76, %v58, 0
  %v99 = vsel %vm76, %v59, 0
  %101 = vmatprep.subr.mxu0 0.0
  %102 = vmatpush1.msra.mxu0 0.0
  %103 = vmatprep.subr.mxu0 0.0
  %104 = vmatpush1.msra.mxu0 0.0
  %105 = vmatprep.subr.mxu0 0.0
  %106 = vmatpush1.msra.mxu0 0.0
  %107 = vmatprep.subr.mxu0 0.0
  %108 = vmatpush1.msra.mxu0 0.0
  %109 = vmatprep.subr.mxu0 0.0
  %110 = vmatpush1.msra.mxu0 0.0
  %111 = vmatprep.subr.mxu0 0.0
  %112 = vmatpush1.msra.mxu0 0.0
  %113 = vmatprep.subr.mxu0 0.0
  %114 = vmatpush1.msra.mxu0 0.0
  %115 = vmatprep.subr.mxu0 0.0
  %116 = vmatpush1.msra.mxu0 0.0
  %117 = vmatprep.subr.mxu0 0.0
  %118 = vmatpush1.msra.mxu0 0.0
  %119 = vmatprep.subr.mxu0 0.0
  %120 = vmatpush1.msra.mxu0 0.0
  %121 = vmatprep.subr.mxu0 0.0
  %122 = vmatpush1.msra.mxu0 0.0
  %123 = vmatprep.subr.mxu0 0.0
  %124 = vmatpush1.msra.mxu0 0.0
  %125 = vmatprep.subr.mxu0 0.0
  %126 = vmatpush1.msra.mxu0 0.0
  %127 = vmatprep.subr.mxu0 0.0
  %128 = vmatpush1.msra.mxu0 0.0
  %129 = vmatprep.subr.mxu0 %v63
  %130 = vmatpush1.msra.mxu0 %v62
  %131 = vmatprep.subr.mxu0 %v61
  %132 = vmatpush1.msra.mxu0 %v60
  %133 = vmatprep.subr.mxu0 0.0
  %134 = vmatpush2.msra.mxu0 0.0
  %135 = vmatprep.subr.mxu0 0.0
  %136 = vmatpush2.msra.mxu0 0.0
  %137 = vmatprep.subr.mxu0 0.0
  %138 = vmatpush2.msra.mxu0 0.0
  %139 = vmatprep.subr.mxu0 0.0
  %140 = vmatpush2.msra.mxu0 0.0
  %141 = vmatprep.subr.mxu0 0.0
  %142 = vmatpush2.msra.mxu0 0.0
  %143 = vmatprep.subr.mxu0 0.0
  %144 = vmatpush2.msra.mxu0 0.0
  %145 = vmatprep.subr.mxu0 0.0
  %146 = vmatpush2.msra.mxu0 0.0
  %147 = vmatprep.subr.mxu0 0.0
  %148 = vmatpush2.msra.mxu0 0.0
  %149 = vmatprep.subr.mxu0 0.0
  %150 = vmatpush2.msra.mxu0 0.0
  %151 = vmatprep.subr.mxu0 0.0
  %152 = vmatpush2.msra.mxu0 0.0
  %153 = vmatprep.subr.mxu0 0.0
  %154 = vmatpush2.msra.mxu0 0.0
  %155 = vmatprep.subr.mxu0 0.0
  %156 = vmatpush2.msra.mxu0 0.0
  %157 = vmatprep.subr.mxu0 0.0
  %158 = vmatpush2.msra.mxu0 0.0
  %159 = vmatprep.subr.mxu0 0.0
  %160 = vmatpush2.msra.mxu0 0.0
  %161 = vmatprep.subr.mxu0 0.0
  %162 = vmatpush2.msra.mxu0 0.0
  %163 = vmatprep.subr.mxu0 0.0
  %164 = vmatpush2.msra.mxu0 0.0
  %165 = vmatprep.mubr.f32.mxu0 0.0
  %166 = vmatmul.mubr.f32.gmra.mxu0 %v78
  %v167 = vpop.f32.mrf.mxu0
  %v168 = vadd.f32 %v69, %v167
  %v169 = vpop.f32.mrf.mxu0
  %v170 = vadd.f32 %v73, %v169
  %171 = vmatprep.mubr.f32.mxu0 0.0
  %172 = vmatmul.mubr.f32.gmra.mxu0 %v81
  %v173 = vpop.f32.mrf.mxu0
  %v174 = vadd.f32 %v69, %v173
  %v175 = vpop.f32.mrf.mxu0
  %v176 = vadd.f32 %v73, %v175
  %177 = vmatprep.mubr.f32.mxu0 0.0
  %178 = vmatmul.mubr.f32.gmra.mxu0 %v84
  %v179 = vpop.f32.mrf.mxu0
  %v180 = vadd.f32 %v69, %v179
  %v181 = vpop.f32.mrf.mxu0
  %v182 = vadd.f32 %v73, %v181
  %183 = vmatprep.mubr.f32.mxu0 0.0
  %184 = vmatmul.mubr.f32.gmra.mxu0 %v87
  %v185 = vpop.f32.mrf.mxu0
  %v186 = vadd.f32 %v69, %v185
  %v187 = vpop.f32.mrf.mxu0
  %v188 = vadd.f32 %v73, %v187
  %189 = vmatprep.mubr.f32.mxu0 0.0
  %190 = vmatmul.mubr.f32.gmra.mxu0 %v90
  %v191 = vpop.f32.mrf.mxu0
  %v192 = vadd.f32 %v69, %v191
  %v193 = vpop.f32.mrf.mxu0
  %v194 = vadd.f32 %v73, %v193
  %195 = vmatprep.mubr.f32.mxu0 0.0
  %196 = vmatmul.mubr.f32.gmra.mxu0 %v93
  %v197 = vpop.f32.mrf.mxu0
  %v198 = vadd.f32 %v69, %v197
  %v199 = vpop.f32.mrf.mxu0
  %v200 = vadd.f32 %v73, %v199
  %201 = vmatprep.mubr.f32.mxu0 0.0
  %202 = vmatmul.mubr.f32.gmra.mxu0 %v96
  %v203 = vpop.f32.mrf.mxu0
  %v204 = vadd.f32 %v69, %v203
  %v205 = vpop.f32.mrf.mxu0
  %v206 = vadd.f32 %v73, %v205
  %207 = vmatprep.mubr.f32.mxu0 0.0
  %208 = vmatmul.mubr.f32.gmra.mxu0 %v99
  %v209 = vpop.f32.mrf.mxu0
  %v210 = vadd.f32 %v69, %v209
  %v211 = vpop.f32.mrf.mxu0
  %v212 = vadd.f32 %v73, %v211
  %213 = vdwg.mxu0
  %v214 = vld [vmem:[%s2] sm:$0xff]
  %v215 = vld [vmem:[%s2 + $0x8] sm:$0xff]
  %v216 = vld [vmem:[%s2 + $0x10] sm:$0xff]
  %v217 = vld [vmem:[%s2 + $0x18] sm:$0xff]
  %v218 = vld [vmem:[%s2 + $0x20] sm:$0xff]
  %v219 = vld [vmem:[%s2 + $0x28] sm:$0xff]
  %v220 = vld [vmem:[%s2 + $0x30] sm:$0xff]
  %v221 = vld [vmem:[%s2 + $0x38] sm:$0xff]
  %v222 = vld [vmem:[%s2 + $0x40] sm:$0xff]
  %v223 = vld [vmem:[%s2 + $0x48] sm:$0xff]
  %v224 = vld [vmem:[%s2 + $0x50] sm:$0xff]
  %v225 = vld [vmem:[%s2 + $0x58] sm:$0xff]
  %v226 = vld [vmem:[%s2 + $0x60] sm:$0xff]
  %v227 = vld [vmem:[%s2 + $0x68] sm:$0xff]
  %v228 = vld [vmem:[%s2 + $0x70] sm:$0xff]
  %v229 = vld [vmem:[%s2 + $0x78] sm:$0xff]
  %vm230 = vcmask 523264
  %v232 = vsel %vm230, 0.0, 0
  %234 = vmatprep.subr.mxu0 0.0
  %235 = vmatpush1.msra.mxu0 0.0
  %236 = vmatprep.subr.mxu0 0.0
  %237 = vmatpush1.msra.mxu0 0.0
  %238 = vmatprep.subr.mxu0 0.0
  %239 = vmatpush1.msra.mxu0 0.0
  %240 = vmatprep.subr.mxu0 0.0
  %241 = vmatpush1.msra.mxu0 0.0
  %242 = vmatprep.subr.mxu0 0.0
  %243 = vmatpush1.msra.mxu0 0.0
  %244 = vmatprep.subr.mxu0 0.0
  %245 = vmatpush1.msra.mxu0 0.0
  %246 = vmatprep.subr.mxu0 0.0
  %247 = vmatpush1.msra.mxu0 0.0
  %248 = vmatprep.subr.mxu0 0.0
  %249 = vmatpush1.msra.mxu0 0.0
  %250 = vmatprep.subr.mxu0 %v229
  %251 = vmatpush1.msra.mxu0 %v228
  %252 = vmatprep.subr.mxu0 %v227
  %253 = vmatpush1.msra.mxu0 %v226
  %254 = vmatprep.subr.mxu0 %v225
  %255 = vmatpush1.msra.mxu0 %v224
  %256 = vmatprep.subr.mxu0 %v223
  %257 = vmatpush1.msra.mxu0 %v222
  %258 = vmatprep.subr.mxu0 %v221
  %259 = vmatpush1.msra.mxu0 %v220
  %260 = vmatprep.subr.mxu0 %v219
  %261 = vmatpush1.msra.mxu0 %v218
  %262 = vmatprep.subr.mxu0 %v217
  %263 = vmatpush1.msra.mxu0 %v216
  %264 = vmatprep.subr.mxu0 %v215
  %265 = vmatpush1.msra.mxu0 %v214
  %266 = vmatprep.subr.mxu0 0.0
  %267 = vmatpush2.msra.mxu0 0.0
  %268 = vmatprep.subr.mxu0 0.0
  %269 = vmatpush2.msra.mxu0 0.0
  %270 = vmatprep.subr.mxu0 0.0
  %271 = vmatpush2.msra.mxu0 0.0
  %272 = vmatprep.subr.mxu0 0.0
  %273 = vmatpush2.msra.mxu0 0.0
  %274 = vmatprep.subr.mxu0 0.0
  %275 = vmatpush2.msra.mxu0 0.0
  %276 = vmatprep.subr.mxu0 0.0
  %277 = vmatpush2.msra.mxu0 0.0
  %278 = vmatprep.subr.mxu0 0.0
  %279 = vmatpush2.msra.mxu0 0.0
  %280 = vmatprep.subr.mxu0 0.0
  %281 = vmatpush2.msra.mxu0 0.0
  %282 = vmatprep.subr.mxu0 0.0
  %283 = vmatpush2.msra.mxu0 0.0
  %284 = vmatprep.subr.mxu0 0.0
  %285 = vmatpush2.msra.mxu0 0.0
  %286 = vmatprep.subr.mxu0 0.0
  %287 = vmatpush2.msra.mxu0 0.0
  %288 = vmatprep.subr.mxu0 0.0
  %289 = vmatpush2.msra.mxu0 0.0
  %290 = vmatprep.subr.mxu0 0.0
  %291 = vmatpush2.msra.mxu0 0.0
  %292 = vmatprep.subr.mxu0 0.0
  %293 = vmatpush2.msra.mxu0 0.0
  %294 = vmatprep.subr.mxu0 0.0
  %295 = vmatpush2.msra.mxu0 0.0
  %296 = vmatprep.subr.mxu0 0.0
  %297 = vmatpush2.msra.mxu0 0.0
  %298 = vmatprep.mubr.f32.mxu0 0.0
  %299 = vmatmul.mubr.f32.gmra.mxu0 %v232
  %v300 = vpop.f32.mrf.mxu0
  %v301 = vadd.f32 0.0, %v300
  %v302 = vpop.f32.mrf.mxu0
  %v303 = vadd.f32 0.0, %v302
  %304 = vdwg.mxu0
  %v305 = vadd.f32 %v168, %v301
  %v306 = vadd.f32 %v170, %v303
  %v307 = vxor.u32 %v305, 2147483648
  %v308 = vxor.u32 %v306, 2147483648
  %v309 = vmul.f32 %v307, 1.442695
  %v310 = vpow.pop %v309
  %v311 = vmul.f32 %v308, 1.442695
  %v312 = vpow.pop %v311
  %v313 = vadd.f32 %v310, 1.0
  %v314 = vadd.f32 %v312, 1.0
  %v315 = vrcp.pop %v313
  %v316 = vmul.f32 1.0, %v315
  %v317 = vrcp.pop %v314
  %v318 = vmul.f32 1.0, %v317
  %v319 = vtanh.pop %v306
  %v320 = vmul.f32 %v316, 0.0
  %v321 = vmul.f32 %v316, %v319
  %323 = vrot.lane.b32.xlu0 %v321, 64
  %v324 = vpop.permute.xlu0 %323
  %v326 = vadd.f32 %v320, %v324
  %v327 = vtanh.pop %v326
  %v328 = vmul.f32 %v318, %v327
  %330 = vrot.lane.b32.xlu0 %v328, 64
  %v331 = vpop.permute.xlu0 %330
  %vm333 = vcmask 261120
  %334 = vst.msk [vmem:[#allocation2] sm:$0xff] %vm333, %v331
  %vm335 = vcmask 523520
  %336 = vst.msk [vmem:[#allocation2 + $0x38] sm:$0xff] %vm335, %v331
  %v337 = vsel %vm230, %v331, 0
  %339 = vmatprep.subr.mxu0 0.0
  %340 = vmatpush1.msra.mxu0 0.0
  %341 = vmatprep.subr.mxu0 0.0
  %342 = vmatpush1.msra.mxu0 0.0
  %343 = vmatprep.subr.mxu0 0.0
  %344 = vmatpush1.msra.mxu0 0.0
  %345 = vmatprep.subr.mxu0 0.0
  %346 = vmatpush1.msra.mxu0 0.0
  %347 = vmatprep.subr.mxu0 0.0
  %348 = vmatpush1.msra.mxu0 0.0
  %349 = vmatprep.subr.mxu0 0.0
  %350 = vmatpush1.msra.mxu0 0.0
  %351 = vmatprep.subr.mxu0 0.0
  %352 = vmatpush1.msra.mxu0 0.0
  %353 = vmatprep.subr.mxu0 0.0
  %354 = vmatpush1.msra.mxu0 0.0
  %355 = vmatprep.subr.mxu0 %v229
  %356 = vmatpush1.msra.mxu0 %v228
  %357 = vmatprep.subr.mxu0 %v227
  %358 = vmatpush1.msra.mxu0 %v226
  %359 = vmatprep.subr.mxu0 %v225
  %360 = vmatpush1.msra.mxu0 %v224
  %361 = vmatprep.subr.mxu0 %v223
  %362 = vmatpush1.msra.mxu0 %v222
  %363 = vmatprep.subr.mxu0 %v221
  %364 = vmatpush1.msra.mxu0 %v220
  %365 = vmatprep.subr.mxu0 %v219
  %366 = vmatpush1.msra.mxu0 %v218
  %367 = vmatprep.subr.mxu0 %v217
  %368 = vmatpush1.msra.mxu0 %v216
  %369 = vmatprep.subr.mxu0 %v215
  %370 = vmatpush1.msra.mxu0 %v214
  %371 = vmatprep.subr.mxu0 0.0
  %372 = vmatpush2.msra.mxu0 0.0
  %373 = vmatprep.subr.mxu0 0.0
  %374 = vmatpush2.msra.mxu0 0.0
  %375 = vmatprep.subr.mxu0 0.0
  %376 = vmatpush2.msra.mxu0 0.0
  %377 = vmatprep.subr.mxu0 0.0
  %378 = vmatpush2.msra.mxu0 0.0
  %379 = vmatprep.subr.mxu0 0.0
  %380 = vmatpush2.msra.mxu0 0.0
  %381 = vmatprep.subr.mxu0 0.0
  %382 = vmatpush2.msra.mxu0 0.0
  %383 = vmatprep.subr.mxu0 0.0
  %384 = vmatpush2.msra.mxu0 0.0
  %385 = vmatprep.subr.mxu0 0.0
  %386 = vmatpush2.msra.mxu0 0.0
  %387 = vmatprep.subr.mxu0 0.0
  %388 = vmatpush2.msra.mxu0 0.0
  %389 = vmatprep.subr.mxu0 0.0
  %390 = vmatpush2.msra.mxu0 0.0
  %391 = vmatprep.subr.mxu0 0.0
  %392 = vmatpush2.msra.mxu0 0.0
  %393 = vmatprep.subr.mxu0 0.0
  %394 = vmatpush2.msra.mxu0 0.0
  %395 = vmatprep.subr.mxu0 0.0
  %396 = vmatpush2.msra.mxu0 0.0
  %397 = vmatprep.subr.mxu0 0.0
  %398 = vmatpush2.msra.mxu0 0.0
  %399 = vmatprep.subr.mxu0 0.0
  %400 = vmatpush2.msra.mxu0 0.0
  %401 = vmatprep.subr.mxu0 0.0
  %402 = vmatpush2.msra.mxu0 0.0
  %403 = vmatprep.mubr.f32.mxu0 0.0
  %404 = vmatmul.mubr.f32.gmra.mxu0 %v337
  %v405 = vpop.f32.mrf.mxu0
  %v406 = vadd.f32 0.0, %v405
  %v407 = vpop.f32.mrf.mxu0
  %v408 = vadd.f32 0.0, %v407
  %409 = vdwg.mxu0
  %v410 = vadd.f32 %v174, %v406
  %v411 = vadd.f32 %v176, %v408
  %v412 = vxor.u32 %v410, 2147483648
  %v413 = vxor.u32 %v411, 2147483648
  %v414 = vmul.f32 %v412, 1.442695
  %v415 = vpow.pop %v414
  %v416 = vmul.f32 %v413, 1.442695
  %v417 = vpow.pop %v416
  %v418 = vadd.f32 %v415, 1.0
  %v419 = vadd.f32 %v417, 1.0
  %v420 = vrcp.pop %v418
  %v421 = vmul.f32 1.0, %v420
  %v422 = vrcp.pop %v419
  %v423 = vmul.f32 1.0, %v422
  %v424 = vtanh.pop %v411
  %v425 = vmul.f32 %v421, %v326
  %v426 = vmul.f32 %v421, %v424
  %428 = vrot.lane.b32.xlu0 %v426, 64
  %v429 = vpop.permute.xlu0 %428
  %v431 = vadd.f32 %v425, %v429
  %v432 = vtanh.pop %v431
  %v433 = vmul.f32 %v423, %v432
  %435 = vrot.lane.b32.xlu0 %v433, 64
  %v436 = vpop.permute.xlu0 %435
  %438 = vst.msk [vmem:[#allocation2 + $0x8] sm:$0xff] %vm333, %v436
  %439 = vst.msk [vmem:[#allocation2 + $0x30] sm:$0xff] %vm335, %v436
  %v440 = vsel %vm230, %v436, 0
  %442 = vmatprep.subr.mxu0 0.0
  %443 = vmatpush1.msra.mxu0 0.0
  %444 = vmatprep.subr.mxu0 0.0
  %445 = vmatpush1.msra.mxu0 0.0
  %446 = vmatprep.subr.mxu0 0.0
  %447 = vmatpush1.msra.mxu0 0.0
  %448 = vmatprep.subr.mxu0 0.0
  %449 = vmatpush1.msra.mxu0 0.0
  %450 = vmatprep.subr.mxu0 0.0
  %451 = vmatpush1.msra.mxu0 0.0
  %452 = vmatprep.subr.mxu0 0.0
  %453 = vmatpush1.msra.mxu0 0.0
  %454 = vmatprep.subr.mxu0 0.0
  %455 = vmatpush1.msra.mxu0 0.0
  %456 = vmatprep.subr.mxu0 0.0
  %457 = vmatpush1.msra.mxu0 0.0
  %458 = vmatprep.subr.mxu0 %v229
  %459 = vmatpush1.msra.mxu0 %v228
  %460 = vmatprep.subr.mxu0 %v227
  %461 = vmatpush1.msra.mxu0 %v226
  %462 = vmatprep.subr.mxu0 %v225
  %463 = vmatpush1.msra.mxu0 %v224
  %464 = vmatprep.subr.mxu0 %v223
  %465 = vmatpush1.msra.mxu0 %v222
  %466 = vmatprep.subr.mxu0 %v221
  %467 = vmatpush1.msra.mxu0 %v220
  %468 = vmatprep.subr.mxu0 %v219
  %469 = vmatpush1.msra.mxu0 %v218
  %470 = vmatprep.subr.mxu0 %v217
  %471 = vmatpush1.msra.mxu0 %v216
  %472 = vmatprep.subr.mxu0 %v215
  %473 = vmatpush1.msra.mxu0 %v214
  %474 = vmatprep.subr.mxu0 0.0
  %475 = vmatpush2.msra.mxu0 0.0
  %476 = vmatprep.subr.mxu0 0.0
  %477 = vmatpush2.msra.mxu0 0.0
  %478 = vmatprep.subr.mxu0 0.0
  %479 = vmatpush2.msra.mxu0 0.0
  %480 = vmatprep.subr.mxu0 0.0
  %481 = vmatpush2.msra.mxu0 0.0
  %482 = vmatprep.subr.mxu0 0.0
  %483 = vmatpush2.msra.mxu0 0.0
  %484 = vmatprep.subr.mxu0 0.0
  %485 = vmatpush2.msra.mxu0 0.0
  %486 = vmatprep.subr.mxu0 0.0
  %487 = vmatpush2.msra.mxu0 0.0
  %488 = vmatprep.subr.mxu0 0.0
  %489 = vmatpush2.msra.mxu0 0.0
  %490 = vmatprep.subr.mxu0 0.0
  %491 = vmatpush2.msra.mxu0 0.0
  %492 = vmatprep.subr.mxu0 0.0
  %493 = vmatpush2.msra.mxu0 0.0
  %494 = vmatprep.subr.mxu0 0.0
  %495 = vmatpush2.msra.mxu0 0.0
  %496 = vmatprep.subr.mxu0 0.0
  %497 = vmatpush2.msra.mxu0 0.0
  %498 = vmatprep.subr.mxu0 0.0
  %499 = vmatpush2.msra.mxu0 0.0
  %500 = vmatprep.subr.mxu0 0.0
  %501 = vmatpush2.msra.mxu0 0.0
  %502 = vmatprep.subr.mxu0 0.0
  %503 = vmatpush2.msra.mxu0 0.0
  %504 = vmatprep.subr.mxu0 0.0
  %505 = vmatpush2.msra.mxu0 0.0
  %506 = vmatprep.mubr.f32.mxu0 0.0
  %507 = vmatmul.mubr.f32.gmra.mxu0 %v440
  %v508 = vpop.f32.mrf.mxu0
  %v509 = vadd.f32 0.0, %v508
  %v510 = vpop.f32.mrf.mxu0
  %v511 = vadd.f32 0.0, %v510
  %512 = vdwg.mxu0
  %v513 = vadd.f32 %v180, %v509
  %v514 = vadd.f32 %v182, %v511
  %v515 = vxor.u32 %v513, 2147483648
  %v516 = vxor.u32 %v514, 2147483648
  %v517 = vmul.f32 %v515, 1.442695
  %v518 = vpow.pop %v517
  %v519 = vmul.f32 %v516, 1.442695
  %v520 = vpow.pop %v519
  %v521 = vadd.f32 %v518, 1.0
  %v522 = vadd.f32 %v520, 1.0
  %v523 = vrcp.pop %v521
  %v524 = vmul.f32 1.0, %v523
  %v525 = vrcp.pop %v522
  %v526 = vmul.f32 1.0, %v525
  %v527 = vtanh.pop %v514
  %v528 = vmul.f32 %v524, %v431
  %v529 = vmul.f32 %v524, %v527
  %531 = vrot.lane.b32.xlu0 %v529, 64
  %v532 = vpop.permute.xlu0 %531
  %v534 = vadd.f32 %v528, %v532
  %v535 = vtanh.pop %v534
  %v536 = vmul.f32 %v526, %v535
  %538 = vrot.lane.b32.xlu0 %v536, 64
  %v539 = vpop.permute.xlu0 %538
  %541 = vst.msk [vmem:[#allocation2 + $0x10] sm:$0xff] %vm333, %v539
  %542 = vst.msk [vmem:[#allocation2 + $0x28] sm:$0xff] %vm335, %v539
  %v543 = vsel %vm230, %v539, 0
  %545 = vmatprep.subr.mxu0 0.0
  %546 = vmatpush1.msra.mxu0 0.0
  %547 = vmatprep.subr.mxu0 0.0
  %548 = vmatpush1.msra.mxu0 0.0
  %549 = vmatprep.subr.mxu0 0.0
  %550 = vmatpush1.msra.mxu0 0.0
  %551 = vmatprep.subr.mxu0 0.0
  %552 = vmatpush1.msra.mxu0 0.0
  %553 = vmatprep.subr.mxu0 0.0
  %554 = vmatpush1.msra.mxu0 0.0
  %555 = vmatprep.subr.mxu0 0.0
  %556 = vmatpush1.msra.mxu0 0.0
  %557 = vmatprep.subr.mxu0 0.0
  %558 = vmatpush1.msra.mxu0 0.0
  %559 = vmatprep.subr.mxu0 0.0
  %560 = vmatpush1.msra.mxu0 0.0
  %561 = vmatprep.subr.mxu0 %v229
  %562 = vmatpush1.msra.mxu0 %v228
  %563 = vmatprep.subr.mxu0 %v227
  %564 = vmatpush1.msra.mxu0 %v226
  %565 = vmatprep.subr.mxu0 %v225
  %566 = vmatpush1.msra.mxu0 %v224
  %567 = vmatprep.subr.mxu0 %v223
  %568 = vmatpush1.msra.mxu0 %v222
  %569 = vmatprep.subr.mxu0 %v221
  %570 = vmatpush1.msra.mxu0 %v220
  %571 = vmatprep.subr.mxu0 %v219
  %572 = vmatpush1.msra.mxu0 %v218
  %573 = vmatprep.subr.mxu0 %v217
  %574 = vmatpush1.msra.mxu0 %v216
  %575 = vmatprep.subr.mxu0 %v215
  %576 = vmatpush1.msra.mxu0 %v214
  %577 = vmatprep.subr.mxu0 0.0
  %578 = vmatpush2.msra.mxu0 0.0
  %579 = vmatprep.subr.mxu0 0.0
  %580 = vmatpush2.msra.mxu0 0.0
  %581 = vmatprep.subr.mxu0 0.0
  %582 = vmatpush2.msra.mxu0 0.0
  %583 = vmatprep.subr.mxu0 0.0
  %584 = vmatpush2.msra.mxu0 0.0
  %585 = vmatprep.subr.mxu0 0.0
  %586 = vmatpush2.msra.mxu0 0.0
  %587 = vmatprep.subr.mxu0 0.0
  %588 = vmatpush2.msra.mxu0 0.0
  %589 = vmatprep.subr.mxu0 0.0
  %590 = vmatpush2.msra.mxu0 0.0
  %591 = vmatprep.subr.mxu0 0.0
  %592 = vmatpush2.msra.mxu0 0.0
  %593 = vmatprep.subr.mxu0 0.0
  %594 = vmatpush2.msra.mxu0 0.0
  %595 = vmatprep.subr.mxu0 0.0
  %596 = vmatpush2.msra.mxu0 0.0
  %597 = vmatprep.subr.mxu0 0.0
  %598 = vmatpush2.msra.mxu0 0.0
  %599 = vmatprep.subr.mxu0 0.0
  %600 = vmatpush2.msra.mxu0 0.0
  %601 = vmatprep.subr.mxu0 0.0
  %602 = vmatpush2.msra.mxu0 0.0
  %603 = vmatprep.subr.mxu0 0.0
  %604 = vmatpush2.msra.mxu0 0.0
  %605 = vmatprep.subr.mxu0 0.0
  %606 = vmatpush2.msra.mxu0 0.0
  %607 = vmatprep.subr.mxu0 0.0
  %608 = vmatpush2.msra.mxu0 0.0
  %609 = vmatprep.mubr.f32.mxu0 0.0
  %610 = vmatmul.mubr.f32.gmra.mxu0 %v543
  %v611 = vpop.f32.mrf.mxu0
  %v612 = vadd.f32 0.0, %v611
  %v613 = vpop.f32.mrf.mxu0
  %v614 = vadd.f32 0.0, %v613
  %615 = vdwg.mxu0
  %v616 = vadd.f32 %v186, %v612
  %v617 = vadd.f32 %v188, %v614
  %v618 = vxor.u32 %v616, 2147483648
  %v619 = vxor.u32 %v617, 2147483648
  %v620 = vmul.f32 %v618, 1.442695
  %v621 = vpow.pop %v620
  %v622 = vmul.f32 %v619, 1.442695
  %v623 = vpow.pop %v622
  %v624 = vadd.f32 %v621, 1.0
  %v625 = vadd.f32 %v623, 1.0
  %v626 = vrcp.pop %v624
  %v627 = vmul.f32 1.0, %v626
  %v628 = vrcp.pop %v625
  %v629 = vmul.f32 1.0, %v628
  %v630 = vtanh.pop %v617
  %v631 = vmul.f32 %v627, %v534
  %v632 = vmul.f32 %v627, %v630
  %634 = vrot.lane.b32.xlu0 %v632, 64
  %v635 = vpop.permute.xlu0 %634
  %v637 = vadd.f32 %v631, %v635
  %v638 = vtanh.pop %v637
  %v639 = vmul.f32 %v629, %v638
  %641 = vrot.lane.b32.xlu0 %v639, 64
  %v642 = vpop.permute.xlu0 %641
  %644 = vst.msk [vmem:[#allocation2 + $0x18] sm:$0xff] %vm333, %v642
  %645 = vst.msk [vmem:[#allocation2 + $0x20] sm:$0xff] %vm335, %v642
  %v646 = vsel %vm230, %v642, 0
  %648 = vmatprep.subr.mxu0 0.0
  %649 = vmatpush1.msra.mxu0 0.0
  %650 = vmatprep.subr.mxu0 0.0
  %651 = vmatpush1.msra.mxu0 0.0
  %652 = vmatprep.subr.mxu0 0.0
  %653 = vmatpush1.msra.mxu0 0.0
  %654 = vmatprep.subr.mxu0 0.0
  %655 = vmatpush1.msra.mxu0 0.0
  %656 = vmatprep.subr.mxu0 0.0
  %657 = vmatpush1.msra.mxu0 0.0
  %658 = vmatprep.subr.mxu0 0.0
  %659 = vmatpush1.msra.mxu0 0.0
  %660 = vmatprep.subr.mxu0 0.0
  %661 = vmatpush1.msra.mxu0 0.0
  %662 = vmatprep.subr.mxu0 0.0
  %663 = vmatpush1.msra.mxu0 0.0
  %664 = vmatprep.subr.mxu0 %v229
  %665 = vmatpush1.msra.mxu0 %v228
  %666 = vmatprep.subr.mxu0 %v227
  %667 = vmatpush1.msra.mxu0 %v226
  %668 = vmatprep.subr.mxu0 %v225
  %669 = vmatpush1.msra.mxu0 %v224
  %670 = vmatprep.subr.mxu0 %v223
  %671 = vmatpush1.msra.mxu0 %v222
  %672 = vmatprep.subr.mxu0 %v221
  %673 = vmatpush1.msra.mxu0 %v220
  %674 = vmatprep.subr.mxu0 %v219
  %675 = vmatpush1.msra.mxu0 %v218
  %676 = vmatprep.subr.mxu0 %v217
  %677 = vmatpush1.msra.mxu0 %v216
  %678 = vmatprep.subr.mxu0 %v215
  %679 = vmatpush1.msra.mxu0 %v214
  %680 = vmatprep.subr.mxu0 0.0
  %681 = vmatpush2.msra.mxu0 0.0
  %682 = vmatprep.subr.mxu0 0.0
  %683 = vmatpush2.msra.mxu0 0.0
  %684 = vmatprep.subr.mxu0 0.0
  %685 = vmatpush2.msra.mxu0 0.0
  %686 = vmatprep.subr.mxu0 0.0
  %687 = vmatpush2.msra.mxu0 0.0
  %688 = vmatprep.subr.mxu0 0.0
  %689 = vmatpush2.msra.mxu0 0.0
  %690 = vmatprep.subr.mxu0 0.0
  %691 = vmatpush2.msra.mxu0 0.0
  %692 = vmatprep.subr.mxu0 0.0
  %693 = vmatpush2.msra.mxu0 0.0
  %694 = vmatprep.subr.mxu0 0.0
  %695 = vmatpush2.msra.mxu0 0.0
  %696 = vmatprep.subr.mxu0 0.0
  %697 = vmatpush2.msra.mxu0 0.0
  %698 = vmatprep.subr.mxu0 0.0
  %699 = vmatpush2.msra.mxu0 0.0
  %700 = vmatprep.subr.mxu0 0.0
  %701 = vmatpush2.msra.mxu0 0.0
  %702 = vmatprep.subr.mxu0 0.0
  %703 = vmatpush2.msra.mxu0 0.0
  %704 = vmatprep.subr.mxu0 0.0
  %705 = vmatpush2.msra.mxu0 0.0
  %706 = vmatprep.subr.mxu0 0.0
  %707 = vmatpush2.msra.mxu0 0.0
  %708 = vmatprep.subr.mxu0 0.0
  %709 = vmatpush2.msra.mxu0 0.0
  %710 = vmatprep.subr.mxu0 0.0
  %711 = vmatpush2.msra.mxu0 0.0
  %712 = vmatprep.mubr.f32.mxu0 0.0
  %713 = vmatmul.mubr.f32.gmra.mxu0 %v646
  %v714 = vpop.f32.mrf.mxu0
  %v715 = vadd.f32 0.0, %v714
  %v716 = vpop.f32.mrf.mxu0
  %v717 = vadd.f32 0.0, %v716
  %718 = vdwg.mxu0
  %v719 = vadd.f32 %v192, %v715
  %v720 = vadd.f32 %v194, %v717
  %v721 = vxor.u32 %v719, 2147483648
  %v722 = vxor.u32 %v720, 2147483648
  %v723 = vmul.f32 %v721, 1.442695
  %v724 = vpow.pop %v723
  %v725 = vmul.f32 %v722, 1.442695
  %v726 = vpow.pop %v725
  %v727 = vadd.f32 %v724, 1.0
  %v728 = vadd.f32 %v726, 1.0
  %v729 = vrcp.pop %v727
  %v730 = vmul.f32 1.0, %v729
  %v731 = vrcp.pop %v728
  %v732 = vmul.f32 1.0, %v731
  %v733 = vtanh.pop %v720
  %v734 = vmul.f32 %v730, %v637
  %v735 = vmul.f32 %v730, %v733
  %737 = vrot.lane.b32.xlu0 %v735, 64
  %v738 = vpop.permute.xlu0 %737
  %v740 = vadd.f32 %v734, %v738
  %v741 = vtanh.pop %v740
  %v742 = vmul.f32 %v732, %v741
  %744 = vrot.lane.b32.xlu0 %v742, 64
  %v745 = vpop.permute.xlu0 %744
  %747 = vst.msk [vmem:[#allocation2 + $0x20] sm:$0xff] %vm333, %v745
  %748 = vst.msk [vmem:[#allocation2 + $0x18] sm:$0xff] %vm335, %v745
  %v749 = vsel %vm230, %v745, 0
  %751 = vmatprep.subr.mxu0 0.0
  %752 = vmatpush1.msra.mxu0 0.0
  %753 = vmatprep.subr.mxu0 0.0
  %754 = vmatpush1.msra.mxu0 0.0
  %755 = vmatprep.subr.mxu0 0.0
  %756 = vmatpush1.msra.mxu0 0.0
  %757 = vmatprep.subr.mxu0 0.0
  %758 = vmatpush1.msra.mxu0 0.0
  %759 = vmatprep.subr.mxu0 0.0
  %760 = vmatpush1.msra.mxu0 0.0
  %761 = vmatprep.subr.mxu0 0.0
  %762 = vmatpush1.msra.mxu0 0.0
  %763 = vmatprep.subr.mxu0 0.0
  %764 = vmatpush1.msra.mxu0 0.0
  %765 = vmatprep.subr.mxu0 0.0
  %766 = vmatpush1.msra.mxu0 0.0
  %767 = vmatprep.subr.mxu0 %v229
  %768 = vmatpush1.msra.mxu0 %v228
  %769 = vmatprep.subr.mxu0 %v227
  %770 = vmatpush1.msra.mxu0 %v226
  %771 = vmatprep.subr.mxu0 %v225
  %772 = vmatpush1.msra.mxu0 %v224
  %773 = vmatprep.subr.mxu0 %v223
  %774 = vmatpush1.msra.mxu0 %v222
  %775 = vmatprep.subr.mxu0 %v221
  %776 = vmatpush1.msra.mxu0 %v220
  %777 = vmatprep.subr.mxu0 %v219
  %778 = vmatpush1.msra.mxu0 %v218
  %779 = vmatprep.subr.mxu0 %v217
  %780 = vmatpush1.msra.mxu0 %v216
  %781 = vmatprep.subr.mxu0 %v215
  %782 = vmatpush1.msra.mxu0 %v214
  %783 = vmatprep.subr.mxu0 0.0
  %784 = vmatpush2.msra.mxu0 0.0
  %785 = vmatprep.subr.mxu0 0.0
  %786 = vmatpush2.msra.mxu0 0.0
  %787 = vmatprep.subr.mxu0 0.0
  %788 = vmatpush2.msra.mxu0 0.0
  %789 = vmatprep.subr.mxu0 0.0
  %790 = vmatpush2.msra.mxu0 0.0
  %791 = vmatprep.subr.mxu0 0.0
  %792 = vmatpush2.msra.mxu0 0.0
  %793 = vmatprep.subr.mxu0 0.0
  %794 = vmatpush2.msra.mxu0 0.0
  %795 = vmatprep.subr.mxu0 0.0
  %796 = vmatpush2.msra.mxu0 0.0
  %797 = vmatprep.subr.mxu0 0.0
  %798 = vmatpush2.msra.mxu0 0.0
  %799 = vmatprep.subr.mxu0 0.0
  %800 = vmatpush2.msra.mxu0 0.0
  %801 = vmatprep.subr.mxu0 0.0
  %802 = vmatpush2.msra.mxu0 0.0
  %803 = vmatprep.subr.mxu0 0.0
  %804 = vmatpush2.msra.mxu0 0.0
  %805 = vmatprep.subr.mxu0 0.0
  %806 = vmatpush2.msra.mxu0 0.0
  %807 = vmatprep.subr.mxu0 0.0
  %808 = vmatpush2.msra.mxu0 0.0
  %809 = vmatprep.subr.mxu0 0.0
  %810 = vmatpush2.msra.mxu0 0.0
  %811 = vmatprep.subr.mxu0 0.0
  %812 = vmatpush2.msra.mxu0 0.0
  %813 = vmatprep.subr.mxu0 0.0
  %814 = vmatpush2.msra.mxu0 0.0
  %815 = vmatprep.mubr.f32.mxu0 0.0
  %816 = vmatmul.mubr.f32.gmra.mxu0 %v749
  %v817 = vpop.f32.mrf.mxu0
  %v818 = vadd.f32 0.0, %v817
  %v819 = vpop.f32.mrf.mxu0
  %v820 = vadd.f32 0.0, %v819
  %821 = vdwg.mxu0
  %v822 = vadd.f32 %v198, %v818
  %v823 = vadd.f32 %v200, %v820
  %v824 = vxor.u32 %v822, 2147483648
  %v825 = vxor.u32 %v823, 2147483648
  %v826 = vmul.f32 %v824, 1.442695
  %v827 = vpow.pop %v826
  %v828 = vmul.f32 %v825, 1.442695
  %v829 = vpow.pop %v828
  %v830 = vadd.f32 %v827, 1.0
  %v831 = vadd.f32 %v829, 1.0
  %v832 = vrcp.pop %v830
  %v833 = vmul.f32 1.0, %v832
  %v834 = vrcp.pop %v831
  %v835 = vmul.f32 1.0, %v834
  %v836 = vtanh.pop %v823
  %v837 = vmul.f32 %v833, %v740
  %v838 = vmul.f32 %v833, %v836
  %840 = vrot.lane.b32.xlu0 %v838, 64
  %v841 = vpop.permute.xlu0 %840
  %v843 = vadd.f32 %v837, %v841
  %v844 = vtanh.pop %v843
  %v845 = vmul.f32 %v835, %v844
  %847 = vrot.lane.b32.xlu0 %v845, 64
  %v848 = vpop.permute.xlu0 %847
  %850 = vst.msk [vmem:[#allocation2 + $0x28] sm:$0xff] %vm333, %v848
  %851 = vst.msk [vmem:[#allocation2 + $0x10] sm:$0xff] %vm335, %v848
  %v852 = vsel %vm230, %v848, 0
  %854 = vmatprep.subr.mxu0 0.0
  %855 = vmatpush1.msra.mxu0 0.0
  %856 = vmatprep.subr.mxu0 0.0
  %857 = vmatpush1.msra.mxu0 0.0
  %858 = vmatprep.subr.mxu0 0.0
  %859 = vmatpush1.msra.mxu0 0.0
  %860 = vmatprep.subr.mxu0 0.0
  %861 = vmatpush1.msra.mxu0 0.0
  %862 = vmatprep.subr.mxu0 0.0
  %863 = vmatpush1.msra.mxu0 0.0
  %864 = vmatprep.subr.mxu0 0.0
  %865 = vmatpush1.msra.mxu0 0.0
  %866 = vmatprep.subr.mxu0 0.0
  %867 = vmatpush1.msra.mxu0 0.0
  %868 = vmatprep.subr.mxu0 0.0
  %869 = vmatpush1.msra.mxu0 0.0
  %870 = vmatprep.subr.mxu0 %v229
  %871 = vmatpush1.msra.mxu0 %v228
  %872 = vmatprep.subr.mxu0 %v227
  %873 = vmatpush1.msra.mxu0 %v226
  %874 = vmatprep.subr.mxu0 %v225
  %875 = vmatpush1.msra.mxu0 %v224
  %876 = vmatprep.subr.mxu0 %v223
  %877 = vmatpush1.msra.mxu0 %v222
  %878 = vmatprep.subr.mxu0 %v221
  %879 = vmatpush1.msra.mxu0 %v220
  %880 = vmatprep.subr.mxu0 %v219
  %881 = vmatpush1.msra.mxu0 %v218
  %882 = vmatprep.subr.mxu0 %v217
  %883 = vmatpush1.msra.mxu0 %v216
  %884 = vmatprep.subr.mxu0 %v215
  %885 = vmatpush1.msra.mxu0 %v214
  %886 = vmatprep.subr.mxu0 0.0
  %887 = vmatpush2.msra.mxu0 0.0
  %888 = vmatprep.subr.mxu0 0.0
  %889 = vmatpush2.msra.mxu0 0.0
  %890 = vmatprep.subr.mxu0 0.0
  %891 = vmatpush2.msra.mxu0 0.0
  %892 = vmatprep.subr.mxu0 0.0
  %893 = vmatpush2.msra.mxu0 0.0
  %894 = vmatprep.subr.mxu0 0.0
  %895 = vmatpush2.msra.mxu0 0.0
  %896 = vmatprep.subr.mxu0 0.0
  %897 = vmatpush2.msra.mxu0 0.0
  %898 = vmatprep.subr.mxu0 0.0
  %899 = vmatpush2.msra.mxu0 0.0
  %900 = vmatprep.subr.mxu0 0.0
  %901 = vmatpush2.msra.mxu0 0.0
  %902 = vmatprep.subr.mxu0 0.0
  %903 = vmatpush2.msra.mxu0 0.0
  %904 = vmatprep.subr.mxu0 0.0
  %905 = vmatpush2.msra.mxu0 0.0
  %906 = vmatprep.subr.mxu0 0.0
  %907 = vmatpush2.msra.mxu0 0.0
  %908 = vmatprep.subr.mxu0 0.0
  %909 = vmatpush2.msra.mxu0 0.0
  %910 = vmatprep.subr.mxu0 0.0
  %911 = vmatpush2.msra.mxu0 0.0
  %912 = vmatprep.subr.mxu0 0.0
  %913 = vmatpush2.msra.mxu0 0.0
  %914 = vmatprep.subr.mxu0 0.0
  %915 = vmatpush2.msra.mxu0 0.0
  %916 = vmatprep.subr.mxu0 0.0
  %917 = vmatpush2.msra.mxu0 0.0
  %918 = vmatprep.mubr.f32.mxu0 0.0
  %919 = vmatmul.mubr.f32.gmra.mxu0 %v852
  %v920 = vpop.f32.mrf.mxu0
  %v921 = vadd.f32 0.0, %v920
  %v922 = vpop.f32.mrf.mxu0
  %v923 = vadd.f32 0.0, %v922
  %924 = vdwg.mxu0
  %v925 = vadd.f32 %v204, %v921
  %v926 = vadd.f32 %v206, %v923
  %v927 = vxor.u32 %v925, 2147483648
  %v928 = vxor.u32 %v926, 2147483648
  %v929 = vmul.f32 %v927, 1.442695
  %v930 = vpow.pop %v929
  %v931 = vmul.f32 %v928, 1.442695
  %v932 = vpow.pop %v931
  %v933 = vadd.f32 %v930, 1.0
  %v934 = vadd.f32 %v932, 1.0
  %v935 = vrcp.pop %v933
  %v936 = vmul.f32 1.0, %v935
  %v937 = vrcp.pop %v934
  %v938 = vmul.f32 1.0, %v937
  %v939 = vtanh.pop %v926
  %v940 = vmul.f32 %v936, %v843
  %v941 = vmul.f32 %v936, %v939
  %943 = vrot.lane.b32.xlu0 %v941, 64
  %v944 = vpop.permute.xlu0 %943
  %v946 = vadd.f32 %v940, %v944
  %v947 = vtanh.pop %v946
  %v948 = vmul.f32 %v938, %v947
  %950 = vrot.lane.b32.xlu0 %v948, 64
  %v951 = vpop.permute.xlu0 %950
  %953 = vst.msk [vmem:[#allocation2 + $0x30] sm:$0xff] %vm333, %v951
  %954 = vst.msk [vmem:[#allocation2 + $0x8] sm:$0xff] %vm335, %v951
  %v955 = vsel %vm230, %v951, 0
  %957 = vmatprep.subr.mxu0 0.0
  %958 = vmatpush1.msra.mxu0 0.0
  %959 = vmatprep.subr.mxu0 0.0
  %960 = vmatpush1.msra.mxu0 0.0
  %961 = vmatprep.subr.mxu0 0.0
  %962 = vmatpush1.msra.mxu0 0.0
  %963 = vmatprep.subr.mxu0 0.0
  %964 = vmatpush1.msra.mxu0 0.0
  %965 = vmatprep.subr.mxu0 0.0
  %966 = vmatpush1.msra.mxu0 0.0
  %967 = vmatprep.subr.mxu0 0.0
  %968 = vmatpush1.msra.mxu0 0.0
  %969 = vmatprep.subr.mxu0 0.0
  %970 = vmatpush1.msra.mxu0 0.0
  %971 = vmatprep.subr.mxu0 0.0
  %972 = vmatpush1.msra.mxu0 0.0
  %973 = vmatprep.subr.mxu0 %v229
  %974 = vmatpush1.msra.mxu0 %v228
  %975 = vmatprep.subr.mxu0 %v227
  %976 = vmatpush1.msra.mxu0 %v226
  %977 = vmatprep.subr.mxu0 %v225
  %978 = vmatpush1.msra.mxu0 %v224
  %979 = vmatprep.subr.mxu0 %v223
  %980 = vmatpush1.msra.mxu0 %v222
  %981 = vmatprep.subr.mxu0 %v221
  %982 = vmatpush1.msra.mxu0 %v220
  %983 = vmatprep.subr.mxu0 %v219
  %984 = vmatpush1.msra.mxu0 %v218
  %985 = vmatprep.subr.mxu0 %v217
  %986 = vmatpush1.msra.mxu0 %v216
  %987 = vmatprep.subr.mxu0 %v215
  %988 = vmatpush1.msra.mxu0 %v214
  %989 = vmatprep.subr.mxu0 0.0
  %990 = vmatpush2.msra.mxu0 0.0
  %991 = vmatprep.subr.mxu0 0.0
  %992 = vmatpush2.msra.mxu0 0.0
  %993 = vmatprep.subr.mxu0 0.0
  %994 = vmatpush2.msra.mxu0 0.0
  %995 = vmatprep.subr.mxu0 0.0
  %996 = vmatpush2.msra.mxu0 0.0
  %997 = vmatprep.subr.mxu0 0.0
  %998 = vmatpush2.msra.mxu0 0.0
  %999 = vmatprep.subr.mxu0 0.0
  %1000 = vmatpush2.msra.mxu0 0.0
  %1001 = vmatprep.subr.mxu0 0.0
  %1002 = vmatpush2.msra.mxu0 0.0
  %1003 = vmatprep.subr.mxu0 0.0
  %1004 = vmatpush2.msra.mxu0 0.0
  %1005 = vmatprep.subr.mxu0 0.0
  %1006 = vmatpush2.msra.mxu0 0.0
  %1007 = vmatprep.subr.mxu0 0.0
  %1008 = vmatpush2.msra.mxu0 0.0
  %1009 = vmatprep.subr.mxu0 0.0
  %1010 = vmatpush2.msra.mxu0 0.0
  %1011 = vmatprep.subr.mxu0 0.0
  %1012 = vmatpush2.msra.mxu0 0.0
  %1013 = vmatprep.subr.mxu0 0.0
  %1014 = vmatpush2.msra.mxu0 0.0
  %1015 = vmatprep.subr.mxu0 0.0
  %1016 = vmatpush2.msra.mxu0 0.0
  %1017 = vmatprep.subr.mxu0 0.0
  %1018 = vmatpush2.msra.mxu0 0.0
  %1019 = vmatprep.subr.mxu0 0.0
  %1020 = vmatpush2.msra.mxu0 0.0
  %1021 = vmatprep.mubr.f32.mxu0 0.0
  %1022 = vmatmul.mubr.f32.gmra.mxu0 %v955
  %v1023 = vpop.f32.mrf.mxu0
  %v1024 = vadd.f32 0.0, %v1023
  %v1025 = vpop.f32.mrf.mxu0
  %v1026 = vadd.f32 0.0, %v1025
  %1027 = vdwg.mxu0
  %v1028 = vadd.f32 %v210, %v1024
  %v1029 = vadd.f32 %v212, %v1026
  %v1030 = vxor.u32 %v1028, 2147483648
  %v1031 = vxor.u32 %v1029, 2147483648
  %v1032 = vmul.f32 %v1030, 1.442695
  %v1033 = vpow.pop %v1032
  %v1034 = vmul.f32 %v1031, 1.442695
  %v1035 = vpow.pop %v1034
  %v1036 = vadd.f32 %v1033, 1.0
  %v1037 = vadd.f32 %v1035, 1.0
  %v1038 = vrcp.pop %v1036
  %v1039 = vmul.f32 1.0, %v1038
  %v1040 = vrcp.pop %v1037
  %v1041 = vmul.f32 1.0, %v1040
  %v1042 = vtanh.pop %v1029
  %v1043 = vmul.f32 %v1039, %v946
  %v1044 = vmul.f32 %v1039, %v1042
  %1046 = vrot.lane.b32.xlu0 %v1044, 64
  %v1047 = vpop.permute.xlu0 %1046
  %v1049 = vadd.f32 %v1043, %v1047
  %v1050 = vtanh.pop %v1049
  %v1051 = vmul.f32 %v1041, %v1050
  %1053 = vrot.lane.b32.xlu0 %v1051, 64
  %v1054 = vpop.permute.xlu0 %1053
  %1056 = vst.msk [vmem:[#allocation2 + $0x38] sm:$0xff] %vm333, %v1054
  %1057 = vst.msk [vmem:[#allocation2] sm:$0xff] %vm335, %v1054
  %v1058 = vld [vmem:[#allocation2] sm:$0xff]
  %v1059 = vld [vmem:[#allocation2 + $0x8] sm:$0xff]
  %v1060 = vld [vmem:[#allocation2 + $0x10] sm:$0xff]
  %v1061 = vld [vmem:[#allocation2 + $0x18] sm:$0xff]
  %v1062 = vld [vmem:[#allocation2 + $0x20] sm:$0xff]
  %v1063 = vld [vmem:[#allocation2 + $0x28] sm:$0xff]
  %v1064 = vld [vmem:[#allocation2 + $0x30] sm:$0xff]
  %v1065 = vld [vmem:[#allocation2 + $0x38] sm:$0xff]
  %v1066 = vld [vmem:[%s4] sm:$0xff]
  %v1067 = vld [vmem:[%s4 + $0x8] sm:$0xff]
  %v1068 = vld [vmem:[%s4 + $0x10] sm:$0xff]
  %v1069 = vld [vmem:[%s4 + $0x18] sm:$0xff]
  %v1070 = vld [vmem:[%s4 + $0x20] sm:$0xff]
  %v1071 = vld [vmem:[%s4 + $0x28] sm:$0xff]
  %v1072 = vld [vmem:[%s4 + $0x30] sm:$0xff]
  %v1073 = vld [vmem:[%s4 + $0x38] sm:$0xff]
  %v1074 = vld [vmem:[%s6] sm:$0x1]
  %v1076 = vlaneseq
  %v1077 = vshrl.u32 %v1076, 7
  %v1078 = vsub.s32 0, %v1077
  %v1079 = vrot.slane %v1074, %v1078
  %v1082 = vsel %vm230, %v1058, 0
  %v1085 = vsel %vm230, %v1059, 0
  %v1088 = vsel %vm230, %v1060, 0
  %v1091 = vsel %vm230, %v1061, 0
  %v1094 = vsel %vm230, %v1062, 0
  %v1097 = vsel %vm230, %v1063, 0
  %v1100 = vsel %vm230, %v1064, 0
  %v1103 = vsel %vm230, %v1065, 0
  %1105 = vmatprep.subr.mxu0 0.0
  %1106 = vmatpush1.msra.mxu0 0.0
  %1107 = vmatprep.subr.mxu0 0.0
  %1108 = vmatpush1.msra.mxu0 0.0
  %1109 = vmatprep.subr.mxu0 0.0
  %1110 = vmatpush1.msra.mxu0 0.0
  %1111 = vmatprep.subr.mxu0 0.0
  %1112 = vmatpush1.msra.mxu0 0.0
  %1113 = vmatprep.subr.mxu0 0.0
  %1114 = vmatpush1.msra.mxu0 0.0
  %1115 = vmatprep.subr.mxu0 0.0
  %1116 = vmatpush1.msra.mxu0 0.0
  %1117 = vmatprep.subr.mxu0 0.0
  %1118 = vmatpush1.msra.mxu0 0.0
  %1119 = vmatprep.subr.mxu0 0.0
  %1120 = vmatpush1.msra.mxu0 0.0
  %1121 = vmatprep.subr.mxu0 0.0
  %1122 = vmatpush1.msra.mxu0 %v1073
  %1123 = vmatprep.subr.mxu0 0.0
  %1124 = vmatpush1.msra.mxu0 %v1072
  %1125 = vmatprep.subr.mxu0 0.0
  %1126 = vmatpush1.msra.mxu0 %v1071
  %1127 = vmatprep.subr.mxu0 0.0
  %1128 = vmatpush1.msra.mxu0 %v1070
  %1129 = vmatprep.subr.mxu0 0.0
  %1130 = vmatpush1.msra.mxu0 %v1069
  %1131 = vmatprep.subr.mxu0 0.0
  %1132 = vmatpush1.msra.mxu0 %v1068
  %1133 = vmatprep.subr.mxu0 0.0
  %1134 = vmatpush1.msra.mxu0 %v1067
  %1135 = vmatprep.subr.mxu0 0.0
  %1136 = vmatpush1.msra.mxu0 %v1066
  %1137 = vmatprep.subr.mxu0 0.0
  %1138 = vmatpush2.msra.mxu0 0.0
  %1139 = vmatprep.subr.mxu0 0.0
  %1140 = vmatpush2.msra.mxu0 0.0
  %1141 = vmatprep.subr.mxu0 0.0
  %1142 = vmatpush2.msra.mxu0 0.0
  %1143 = vmatprep.subr.mxu0 0.0
  %1144 = vmatpush2.msra.mxu0 0.0
  %1145 = vmatprep.subr.mxu0 0.0
  %1146 = vmatpush2.msra.mxu0 0.0
  %1147 = vmatprep.subr.mxu0 0.0
  %1148 = vmatpush2.msra.mxu0 0.0
  %1149 = vmatprep.subr.mxu0 0.0
  %1150 = vmatpush2.msra.mxu0 0.0
  %1151 = vmatprep.subr.mxu0 0.0
  %1152 = vmatpush2.msra.mxu0 0.0
  %1153 = vmatprep.subr.mxu0 0.0
  %1154 = vmatpush2.msra.mxu0 0.0
  %1155 = vmatprep.subr.mxu0 0.0
  %1156 = vmatpush2.msra.mxu0 0.0
  %1157 = vmatprep.subr.mxu0 0.0
  %1158 = vmatpush2.msra.mxu0 0.0
  %1159 = vmatprep.subr.mxu0 0.0
  %1160 = vmatpush2.msra.mxu0 0.0
  %1161 = vmatprep.subr.mxu0 0.0
  %1162 = vmatpush2.msra.mxu0 0.0
  %1163 = vmatprep.subr.mxu0 0.0
  %1164 = vmatpush2.msra.mxu0 0.0
  %1165 = vmatprep.subr.mxu0 0.0
  %1166 = vmatpush2.msra.mxu0 0.0
  %1167 = vmatprep.subr.mxu0 0.0
  %1168 = vmatpush2.msra.mxu0 0.0
  %1169 = vmatprep.mubr.f32.mxu0 0.0
  %1170 = vmatmul.mubr.f32.gmra.mxu0 %v1082
  %v1171 = vpop.f32.mrf.mxu0
  %v1172 = vadd.f32 %v1079, %v1171
  %v1173 = vpop.f32.mrf.mxu0
  %1174 = vmatprep.mubr.f32.mxu0 0.0
  %1175 = vmatmul.mubr.f32.gmra.mxu0 %v1085
  %v1176 = vpop.f32.mrf.mxu0
  %v1177 = vadd.f32 %v1079, %v1176
  %v1178 = vpop.f32.mrf.mxu0
  %1179 = vmatprep.mubr.f32.mxu0 0.0
  %1180 = vmatmul.mubr.f32.gmra.mxu0 %v1088
  %v1181 = vpop.f32.mrf.mxu0
  %v1182 = vadd.f32 %v1079, %v1181
  %v1183 = vpop.f32.mrf.mxu0
  %1184 = vmatprep.mubr.f32.mxu0 0.0
  %1185 = vmatmul.mubr.f32.gmra.mxu0 %v1091
  %v1186 = vpop.f32.mrf.mxu0
  %v1187 = vadd.f32 %v1079, %v1186
  %v1188 = vpop.f32.mrf.mxu0
  %1189 = vmatprep.mubr.f32.mxu0 0.0
  %1190 = vmatmul.mubr.f32.gmra.mxu0 %v1094
  %v1191 = vpop.f32.mrf.mxu0
  %v1192 = vadd.f32 %v1079, %v1191
  %v1193 = vpop.f32.mrf.mxu0
  %1194 = vmatprep.mubr.f32.mxu0 0.0
  %1195 = vmatmul.mubr.f32.gmra.mxu0 %v1097
  %v1196 = vpop.f32.mrf.mxu0
  %v1197 = vadd.f32 %v1079, %v1196
  %v1198 = vpop.f32.mrf.mxu0
  %1199 = vmatprep.mubr.f32.mxu0 0.0
  %1200 = vmatmul.mubr.f32.gmra.mxu0 %v1100
  %v1201 = vpop.f32.mrf.mxu0
  %v1202 = vadd.f32 %v1079, %v1201
  %v1203 = vpop.f32.mrf.mxu0
  %1204 = vmatprep.mubr.f32.mxu0 0.0
  %1205 = vmatmul.mubr.f32.gmra.mxu0 %v1103
  %v1206 = vpop.f32.mrf.mxu0
  %v1207 = vadd.f32 %v1079, %v1206
  %v1208 = vpop.f32.mrf.mxu0
  %1209 = vdwg.mxu0
  %v1210 = vld [vmem:[%s5] sm:$0xff]
  %v1211 = vld [vmem:[%s5 + $0x8] sm:$0xff]
  %v1212 = vld [vmem:[%s5 + $0x10] sm:$0xff]
  %v1213 = vld [vmem:[%s5 + $0x18] sm:$0xff]
  %v1214 = vsel %vm333, 0.0, 0
  %1216 = vmatprep.subr.mxu0 0.0
  %1217 = vmatpush1.msra.mxu0 0.0
  %1218 = vmatprep.subr.mxu0 0.0
  %1219 = vmatpush1.msra.mxu0 0.0
  %1220 = vmatprep.subr.mxu0 0.0
  %1221 = vmatpush1.msra.mxu0 0.0
  %1222 = vmatprep.subr.mxu0 0.0
  %1223 = vmatpush1.msra.mxu0 0.0
  %1224 = vmatprep.subr.mxu0 0.0
  %1225 = vmatpush1.msra.mxu0 0.0
  %1226 = vmatprep.subr.mxu0 0.0
  %1227 = vmatpush1.msra.mxu0 0.0
  %1228 = vmatprep.subr.mxu0 0.0
  %1229 = vmatpush1.msra.mxu0 0.0
  %1230 = vmatprep.subr.mxu0 0.0
  %1231 = vmatpush1.msra.mxu0 0.0
  %1232 = vmatprep.subr.mxu0 0.0
  %1233 = vmatpush1.msra.mxu0 0.0
  %1234 = vmatprep.subr.mxu0 0.0
  %1235 = vmatpush1.msra.mxu0 0.0
  %1236 = vmatprep.subr.mxu0 0.0
  %1237 = vmatpush1.msra.mxu0 0.0
  %1238 = vmatprep.subr.mxu0 0.0
  %1239 = vmatpush1.msra.mxu0 0.0
  %1240 = vmatprep.subr.mxu0 0.0
  %1241 = vmatpush1.msra.mxu0 %v1213
  %1242 = vmatprep.subr.mxu0 0.0
  %1243 = vmatpush1.msra.mxu0 %v1212
  %1244 = vmatprep.subr.mxu0 0.0
  %1245 = vmatpush1.msra.mxu0 %v1211
  %1246 = vmatprep.subr.mxu0 0.0
  %1247 = vmatpush1.msra.mxu0 %v1210
  %1248 = vmatprep.subr.mxu0 0.0
  %1249 = vmatpush2.msra.mxu0 0.0
  %1250 = vmatprep.subr.mxu0 0.0
  %1251 = vmatpush2.msra.mxu0 0.0
  %1252 = vmatprep.subr.mxu0 0.0
  %1253 = vmatpush2.msra.mxu0 0.0
  %1254 = vmatprep.subr.mxu0 0.0
  %1255 = vmatpush2.msra.mxu0 0.0
  %1256 = vmatprep.subr.mxu0 0.0
  %1257 = vmatpush2.msra.mxu0 0.0
  %1258 = vmatprep.subr.mxu0 0.0
  %1259 = vmatpush2.msra.mxu0 0.0
  %1260 = vmatprep.subr.mxu0 0.0
  %1261 = vmatpush2.msra.mxu0 0.0
  %1262 = vmatprep.subr.mxu0 0.0
  %1263 = vmatpush2.msra.mxu0 0.0
  %1264 = vmatprep.subr.mxu0 0.0
  %1265 = vmatpush2.msra.mxu0 0.0
  %1266 = vmatprep.subr.mxu0 0.0
  %1267 = vmatpush2.msra.mxu0 0.0
  %1268 = vmatprep.subr.mxu0 0.0
  %1269 = vmatpush2.msra.mxu0 0.0
  %1270 = vmatprep.subr.mxu0 0.0
  %1271 = vmatpush2.msra.mxu0 0.0
  %1272 = vmatprep.subr.mxu0 0.0
  %1273 = vmatpush2.msra.mxu0 0.0
  %1274 = vmatprep.subr.mxu0 0.0
  %1275 = vmatpush2.msra.mxu0 0.0
  %1276 = vmatprep.subr.mxu0 0.0
  %1277 = vmatpush2.msra.mxu0 0.0
  %1278 = vmatprep.subr.mxu0 0.0
  %1279 = vmatpush2.msra.mxu0 0.0
  %1280 = vmatprep.mubr.f32.mxu0 0.0
  %1281 = vmatmul.mubr.f32.gmra.mxu0 %v1214
  %v1282 = vpop.f32.mrf.mxu0
  %v1283 = vadd.f32 0.0, %v1282
  %v1284 = vpop.f32.mrf.mxu0
  %1285 = vdwg.mxu0
  %v1286 = vadd.f32 %v1172, %v1283
  %v1287 = vxor.u32 %v1286, 2147483648
  %v1288 = vmul.f32 %v1287, 1.442695
  %v1289 = vpow.pop %v1288
  %v1290 = vadd.f32 %v1289, 1.0
  %v1291 = vrcp.pop %v1290
  %v1292 = vmul.f32 1.0, %v1291
  %v1293 = vtanh.pop %v1286
  %v1294 = vmul.f32 %v1292, 0.0
  %1296 = vrot.lane.b32.xlu0 %v1293, 64
  %v1297 = vpop.permute.xlu0 %1296
  %v1299 = vmul.f32 %v1292, %v1297
  %1301 = vrot.lane.b32.xlu0 %v1299, 32
  %v1302 = vpop.permute.xlu0 %1301
  %v1304 = vadd.f32 %v1294, %v1302
  %v1305 = vtanh.pop %v1304
  %1307 = vrot.lane.b32.xlu0 %v1305, 64
  %v1308 = vpop.permute.xlu0 %1307
  %v1310 = vmul.f32 %v1292, %v1308
  %1312 = vrot.lane.b32.xlu0 %v1310, 32
  %v1313 = vpop.permute.xlu0 %1312
  %v1314 = vsel %vm333, %v1313, 0
  %1316 = vmatprep.subr.mxu0 0.0
  %1317 = vmatpush1.msra.mxu0 0.0
  %1318 = vmatprep.subr.mxu0 0.0
  %1319 = vmatpush1.msra.mxu0 0.0
  %1320 = vmatprep.subr.mxu0 0.0
  %1321 = vmatpush1.msra.mxu0 0.0
  %1322 = vmatprep.subr.mxu0 0.0
  %1323 = vmatpush1.msra.mxu0 0.0
  %1324 = vmatprep.subr.mxu0 0.0
  %1325 = vmatpush1.msra.mxu0 0.0
  %1326 = vmatprep.subr.mxu0 0.0
  %1327 = vmatpush1.msra.mxu0 0.0
  %1328 = vmatprep.subr.mxu0 0.0
  %1329 = vmatpush1.msra.mxu0 0.0
  %1330 = vmatprep.subr.mxu0 0.0
  %1331 = vmatpush1.msra.mxu0 0.0
  %1332 = vmatprep.subr.mxu0 0.0
  %1333 = vmatpush1.msra.mxu0 0.0
  %1334 = vmatprep.subr.mxu0 0.0
  %1335 = vmatpush1.msra.mxu0 0.0
  %1336 = vmatprep.subr.mxu0 0.0
  %1337 = vmatpush1.msra.mxu0 0.0
  %1338 = vmatprep.subr.mxu0 0.0
  %1339 = vmatpush1.msra.mxu0 0.0
  %1340 = vmatprep.subr.mxu0 0.0
  %1341 = vmatpush1.msra.mxu0 %v1213
  %1342 = vmatprep.subr.mxu0 0.0
  %1343 = vmatpush1.msra.mxu0 %v1212
  %1344 = vmatprep.subr.mxu0 0.0
  %1345 = vmatpush1.msra.mxu0 %v1211
  %1346 = vmatprep.subr.mxu0 0.0
  %1347 = vmatpush1.msra.mxu0 %v1210
  %1348 = vmatprep.subr.mxu0 0.0
  %1349 = vmatpush2.msra.mxu0 0.0
  %1350 = vmatprep.subr.mxu0 0.0
  %1351 = vmatpush2.msra.mxu0 0.0
  %1352 = vmatprep.subr.mxu0 0.0
  %1353 = vmatpush2.msra.mxu0 0.0
  %1354 = vmatprep.subr.mxu0 0.0
  %1355 = vmatpush2.msra.mxu0 0.0
  %1356 = vmatprep.subr.mxu0 0.0
  %1357 = vmatpush2.msra.mxu0 0.0
  %1358 = vmatprep.subr.mxu0 0.0
  %1359 = vmatpush2.msra.mxu0 0.0
  %1360 = vmatprep.subr.mxu0 0.0
  %1361 = vmatpush2.msra.mxu0 0.0
  %1362 = vmatprep.subr.mxu0 0.0
  %1363 = vmatpush2.msra.mxu0 0.0
  %1364 = vmatprep.subr.mxu0 0.0
  %1365 = vmatpush2.msra.mxu0 0.0
  %1366 = vmatprep.subr.mxu0 0.0
  %1367 = vmatpush2.msra.mxu0 0.0
  %1368 = vmatprep.subr.mxu0 0.0
  %1369 = vmatpush2.msra.mxu0 0.0
  %1370 = vmatprep.subr.mxu0 0.0
  %1371 = vmatpush2.msra.mxu0 0.0
  %1372 = vmatprep.subr.mxu0 0.0
  %1373 = vmatpush2.msra.mxu0 0.0
  %1374 = vmatprep.subr.mxu0 0.0
  %1375 = vmatpush2.msra.mxu0 0.0
  %1376 = vmatprep.subr.mxu0 0.0
  %1377 = vmatpush2.msra.mxu0 0.0
  %1378 = vmatprep.subr.mxu0 0.0
  %1379 = vmatpush2.msra.mxu0 0.0
  %1380 = vmatprep.mubr.f32.mxu0 0.0
  %1381 = vmatmul.mubr.f32.gmra.mxu0 %v1314
  %v1382 = vpop.f32.mrf.mxu0
  %v1383 = vadd.f32 0.0, %v1382
  %v1384 = vpop.f32.mrf.mxu0
  %1385 = vdwg.mxu0
  %v1386 = vadd.f32 %v1177, %v1383
  %v1387 = vxor.u32 %v1386, 2147483648
  %v1388 = vmul.f32 %v1387, 1.442695
  %v1389 = vpow.pop %v1388
  %v1390 = vadd.f32 %v1389, 1.0
  %v1391 = vrcp.pop %v1390
  %v1392 = vmul.f32 1.0, %v1391
  %v1393 = vtanh.pop %v1386
  %v1394 = vmul.f32 %v1392, %v1304
  %1396 = vrot.lane.b32.xlu0 %v1393, 64
  %v1397 = vpop.permute.xlu0 %1396
  %v1399 = vmul.f32 %v1392, %v1397
  %1401 = vrot.lane.b32.xlu0 %v1399, 32
  %v1402 = vpop.permute.xlu0 %1401
  %v1404 = vadd.f32 %v1394, %v1402
  %v1405 = vtanh.pop %v1404
  %1407 = vrot.lane.b32.xlu0 %v1405, 64
  %v1408 = vpop.permute.xlu0 %1407
  %v1410 = vmul.f32 %v1392, %v1408
  %1412 = vrot.lane.b32.xlu0 %v1410, 32
  %v1413 = vpop.permute.xlu0 %1412
  %v1414 = vsel %vm333, %v1413, 0
  %1416 = vmatprep.subr.mxu0 0.0
  %1417 = vmatpush1.msra.mxu0 0.0
  %1418 = vmatprep.subr.mxu0 0.0
  %1419 = vmatpush1.msra.mxu0 0.0
  %1420 = vmatprep.subr.mxu0 0.0
  %1421 = vmatpush1.msra.mxu0 0.0
  %1422 = vmatprep.subr.mxu0 0.0
  %1423 = vmatpush1.msra.mxu0 0.0
  %1424 = vmatprep.subr.mxu0 0.0
  %1425 = vmatpush1.msra.mxu0 0.0
  %1426 = vmatprep.subr.mxu0 0.0
  %1427 = vmatpush1.msra.mxu0 0.0
  %1428 = vmatprep.subr.mxu0 0.0
  %1429 = vmatpush1.msra.mxu0 0.0
  %1430 = vmatprep.subr.mxu0 0.0
  %1431 = vmatpush1.msra.mxu0 0.0
  %1432 = vmatprep.subr.mxu0 0.0
  %1433 = vmatpush1.msra.mxu0 0.0
  %1434 = vmatprep.subr.mxu0 0.0
  %1435 = vmatpush1.msra.mxu0 0.0
  %1436 = vmatprep.subr.mxu0 0.0
  %1437 = vmatpush1.msra.mxu0 0.0
  %1438 = vmatprep.subr.mxu0 0.0
  %1439 = vmatpush1.msra.mxu0 0.0
  %1440 = vmatprep.subr.mxu0 0.0
  %1441 = vmatpush1.msra.mxu0 %v1213
  %1442 = vmatprep.subr.mxu0 0.0
  %1443 = vmatpush1.msra.mxu0 %v1212
  %1444 = vmatprep.subr.mxu0 0.0
  %1445 = vmatpush1.msra.mxu0 %v1211
  %1446 = vmatprep.subr.mxu0 0.0
  %1447 = vmatpush1.msra.mxu0 %v1210
  %1448 = vmatprep.subr.mxu0 0.0
  %1449 = vmatpush2.msra.mxu0 0.0
  %1450 = vmatprep.subr.mxu0 0.0
  %1451 = vmatpush2.msra.mxu0 0.0
  %1452 = vmatprep.subr.mxu0 0.0
  %1453 = vmatpush2.msra.mxu0 0.0
  %1454 = vmatprep.subr.mxu0 0.0
  %1455 = vmatpush2.msra.mxu0 0.0
  %1456 = vmatprep.subr.mxu0 0.0
  %1457 = vmatpush2.msra.mxu0 0.0
  %1458 = vmatprep.subr.mxu0 0.0
  %1459 = vmatpush2.msra.mxu0 0.0
  %1460 = vmatprep.subr.mxu0 0.0
  %1461 = vmatpush2.msra.mxu0 0.0
  %1462 = vmatprep.subr.mxu0 0.0
  %1463 = vmatpush2.msra.mxu0 0.0
  %1464 = vmatprep.subr.mxu0 0.0
  %1465 = vmatpush2.msra.mxu0 0.0
  %1466 = vmatprep.subr.mxu0 0.0
  %1467 = vmatpush2.msra.mxu0 0.0
  %1468 = vmatprep.subr.mxu0 0.0
  %1469 = vmatpush2.msra.mxu0 0.0
  %1470 = vmatprep.subr.mxu0 0.0
  %1471 = vmatpush2.msra.mxu0 0.0
  %1472 = vmatprep.subr.mxu0 0.0
  %1473 = vmatpush2.msra.mxu0 0.0
  %1474 = vmatprep.subr.mxu0 0.0
  %1475 = vmatpush2.msra.mxu0 0.0
  %1476 = vmatprep.subr.mxu0 0.0
  %1477 = vmatpush2.msra.mxu0 0.0
  %1478 = vmatprep.subr.mxu0 0.0
  %1479 = vmatpush2.msra.mxu0 0.0
  %1480 = vmatprep.mubr.f32.mxu0 0.0
  %1481 = vmatmul.mubr.f32.gmra.mxu0 %v1414
  %v1482 = vpop.f32.mrf.mxu0
  %v1483 = vadd.f32 0.0, %v1482
  %v1484 = vpop.f32.mrf.mxu0
  %1485 = vdwg.mxu0
  %v1486 = vadd.f32 %v1182, %v1483
  %v1487 = vxor.u32 %v1486, 2147483648
  %v1488 = vmul.f32 %v1487, 1.442695
  %v1489 = vpow.pop %v1488
  %v1490 = vadd.f32 %v1489, 1.0
  %v1491 = vrcp.pop %v1490
  %v1492 = vmul.f32 1.0, %v1491
  %v1493 = vtanh.pop %v1486
  %v1494 = vmul.f32 %v1492, %v1404
  %1496 = vrot.lane.b32.xlu0 %v1493, 64
  %v1497 = vpop.permute.xlu0 %1496
  %v1499 = vmul.f32 %v1492, %v1497
  %1501 = vrot.lane.b32.xlu0 %v1499, 32
  %v1502 = vpop.permute.xlu0 %1501
  %v1504 = vadd.f32 %v1494, %v1502
  %v1505 = vtanh.pop %v1504
  %1507 = vrot.lane.b32.xlu0 %v1505, 64
  %v1508 = vpop.permute.xlu0 %1507
  %v1510 = vmul.f32 %v1492, %v1508
  %1512 = vrot.lane.b32.xlu0 %v1510, 32
  %v1513 = vpop.permute.xlu0 %1512
  %v1514 = vsel %vm333, %v1513, 0
  %1516 = vmatprep.subr.mxu0 0.0
  %1517 = vmatpush1.msra.mxu0 0.0
  %1518 = vmatprep.subr.mxu0 0.0
  %1519 = vmatpush1.msra.mxu0 0.0
  %1520 = vmatprep.subr.mxu0 0.0
  %1521 = vmatpush1.msra.mxu0 0.0
  %1522 = vmatprep.subr.mxu0 0.0
  %1523 = vmatpush1.msra.mxu0 0.0
  %1524 = vmatprep.subr.mxu0 0.0
  %1525 = vmatpush1.msra.mxu0 0.0
  %1526 = vmatprep.subr.mxu0 0.0
  %1527 = vmatpush1.msra.mxu0 0.0
  %1528 = vmatprep.subr.mxu0 0.0
  %1529 = vmatpush1.msra.mxu0 0.0
  %1530 = vmatprep.subr.mxu0 0.0
  %1531 = vmatpush1.msra.mxu0 0.0
  %1532 = vmatprep.subr.mxu0 0.0
  %1533 = vmatpush1.msra.mxu0 0.0
  %1534 = vmatprep.subr.mxu0 0.0
  %1535 = vmatpush1.msra.mxu0 0.0
  %1536 = vmatprep.subr.mxu0 0.0
  %1537 = vmatpush1.msra.mxu0 0.0
  %1538 = vmatprep.subr.mxu0 0.0
  %1539 = vmatpush1.msra.mxu0 0.0
  %1540 = vmatprep.subr.mxu0 0.0
  %1541 = vmatpush1.msra.mxu0 %v1213
  %1542 = vmatprep.subr.mxu0 0.0
  %1543 = vmatpush1.msra.mxu0 %v1212
  %1544 = vmatprep.subr.mxu0 0.0
  %1545 = vmatpush1.msra.mxu0 %v1211
  %1546 = vmatprep.subr.mxu0 0.0
  %1547 = vmatpush1.msra.mxu0 %v1210
  %1548 = vmatprep.subr.mxu0 0.0
  %1549 = vmatpush2.msra.mxu0 0.0
  %1550 = vmatprep.subr.mxu0 0.0
  %1551 = vmatpush2.msra.mxu0 0.0
  %1552 = vmatprep.subr.mxu0 0.0
  %1553 = vmatpush2.msra.mxu0 0.0
  %1554 = vmatprep.subr.mxu0 0.0
  %1555 = vmatpush2.msra.mxu0 0.0
  %1556 = vmatprep.subr.mxu0 0.0
  %1557 = vmatpush2.msra.mxu0 0.0
  %1558 = vmatprep.subr.mxu0 0.0
  %1559 = vmatpush2.msra.mxu0 0.0
  %1560 = vmatprep.subr.mxu0 0.0
  %1561 = vmatpush2.msra.mxu0 0.0
  %1562 = vmatprep.subr.mxu0 0.0
  %1563 = vmatpush2.msra.mxu0 0.0
  %1564 = vmatprep.subr.mxu0 0.0
  %1565 = vmatpush2.msra.mxu0 0.0
  %1566 = vmatprep.subr.mxu0 0.0
  %1567 = vmatpush2.msra.mxu0 0.0
  %1568 = vmatprep.subr.mxu0 0.0
  %1569 = vmatpush2.msra.mxu0 0.0
  %1570 = vmatprep.subr.mxu0 0.0
  %1571 = vmatpush2.msra.mxu0 0.0
  %1572 = vmatprep.subr.mxu0 0.0
  %1573 = vmatpush2.msra.mxu0 0.0
  %1574 = vmatprep.subr.mxu0 0.0
  %1575 = vmatpush2.msra.mxu0 0.0
  %1576 = vmatprep.subr.mxu0 0.0
  %1577 = vmatpush2.msra.mxu0 0.0
  %1578 = vmatprep.subr.mxu0 0.0
  %1579 = vmatpush2.msra.mxu0 0.0
  %1580 = vmatprep.mubr.f32.mxu0 0.0
  %1581 = vmatmul.mubr.f32.gmra.mxu0 %v1514
  %v1582 = vpop.f32.mrf.mxu0
  %v1583 = vadd.f32 0.0, %v1582
  %v1584 = vpop.f32.mrf.mxu0
  %1585 = vdwg.mxu0
  %v1586 = vadd.f32 %v1187, %v1583
  %v1587 = vxor.u32 %v1586, 2147483648
  %v1588 = vmul.f32 %v1587, 1.442695
  %v1589 = vpow.pop %v1588
  %v1590 = vadd.f32 %v1589, 1.0
  %v1591 = vrcp.pop %v1590
  %v1592 = vmul.f32 1.0, %v1591
  %v1593 = vtanh.pop %v1586
  %v1594 = vmul.f32 %v1592, %v1504
  %1596 = vrot.lane.b32.xlu0 %v1593, 64
  %v1597 = vpop.permute.xlu0 %1596
  %v1599 = vmul.f32 %v1592, %v1597
  %1601 = vrot.lane.b32.xlu0 %v1599, 32
  %v1602 = vpop.permute.xlu0 %1601
  %v1604 = vadd.f32 %v1594, %v1602
  %v1605 = vtanh.pop %v1604
  %1607 = vrot.lane.b32.xlu0 %v1605, 64
  %v1608 = vpop.permute.xlu0 %1607
  %v1610 = vmul.f32 %v1592, %v1608
  %1612 = vrot.lane.b32.xlu0 %v1610, 32
  %v1613 = vpop.permute.xlu0 %1612
  %v1614 = vsel %vm333, %v1613, 0
  %1616 = vmatprep.subr.mxu0 0.0
  %1617 = vmatpush1.msra.mxu0 0.0
  %1618 = vmatprep.subr.mxu0 0.0
  %1619 = vmatpush1.msra.mxu0 0.0
  %1620 = vmatprep.subr.mxu0 0.0
  %1621 = vmatpush1.msra.mxu0 0.0
  %1622 = vmatprep.subr.mxu0 0.0
  %1623 = vmatpush1.msra.mxu0 0.0
  %1624 = vmatprep.subr.mxu0 0.0
  %1625 = vmatpush1.msra.mxu0 0.0
  %1626 = vmatprep.subr.mxu0 0.0
  %1627 = vmatpush1.msra.mxu0 0.0
  %1628 = vmatprep.subr.mxu0 0.0
  %1629 = vmatpush1.msra.mxu0 0.0
  %1630 = vmatprep.subr.mxu0 0.0
  %1631 = vmatpush1.msra.mxu0 0.0
  %1632 = vmatprep.subr.mxu0 0.0
  %1633 = vmatpush1.msra.mxu0 0.0
  %1634 = vmatprep.subr.mxu0 0.0
  %1635 = vmatpush1.msra.mxu0 0.0
  %1636 = vmatprep.subr.mxu0 0.0
  %1637 = vmatpush1.msra.mxu0 0.0
  %1638 = vmatprep.subr.mxu0 0.0
  %1639 = vmatpush1.msra.mxu0 0.0
  %1640 = vmatprep.subr.mxu0 0.0
  %1641 = vmatpush1.msra.mxu0 %v1213
  %1642 = vmatprep.subr.mxu0 0.0
  %1643 = vmatpush1.msra.mxu0 %v1212
  %1644 = vmatprep.subr.mxu0 0.0
  %1645 = vmatpush1.msra.mxu0 %v1211
  %1646 = vmatprep.subr.mxu0 0.0
  %1647 = vmatpush1.msra.mxu0 %v1210
  %1648 = vmatprep.subr.mxu0 0.0
  %1649 = vmatpush2.msra.mxu0 0.0
  %1650 = vmatprep.subr.mxu0 0.0
  %1651 = vmatpush2.msra.mxu0 0.0
  %1652 = vmatprep.subr.mxu0 0.0
  %1653 = vmatpush2.msra.mxu0 0.0
  %1654 = vmatprep.subr.mxu0 0.0
  %1655 = vmatpush2.msra.mxu0 0.0
  %1656 = vmatprep.subr.mxu0 0.0
  %1657 = vmatpush2.msra.mxu0 0.0
  %1658 = vmatprep.subr.mxu0 0.0
  %1659 = vmatpush2.msra.mxu0 0.0
  %1660 = vmatprep.subr.mxu0 0.0
  %1661 = vmatpush2.msra.mxu0 0.0
  %1662 = vmatprep.subr.mxu0 0.0
  %1663 = vmatpush2.msra.mxu0 0.0
  %1664 = vmatprep.subr.mxu0 0.0
  %1665 = vmatpush2.msra.mxu0 0.0
  %1666 = vmatprep.subr.mxu0 0.0
  %1667 = vmatpush2.msra.mxu0 0.0
  %1668 = vmatprep.subr.mxu0 0.0
  %1669 = vmatpush2.msra.mxu0 0.0
  %1670 = vmatprep.subr.mxu0 0.0
  %1671 = vmatpush2.msra.mxu0 0.0
  %1672 = vmatprep.subr.mxu0 0.0
  %1673 = vmatpush2.msra.mxu0 0.0
  %1674 = vmatprep.subr.mxu0 0.0
  %1675 = vmatpush2.msra.mxu0 0.0
  %1676 = vmatprep.subr.mxu0 0.0
  %1677 = vmatpush2.msra.mxu0 0.0
  %1678 = vmatprep.subr.mxu0 0.0
  %1679 = vmatpush2.msra.mxu0 0.0
  %1680 = vmatprep.mubr.f32.mxu0 0.0
  %1681 = vmatmul.mubr.f32.gmra.mxu0 %v1614
  %v1682 = vpop.f32.mrf.mxu0
  %v1683 = vadd.f32 0.0, %v1682
  %v1684 = vpop.f32.mrf.mxu0
  %1685 = vdwg.mxu0
  %v1686 = vadd.f32 %v1192, %v1683
  %v1687 = vxor.u32 %v1686, 2147483648
  %v1688 = vmul.f32 %v1687, 1.442695
  %v1689 = vpow.pop %v1688
  %v1690 = vadd.f32 %v1689, 1.0
  %v1691 = vrcp.pop %v1690
  %v1692 = vmul.f32 1.0, %v1691
  %v1693 = vtanh.pop %v1686
  %v1694 = vmul.f32 %v1692, %v1604
  %1696 = vrot.lane.b32.xlu0 %v1693, 64
  %v1697 = vpop.permute.xlu0 %1696
  %v1699 = vmul.f32 %v1692, %v1697
  %1701 = vrot.lane.b32.xlu0 %v1699, 32
  %v1702 = vpop.permute.xlu0 %1701
  %v1704 = vadd.f32 %v1694, %v1702
  %v1705 = vtanh.pop %v1704
  %1707 = vrot.lane.b32.xlu0 %v1705, 64
  %v1708 = vpop.permute.xlu0 %1707
  %v1710 = vmul.f32 %v1692, %v1708
  %1712 = vrot.lane.b32.xlu0 %v1710, 32
  %v1713 = vpop.permute.xlu0 %1712
  %v1714 = vsel %vm333, %v1713, 0
  %1716 = vmatprep.subr.mxu0 0.0
  %1717 = vmatpush1.msra.mxu0 0.0
  %1718 = vmatprep.subr.mxu0 0.0
  %1719 = vmatpush1.msra.mxu0 0.0
  %1720 = vmatprep.subr.mxu0 0.0
  %1721 = vmatpush1.msra.mxu0 0.0
  %1722 = vmatprep.subr.mxu0 0.0
  %1723 = vmatpush1.msra.mxu0 0.0
  %1724 = vmatprep.subr.mxu0 0.0
  %1725 = vmatpush1.msra.mxu0 0.0
  %1726 = vmatprep.subr.mxu0 0.0
  %1727 = vmatpush1.msra.mxu0 0.0
  %1728 = vmatprep.subr.mxu0 0.0
  %1729 = vmatpush1.msra.mxu0 0.0
  %1730 = vmatprep.subr.mxu0 0.0
  %1731 = vmatpush1.msra.mxu0 0.0
  %1732 = vmatprep.subr.mxu0 0.0
  %1733 = vmatpush1.msra.mxu0 0.0
  %1734 = vmatprep.subr.mxu0 0.0
  %1735 = vmatpush1.msra.mxu0 0.0
  %1736 = vmatprep.subr.mxu0 0.0
  %1737 = vmatpush1.msra.mxu0 0.0
  %1738 = vmatprep.subr.mxu0 0.0
  %1739 = vmatpush1.msra.mxu0 0.0
  %1740 = vmatprep.subr.mxu0 0.0
  %1741 = vmatpush1.msra.mxu0 %v1213
  %1742 = vmatprep.subr.mxu0 0.0
  %1743 = vmatpush1.msra.mxu0 %v1212
  %1744 = vmatprep.subr.mxu0 0.0
  %1745 = vmatpush1.msra.mxu0 %v1211
  %1746 = vmatprep.subr.mxu0 0.0
  %1747 = vmatpush1.msra.mxu0 %v1210
  %1748 = vmatprep.subr.mxu0 0.0
  %1749 = vmatpush2.msra.mxu0 0.0
  %1750 = vmatprep.subr.mxu0 0.0
  %1751 = vmatpush2.msra.mxu0 0.0
  %1752 = vmatprep.subr.mxu0 0.0
  %1753 = vmatpush2.msra.mxu0 0.0
  %1754 = vmatprep.subr.mxu0 0.0
  %1755 = vmatpush2.msra.mxu0 0.0
  %1756 = vmatprep.subr.mxu0 0.0
  %1757 = vmatpush2.msra.mxu0 0.0
  %1758 = vmatprep.subr.mxu0 0.0
  %1759 = vmatpush2.msra.mxu0 0.0
  %1760 = vmatprep.subr.mxu0 0.0
  %1761 = vmatpush2.msra.mxu0 0.0
  %1762 = vmatprep.subr.mxu0 0.0
  %1763 = vmatpush2.msra.mxu0 0.0
  %1764 = vmatprep.subr.mxu0 0.0
  %1765 = vmatpush2.msra.mxu0 0.0
  %1766 = vmatprep.subr.mxu0 0.0
  %1767 = vmatpush2.msra.mxu0 0.0
  %1768 = vmatprep.subr.mxu0 0.0
  %1769 = vmatpush2.msra.mxu0 0.0
  %1770 = vmatprep.subr.mxu0 0.0
  %1771 = vmatpush2.msra.mxu0 0.0
  %1772 = vmatprep.subr.mxu0 0.0
  %1773 = vmatpush2.msra.mxu0 0.0
  %1774 = vmatprep.subr.mxu0 0.0
  %1775 = vmatpush2.msra.mxu0 0.0
  %1776 = vmatprep.subr.mxu0 0.0
  %1777 = vmatpush2.msra.mxu0 0.0
  %1778 = vmatprep.subr.mxu0 0.0
  %1779 = vmatpush2.msra.mxu0 0.0
  %1780 = vmatprep.mubr.f32.mxu0 0.0
  %1781 = vmatmul.mubr.f32.gmra.mxu0 %v1714
  %v1782 = vpop.f32.mrf.mxu0
  %v1783 = vadd.f32 0.0, %v1782
  %v1784 = vpop.f32.mrf.mxu0
  %1785 = vdwg.mxu0
  %v1786 = vadd.f32 %v1197, %v1783
  %v1787 = vxor.u32 %v1786, 2147483648
  %v1788 = vmul.f32 %v1787, 1.442695
  %v1789 = vpow.pop %v1788
  %v1790 = vadd.f32 %v1789, 1.0
  %v1791 = vrcp.pop %v1790
  %v1792 = vmul.f32 1.0, %v1791
  %v1793 = vtanh.pop %v1786
  %v1794 = vmul.f32 %v1792, %v1704
  %1796 = vrot.lane.b32.xlu0 %v1793, 64
  %v1797 = vpop.permute.xlu0 %1796
  %v1799 = vmul.f32 %v1792, %v1797
  %1801 = vrot.lane.b32.xlu0 %v1799, 32
  %v1802 = vpop.permute.xlu0 %1801
  %v1804 = vadd.f32 %v1794, %v1802
  %v1805 = vtanh.pop %v1804
  %1807 = vrot.lane.b32.xlu0 %v1805, 64
  %v1808 = vpop.permute.xlu0 %1807
  %v1810 = vmul.f32 %v1792, %v1808
  %1812 = vrot.lane.b32.xlu0 %v1810, 32
  %v1813 = vpop.permute.xlu0 %1812
  %v1814 = vsel %vm333, %v1813, 0
  %1816 = vmatprep.subr.mxu0 0.0
  %1817 = vmatpush1.msra.mxu0 0.0
  %1818 = vmatprep.subr.mxu0 0.0
  %1819 = vmatpush1.msra.mxu0 0.0
  %1820 = vmatprep.subr.mxu0 0.0
  %1821 = vmatpush1.msra.mxu0 0.0
  %1822 = vmatprep.subr.mxu0 0.0
  %1823 = vmatpush1.msra.mxu0 0.0
  %1824 = vmatprep.subr.mxu0 0.0
  %1825 = vmatpush1.msra.mxu0 0.0
  %1826 = vmatprep.subr.mxu0 0.0
  %1827 = vmatpush1.msra.mxu0 0.0
  %1828 = vmatprep.subr.mxu0 0.0
  %1829 = vmatpush1.msra.mxu0 0.0
  %1830 = vmatprep.subr.mxu0 0.0
  %1831 = vmatpush1.msra.mxu0 0.0
  %1832 = vmatprep.subr.mxu0 0.0
  %1833 = vmatpush1.msra.mxu0 0.0
  %1834 = vmatprep.subr.mxu0 0.0
  %1835 = vmatpush1.msra.mxu0 0.0
  %1836 = vmatprep.subr.mxu0 0.0
  %1837 = vmatpush1.msra.mxu0 0.0
  %1838 = vmatprep.subr.mxu0 0.0
  %1839 = vmatpush1.msra.mxu0 0.0
  %1840 = vmatprep.subr.mxu0 0.0
  %1841 = vmatpush1.msra.mxu0 %v1213
  %1842 = vmatprep.subr.mxu0 0.0
  %1843 = vmatpush1.msra.mxu0 %v1212
  %1844 = vmatprep.subr.mxu0 0.0
  %1845 = vmatpush1.msra.mxu0 %v1211
  %1846 = vmatprep.subr.mxu0 0.0
  %1847 = vmatpush1.msra.mxu0 %v1210
  %1848 = vmatprep.subr.mxu0 0.0
  %1849 = vmatpush2.msra.mxu0 0.0
  %1850 = vmatprep.subr.mxu0 0.0
  %1851 = vmatpush2.msra.mxu0 0.0
  %1852 = vmatprep.subr.mxu0 0.0
  %1853 = vmatpush2.msra.mxu0 0.0
  %1854 = vmatprep.subr.mxu0 0.0
  %1855 = vmatpush2.msra.mxu0 0.0
  %1856 = vmatprep.subr.mxu0 0.0
  %1857 = vmatpush2.msra.mxu0 0.0
  %1858 = vmatprep.subr.mxu0 0.0
  %1859 = vmatpush2.msra.mxu0 0.0
  %1860 = vmatprep.subr.mxu0 0.0
  %1861 = vmatpush2.msra.mxu0 0.0
  %1862 = vmatprep.subr.mxu0 0.0
  %1863 = vmatpush2.msra.mxu0 0.0
  %1864 = vmatprep.subr.mxu0 0.0
  %1865 = vmatpush2.msra.mxu0 0.0
  %1866 = vmatprep.subr.mxu0 0.0
  %1867 = vmatpush2.msra.mxu0 0.0
  %1868 = vmatprep.subr.mxu0 0.0
  %1869 = vmatpush2.msra.mxu0 0.0
  %1870 = vmatprep.subr.mxu0 0.0
  %1871 = vmatpush2.msra.mxu0 0.0
  %1872 = vmatprep.subr.mxu0 0.0
  %1873 = vmatpush2.msra.mxu0 0.0
  %1874 = vmatprep.subr.mxu0 0.0
  %1875 = vmatpush2.msra.mxu0 0.0
  %1876 = vmatprep.subr.mxu0 0.0
  %1877 = vmatpush2.msra.mxu0 0.0
  %1878 = vmatprep.subr.mxu0 0.0
  %1879 = vmatpush2.msra.mxu0 0.0
  %1880 = vmatprep.mubr.f32.mxu0 0.0
  %1881 = vmatmul.mubr.f32.gmra.mxu0 %v1814
  %v1882 = vpop.f32.mrf.mxu0
  %v1883 = vadd.f32 0.0, %v1882
  %v1884 = vpop.f32.mrf.mxu0
  %1885 = vdwg.mxu0
  %v1886 = vadd.f32 %v1202, %v1883
  %v1887 = vxor.u32 %v1886, 2147483648
  %v1888 = vmul.f32 %v1887, 1.442695
  %v1889 = vpow.pop %v1888
  %v1890 = vadd.f32 %v1889, 1.0
  %v1891 = vrcp.pop %v1890
  %v1892 = vmul.f32 1.0, %v1891
  %v1893 = vtanh.pop %v1886
  %v1894 = vmul.f32 %v1892, %v1804
  %1896 = vrot.lane.b32.xlu0 %v1893, 64
  %v1897 = vpop.permute.xlu0 %1896
  %v1899 = vmul.f32 %v1892, %v1897
  %1901 = vrot.lane.b32.xlu0 %v1899, 32
  %v1902 = vpop.permute.xlu0 %1901
  %v1904 = vadd.f32 %v1894, %v1902
  %v1905 = vtanh.pop %v1904
  %1907 = vrot.lane.b32.xlu0 %v1905, 64
  %v1908 = vpop.permute.xlu0 %1907
  %v1910 = vmul.f32 %v1892, %v1908
  %1912 = vrot.lane.b32.xlu0 %v1910, 32
  %v1913 = vpop.permute.xlu0 %1912
  %v1914 = vsel %vm333, %v1913, 0
  %1916 = vmatprep.subr.mxu0 0.0
  %1917 = vmatpush1.msra.mxu0 0.0
  %1918 = vmatprep.subr.mxu0 0.0
  %1919 = vmatpush1.msra.mxu0 0.0
  %1920 = vmatprep.subr.mxu0 0.0
  %1921 = vmatpush1.msra.mxu0 0.0
  %1922 = vmatprep.subr.mxu0 0.0
  %1923 = vmatpush1.msra.mxu0 0.0
  %1924 = vmatprep.subr.mxu0 0.0
  %1925 = vmatpush1.msra.mxu0 0.0
  %1926 = vmatprep.subr.mxu0 0.0
  %1927 = vmatpush1.msra.mxu0 0.0
  %1928 = vmatprep.subr.mxu0 0.0
  %1929 = vmatpush1.msra.mxu0 0.0
  %1930 = vmatprep.subr.mxu0 0.0
  %1931 = vmatpush1.msra.mxu0 0.0
  %1932 = vmatprep.subr.mxu0 0.0
  %1933 = vmatpush1.msra.mxu0 0.0
  %1934 = vmatprep.subr.mxu0 0.0
  %1935 = vmatpush1.msra.mxu0 0.0
  %1936 = vmatprep.subr.mxu0 0.0
  %1937 = vmatpush1.msra.mxu0 0.0
  %1938 = vmatprep.subr.mxu0 0.0
  %1939 = vmatpush1.msra.mxu0 0.0
  %1940 = vmatprep.subr.mxu0 0.0
  %1941 = vmatpush1.msra.mxu0 %v1213
  %1942 = vmatprep.subr.mxu0 0.0
  %1943 = vmatpush1.msra.mxu0 %v1212
  %1944 = vmatprep.subr.mxu0 0.0
  %1945 = vmatpush1.msra.mxu0 %v1211
  %1946 = vmatprep.subr.mxu0 0.0
  %1947 = vmatpush1.msra.mxu0 %v1210
  %1948 = vmatprep.subr.mxu0 0.0
  %1949 = vmatpush2.msra.mxu0 0.0
  %1950 = vmatprep.subr.mxu0 0.0
  %1951 = vmatpush2.msra.mxu0 0.0
  %1952 = vmatprep.subr.mxu0 0.0
  %1953 = vmatpush2.msra.mxu0 0.0
  %1954 = vmatprep.subr.mxu0 0.0
  %1955 = vmatpush2.msra.mxu0 0.0
  %1956 = vmatprep.subr.mxu0 0.0
  %1957 = vmatpush2.msra.mxu0 0.0
  %1958 = vmatprep.subr.mxu0 0.0
  %1959 = vmatpush2.msra.mxu0 0.0
  %1960 = vmatprep.subr.mxu0 0.0
  %1961 = vmatpush2.msra.mxu0 0.0
  %1962 = vmatprep.subr.mxu0 0.0
  %1963 = vmatpush2.msra.mxu0 0.0
  %1964 = vmatprep.subr.mxu0 0.0
  %1965 = vmatpush2.msra.mxu0 0.0
  %1966 = vmatprep.subr.mxu0 0.0
  %1967 = vmatpush2.msra.mxu0 0.0
  %1968 = vmatprep.subr.mxu0 0.0
  %1969 = vmatpush2.msra.mxu0 0.0
  %1970 = vmatprep.subr.mxu0 0.0
  %1971 = vmatpush2.msra.mxu0 0.0
  %1972 = vmatprep.subr.mxu0 0.0
  %1973 = vmatpush2.msra.mxu0 0.0
  %1974 = vmatprep.subr.mxu0 0.0
  %1975 = vmatpush2.msra.mxu0 0.0
  %1976 = vmatprep.subr.mxu0 0.0
  %1977 = vmatpush2.msra.mxu0 0.0
  %1978 = vmatprep.subr.mxu0 0.0
  %1979 = vmatpush2.msra.mxu0 0.0
  %1980 = vmatprep.mubr.f32.mxu0 0.0
  %1981 = vmatmul.mubr.f32.gmra.mxu0 %v1914
  %v1982 = vpop.f32.mrf.mxu0
  %v1983 = vadd.f32 0.0, %v1982
  %v1984 = vpop.f32.mrf.mxu0
  %1985 = vdwg.mxu0
  %v1986 = vadd.f32 %v1207, %v1983
  %v1987 = vxor.u32 %v1986, 2147483648
  %v1988 = vmul.f32 %v1987, 1.442695
  %v1989 = vpow.pop %v1988
  %v1990 = vadd.f32 %v1989, 1.0
  %v1991 = vrcp.pop %v1990
  %v1992 = vmul.f32 1.0, %v1991
  %v1993 = vtanh.pop %v1986
  %v1994 = vmul.f32 %v1992, %v1904
  %1996 = vrot.lane.b32.xlu0 %v1993, 64
  %v1997 = vpop.permute.xlu0 %1996
  %v1999 = vmul.f32 %v1992, %v1997
  %2001 = vrot.lane.b32.xlu0 %v1999, 32
  %v2002 = vpop.permute.xlu0 %2001
  %v2004 = vadd.f32 %v1994, %v2002
  %v2005 = vtanh.pop %v2004
  %2007 = vrot.lane.b32.xlu0 %v2005, 64
  %v2008 = vpop.permute.xlu0 %2007
  %v2010 = vmul.f32 %v1992, %v2008
  %v2011 = vld [vmem:[%s7] sm:$0xff]
  %v2012 = vld [vmem:[%s7 + $0x8] sm:$0xff]
  %v2013 = vld [vmem:[%s7 + $0x10] sm:$0xff]
  %v2014 = vld [vmem:[%s7 + $0x18] sm:$0xff]
  %v2015 = vld [vmem:[%s7 + $0x20] sm:$0xff]
  %v2016 = vld [vmem:[%s7 + $0x28] sm:$0xff]
  %v2017 = vld [vmem:[%s7 + $0x30] sm:$0xff]
  %v2018 = vld [vmem:[%s7 + $0x38] sm:$0xff]
  %2019 = vrot.lane.b32.xlu0 %v328, 32
  %v2020 = vpop.permute.xlu0 %2019
  %v2021 = vsel %vm333, %v2020, 0
  %2023 = vmatprep.subr.mxu0 0.0
  %2024 = vmatpush1.msra.mxu0 0.0
  %2025 = vmatprep.subr.mxu0 0.0
  %2026 = vmatpush1.msra.mxu0 0.0
  %2027 = vmatprep.subr.mxu0 0.0
  %2028 = vmatpush1.msra.mxu0 0.0
  %2029 = vmatprep.subr.mxu0 0.0
  %2030 = vmatpush1.msra.mxu0 0.0
  %2031 = vmatprep.subr.mxu0 0.0
  %2032 = vmatpush1.msra.mxu0 0.0
  %2033 = vmatprep.subr.mxu0 0.0
  %2034 = vmatpush1.msra.mxu0 0.0
  %2035 = vmatprep.subr.mxu0 0.0
  %2036 = vmatpush1.msra.mxu0 0.0
  %2037 = vmatprep.subr.mxu0 0.0
  %2038 = vmatpush1.msra.mxu0 0.0
  %2039 = vmatprep.subr.mxu0 0.0
  %2040 = vmatpush1.msra.mxu0 0.0
  %2041 = vmatprep.subr.mxu0 0.0
  %2042 = vmatpush1.msra.mxu0 0.0
  %2043 = vmatprep.subr.mxu0 0.0
  %2044 = vmatpush1.msra.mxu0 0.0
  %2045 = vmatprep.subr.mxu0 0.0
  %2046 = vmatpush1.msra.mxu0 0.0
  %2047 = vmatprep.subr.mxu0 0.0
  %2048 = vmatpush1.msra.mxu0 %v2018
  %2049 = vmatprep.subr.mxu0 0.0
  %2050 = vmatpush1.msra.mxu0 %v2017
  %2051 = vmatprep.subr.mxu0 0.0
  %2052 = vmatpush1.msra.mxu0 %v2016
  %2053 = vmatprep.subr.mxu0 0.0
  %2054 = vmatpush1.msra.mxu0 %v2015
  %2055 = vmatprep.subr.mxu0 0.0
  %2056 = vmatpush2.msra.mxu0 0.0
  %2057 = vmatprep.subr.mxu0 0.0
  %2058 = vmatpush2.msra.mxu0 0.0
  %2059 = vmatprep.subr.mxu0 0.0
  %2060 = vmatpush2.msra.mxu0 0.0
  %2061 = vmatprep.subr.mxu0 0.0
  %2062 = vmatpush2.msra.mxu0 0.0
  %2063 = vmatprep.subr.mxu0 0.0
  %2064 = vmatpush2.msra.mxu0 0.0
  %2065 = vmatprep.subr.mxu0 0.0
  %2066 = vmatpush2.msra.mxu0 0.0
  %2067 = vmatprep.subr.mxu0 0.0
  %2068 = vmatpush2.msra.mxu0 0.0
  %2069 = vmatprep.subr.mxu0 0.0
  %2070 = vmatpush2.msra.mxu0 0.0
  %2071 = vmatprep.subr.mxu0 0.0
  %2072 = vmatpush2.msra.mxu0 0.0
  %2073 = vmatprep.subr.mxu0 0.0
  %2074 = vmatpush2.msra.mxu0 0.0
  %2075 = vmatprep.subr.mxu0 0.0
  %2076 = vmatpush2.msra.mxu0 0.0
  %2077 = vmatprep.subr.mxu0 0.0
  %2078 = vmatpush2.msra.mxu0 0.0
  %2079 = vmatprep.subr.mxu0 0.0
  %2080 = vmatpush2.msra.mxu0 0.0
  %2081 = vmatprep.subr.mxu0 0.0
  %2082 = vmatpush2.msra.mxu0 0.0
  %2083 = vmatprep.subr.mxu0 0.0
  %2084 = vmatpush2.msra.mxu0 0.0
  %2085 = vmatprep.subr.mxu0 0.0
  %2086 = vmatpush2.msra.mxu0 0.0
  %2087 = vmatprep.mubr.f32.mxu0 0.0
  %2088 = vmatmul.mubr.f32.gmra.mxu0 %v2021
  %v2089 = vpop.f32.mrf.mxu0
  %v2090 = vadd.f32 0.0, %v2089
  %v2091 = vpop.f32.mrf.mxu0
  %2092 = vdwg.mxu0
  %v2093 = vsel %vm333, %v1054, 0
  %2095 = vmatprep.subr.mxu0 0.0
  %2096 = vmatpush1.msra.mxu0 0.0
  %2097 = vmatprep.subr.mxu0 0.0
  %2098 = vmatpush1.msra.mxu0 0.0
  %2099 = vmatprep.subr.mxu0 0.0
  %2100 = vmatpush1.msra.mxu0 0.0
  %2101 = vmatprep.subr.mxu0 0.0
  %2102 = vmatpush1.msra.mxu0 0.0
  %2103 = vmatprep.subr.mxu0 0.0
  %2104 = vmatpush1.msra.mxu0 0.0
  %2105 = vmatprep.subr.mxu0 0.0
  %2106 = vmatpush1.msra.mxu0 0.0
  %2107 = vmatprep.subr.mxu0 0.0
  %2108 = vmatpush1.msra.mxu0 0.0
  %2109 = vmatprep.subr.mxu0 0.0
  %2110 = vmatpush1.msra.mxu0 0.0
  %2111 = vmatprep.subr.mxu0 0.0
  %2112 = vmatpush1.msra.mxu0 0.0
  %2113 = vmatprep.subr.mxu0 0.0
  %2114 = vmatpush1.msra.mxu0 0.0
  %2115 = vmatprep.subr.mxu0 0.0
  %2116 = vmatpush1.msra.mxu0 0.0
  %2117 = vmatprep.subr.mxu0 0.0
  %2118 = vmatpush1.msra.mxu0 0.0
  %2119 = vmatprep.subr.mxu0 0.0
  %2120 = vmatpush1.msra.mxu0 %v2014
  %2121 = vmatprep.subr.mxu0 0.0
  %2122 = vmatpush1.msra.mxu0 %v2013
  %2123 = vmatprep.subr.mxu0 0.0
  %2124 = vmatpush1.msra.mxu0 %v2012
  %2125 = vmatprep.subr.mxu0 0.0
  %2126 = vmatpush1.msra.mxu0 %v2011
  %2127 = vmatprep.subr.mxu0 0.0
  %2128 = vmatpush2.msra.mxu0 0.0
  %2129 = vmatprep.subr.mxu0 0.0
  %2130 = vmatpush2.msra.mxu0 0.0
  %2131 = vmatprep.subr.mxu0 0.0
  %2132 = vmatpush2.msra.mxu0 0.0
  %2133 = vmatprep.subr.mxu0 0.0
  %2134 = vmatpush2.msra.mxu0 0.0
  %2135 = vmatprep.subr.mxu0 0.0
  %2136 = vmatpush2.msra.mxu0 0.0
  %2137 = vmatprep.subr.mxu0 0.0
  %2138 = vmatpush2.msra.mxu0 0.0
  %2139 = vmatprep.subr.mxu0 0.0
  %2140 = vmatpush2.msra.mxu0 0.0
  %2141 = vmatprep.subr.mxu0 0.0
  %2142 = vmatpush2.msra.mxu0 0.0
  %2143 = vmatprep.subr.mxu0 0.0
  %2144 = vmatpush2.msra.mxu0 0.0
  %2145 = vmatprep.subr.mxu0 0.0
  %2146 = vmatpush2.msra.mxu0 0.0
  %2147 = vmatprep.subr.mxu0 0.0
  %2148 = vmatpush2.msra.mxu0 0.0
  %2149 = vmatprep.subr.mxu0 0.0
  %2150 = vmatpush2.msra.mxu0 0.0
  %2151 = vmatprep.subr.mxu0 0.0
  %2152 = vmatpush2.msra.mxu0 0.0
  %2153 = vmatprep.subr.mxu0 0.0
  %2154 = vmatpush2.msra.mxu0 0.0
  %2155 = vmatprep.subr.mxu0 0.0
  %2156 = vmatpush2.msra.mxu0 0.0
  %2157 = vmatprep.subr.mxu0 0.0
  %2158 = vmatpush2.msra.mxu0 0.0
  %2159 = vmatprep.mubr.f32.mxu0 0.0
  %2160 = vmatmul.mubr.f32.gmra.mxu0 %v2093
  %v2161 = vpop.f32.mrf.mxu0
  %v2162 = vadd.f32 %v2090, %v2161
  %v2163 = vpop.f32.mrf.mxu0
  %2164 = vdwg.mxu0
  %v2165 = vld [vmem:[%s8] sm:$0x1]
  %v2167 = vlaneseq
  %v2168 = vshrl.u32 %v2167, 7
  %v2169 = vsub.s32 0, %v2168
  %v2170 = vrot.slane %v2165, %v2169
  %v2172 = vadd.f32 %v2162, %v2170
  %v2173 = vxor.u32 %v2172, 2147483648
  %v2174 = vmul.f32 %v2173, 1.442695
  %v2175 = vpow.pop %v2174
  %v2176 = vadd.f32 %v2175, 1.0
  %v2177 = vrcp.pop %v2176
  %v2178 = vmul.f32 1.0, %v2177
  %v2179 = vtanh.pop %v2172
  %2181 = vrot.lane.b32.xlu0 %v2179, 64
  %v2182 = vpop.permute.xlu0 %2181
  %v2184 = vmul.f32 %v2178, %v2182
  %v2185 = vtanh.pop %v2184
  %2187 = vrot.lane.b32.xlu0 %v2185, 96
  %v2188 = vpop.permute.xlu0 %2187
  %v2190 = vmul.f32 %v2178, %v2188
  %v2191 = vld [vmem:[%s9] sm:$0xff]
  %v2192 = vld [vmem:[%s9 + $0x8] sm:$0xff]
  %v2193 = vld [vmem:[%s9 + $0x10] sm:$0xff]
  %v2194 = vld [vmem:[%s9 + $0x18] sm:$0xff]
  %v2195 = vld [vmem:[%s9 + $0x20] sm:$0xff]
  %v2196 = vld [vmem:[%s9 + $0x28] sm:$0xff]
  %v2197 = vld [vmem:[%s9 + $0x30] sm:$0xff]
  %v2198 = vld [vmem:[%s9 + $0x38] sm:$0xff]
  %2200 = vrot.lane.b32.xlu0 %v2190, 32
  %v2201 = vpop.permute.xlu0 %2200
  %v2202 = vsel %vm333, %v2201, 0
  %2204 = vmatprep.subr.mxu0 0.0
  %2205 = vmatpush1.msra.mxu0 0.0
  %2206 = vmatprep.subr.mxu0 0.0
  %2207 = vmatpush1.msra.mxu0 0.0
  %2208 = vmatprep.subr.mxu0 0.0
  %2209 = vmatpush1.msra.mxu0 0.0
  %2210 = vmatprep.subr.mxu0 0.0
  %2211 = vmatpush1.msra.mxu0 0.0
  %2212 = vmatprep.subr.mxu0 0.0
  %2213 = vmatpush1.msra.mxu0 0.0
  %2214 = vmatprep.subr.mxu0 0.0
  %2215 = vmatpush1.msra.mxu0 0.0
  %2216 = vmatprep.subr.mxu0 0.0
  %2217 = vmatpush1.msra.mxu0 0.0
  %2218 = vmatprep.subr.mxu0 0.0
  %2219 = vmatpush1.msra.mxu0 0.0
  %2220 = vmatprep.subr.mxu0 0.0
  %2221 = vmatpush1.msra.mxu0 0.0
  %2222 = vmatprep.subr.mxu0 0.0
  %2223 = vmatpush1.msra.mxu0 0.0
  %2224 = vmatprep.subr.mxu0 0.0
  %2225 = vmatpush1.msra.mxu0 0.0
  %2226 = vmatprep.subr.mxu0 0.0
  %2227 = vmatpush1.msra.mxu0 0.0
  %2228 = vmatprep.subr.mxu0 0.0
  %2229 = vmatpush1.msra.mxu0 %v2198
  %2230 = vmatprep.subr.mxu0 0.0
  %2231 = vmatpush1.msra.mxu0 %v2197
  %2232 = vmatprep.subr.mxu0 0.0
  %2233 = vmatpush1.msra.mxu0 %v2196
  %2234 = vmatprep.subr.mxu0 0.0
  %2235 = vmatpush1.msra.mxu0 %v2195
  %2236 = vmatprep.subr.mxu0 0.0
  %2237 = vmatpush2.msra.mxu0 0.0
  %2238 = vmatprep.subr.mxu0 0.0
  %2239 = vmatpush2.msra.mxu0 0.0
  %2240 = vmatprep.subr.mxu0 0.0
  %2241 = vmatpush2.msra.mxu0 0.0
  %2242 = vmatprep.subr.mxu0 0.0
  %2243 = vmatpush2.msra.mxu0 0.0
  %2244 = vmatprep.subr.mxu0 0.0
  %2245 = vmatpush2.msra.mxu0 0.0
  %2246 = vmatprep.subr.mxu0 0.0
  %2247 = vmatpush2.msra.mxu0 0.0
  %2248 = vmatprep.subr.mxu0 0.0
  %2249 = vmatpush2.msra.mxu0 0.0
  %2250 = vmatprep.subr.mxu0 0.0
  %2251 = vmatpush2.msra.mxu0 0.0
  %2252 = vmatprep.subr.mxu0 0.0
  %2253 = vmatpush2.msra.mxu0 0.0
  %2254 = vmatprep.subr.mxu0 0.0
  %2255 = vmatpush2.msra.mxu0 0.0
  %2256 = vmatprep.subr.mxu0 0.0
  %2257 = vmatpush2.msra.mxu0 0.0
  %2258 = vmatprep.subr.mxu0 0.0
  %2259 = vmatpush2.msra.mxu0 0.0
  %2260 = vmatprep.subr.mxu0 0.0
  %2261 = vmatpush2.msra.mxu0 0.0
  %2262 = vmatprep.subr.mxu0 0.0
  %2263 = vmatpush2.msra.mxu0 0.0
  %2264 = vmatprep.subr.mxu0 0.0
  %2265 = vmatpush2.msra.mxu0 0.0
  %2266 = vmatprep.subr.mxu0 0.0
  %2267 = vmatpush2.msra.mxu0 0.0
  %2268 = vmatprep.mubr.f32.mxu0 0.0
  %2269 = vmatmul.mubr.f32.gmra.mxu0 %v2202
  %v2270 = vpop.f32.mrf.mxu0
  %v2271 = vadd.f32 0.0, %v2270
  %v2272 = vpop.f32.mrf.mxu0
  %2273 = vdwg.mxu0
  %2275 = vrot.lane.b32.xlu0 %v2010, 32
  %v2276 = vpop.permute.xlu0 %2275
  %v2277 = vsel %vm333, %v2276, 0
  %2279 = vmatprep.subr.mxu0 0.0
  %2280 = vmatpush1.msra.mxu0 0.0
  %2281 = vmatprep.subr.mxu0 0.0
  %2282 = vmatpush1.msra.mxu0 0.0
  %2283 = vmatprep.subr.mxu0 0.0
  %2284 = vmatpush1.msra.mxu0 0.0
  %2285 = vmatprep.subr.mxu0 0.0
  %2286 = vmatpush1.msra.mxu0 0.0
  %2287 = vmatprep.subr.mxu0 0.0
  %2288 = vmatpush1.msra.mxu0 0.0
  %2289 = vmatprep.subr.mxu0 0.0
  %2290 = vmatpush1.msra.mxu0 0.0
  %2291 = vmatprep.subr.mxu0 0.0
  %2292 = vmatpush1.msra.mxu0 0.0
  %2293 = vmatprep.subr.mxu0 0.0
  %2294 = vmatpush1.msra.mxu0 0.0
  %2295 = vmatprep.subr.mxu0 0.0
  %2296 = vmatpush1.msra.mxu0 0.0
  %2297 = vmatprep.subr.mxu0 0.0
  %2298 = vmatpush1.msra.mxu0 0.0
  %2299 = vmatprep.subr.mxu0 0.0
  %2300 = vmatpush1.msra.mxu0 0.0
  %2301 = vmatprep.subr.mxu0 0.0
  %2302 = vmatpush1.msra.mxu0 0.0
  %2303 = vmatprep.subr.mxu0 0.0
  %2304 = vmatpush1.msra.mxu0 %v2194
  %2305 = vmatprep.subr.mxu0 0.0
  %2306 = vmatpush1.msra.mxu0 %v2193
  %2307 = vmatprep.subr.mxu0 0.0
  %2308 = vmatpush1.msra.mxu0 %v2192
  %2309 = vmatprep.subr.mxu0 0.0
  %2310 = vmatpush1.msra.mxu0 %v2191
  %2311 = vmatprep.subr.mxu0 0.0
  %2312 = vmatpush2.msra.mxu0 0.0
  %2313 = vmatprep.subr.mxu0 0.0
  %2314 = vmatpush2.msra.mxu0 0.0
  %2315 = vmatprep.subr.mxu0 0.0
  %2316 = vmatpush2.msra.mxu0 0.0
  %2317 = vmatprep.subr.mxu0 0.0
  %2318 = vmatpush2.msra.mxu0 0.0
  %2319 = vmatprep.subr.mxu0 0.0
  %2320 = vmatpush2.msra.mxu0 0.0
  %2321 = vmatprep.subr.mxu0 0.0
  %2322 = vmatpush2.msra.mxu0 0.0
  %2323 = vmatprep.subr.mxu0 0.0
  %2324 = vmatpush2.msra.mxu0 0.0
  %2325 = vmatprep.subr.mxu0 0.0
  %2326 = vmatpush2.msra.mxu0 0.0
  %2327 = vmatprep.subr.mxu0 0.0
  %2328 = vmatpush2.msra.mxu0 0.0
  %2329 = vmatprep.subr.mxu0 0.0
  %2330 = vmatpush2.msra.mxu0 0.0
  %2331 = vmatprep.subr.mxu0 0.0
  %2332 = vmatpush2.msra.mxu0 0.0
  %2333 = vmatprep.subr.mxu0 0.0
  %2334 = vmatpush2.msra.mxu0 0.0
  %2335 = vmatprep.subr.mxu0 0.0
  %2336 = vmatpush2.msra.mxu0 0.0
  %2337 = vmatprep.subr.mxu0 0.0
  %2338 = vmatpush2.msra.mxu0 0.0
  %2339 = vmatprep.subr.mxu0 0.0
  %2340 = vmatpush2.msra.mxu0 0.0
  %2341 = vmatprep.subr.mxu0 0.0
  %2342 = vmatpush2.msra.mxu0 0.0
  %2343 = vmatprep.mubr.f32.mxu0 0.0
  %2344 = vmatmul.mubr.f32.gmra.mxu0 %v2277
  %v2345 = vpop.f32.mrf.mxu0
  %v2346 = vadd.f32 %v2271, %v2345
  %v2347 = vpop.f32.mrf.mxu0
  %2348 = vdwg.mxu0
  %v2349 = vld [vmem:[%s10] sm:$0x1]
  %v2351 = vlaneseq
  %v2352 = vshrl.u32 %v2351, 7
  %v2353 = vsub.s32 0, %v2352
  %v2354 = vrot.slane %v2349, %v2353
  %v2356 = vadd.f32 %v2346, %v2354
  %v2357 = vmax.f32 %v2356, 0.0
  %v2358 = vld [vmem:[%s11] sm:$0xff]
  %v2359 = vld [vmem:[%s11 + $0x8] sm:$0xff]
  %v2360 = vld [vmem:[%s11 + $0x10] sm:$0xff]
  %v2361 = vld [vmem:[%s11 + $0x18] sm:$0xff]
  %v2362 = vld [vmem:[%s12] sm:$0x1]
  %v2364 = vlaneseq
  %v2365 = vshrl.u32 %v2364, 7
  %v2366 = vsub.s32 0, %v2365
  %v2367 = vrot.slane %v2362, %v2366
  %v2370 = vsel %vm333, %v2357, 0
  %2372 = vmatprep.subr.mxu0 0.0
  %2373 = vmatpush1.msra.mxu0 0.0
  %2374 = vmatprep.subr.mxu0 0.0
  %2375 = vmatpush1.msra.mxu0 0.0
  %2376 = vmatprep.subr.mxu0 0.0
  %2377 = vmatpush1.msra.mxu0 0.0
  %2378 = vmatprep.subr.mxu0 0.0
  %2379 = vmatpush1.msra.mxu0 0.0
  %2380 = vmatprep.subr.mxu0 0.0
  %2381 = vmatpush1.msra.mxu0 0.0
  %2382 = vmatprep.subr.mxu0 0.0
  %2383 = vmatpush1.msra.mxu0 0.0
  %2384 = vmatprep.subr.mxu0 0.0
  %2385 = vmatpush1.msra.mxu0 0.0
  %2386 = vmatprep.subr.mxu0 0.0
  %2387 = vmatpush1.msra.mxu0 0.0
  %2388 = vmatprep.subr.mxu0 0.0
  %2389 = vmatpush1.msra.mxu0 0.0
  %2390 = vmatprep.subr.mxu0 0.0
  %2391 = vmatpush1.msra.mxu0 0.0
  %2392 = vmatprep.subr.mxu0 0.0
  %2393 = vmatpush1.msra.mxu0 0.0
  %2394 = vmatprep.subr.mxu0 0.0
  %2395 = vmatpush1.msra.mxu0 0.0
  %2396 = vmatprep.subr.mxu0 0.0
  %2397 = vmatpush1.msra.mxu0 %v2361
  %2398 = vmatprep.subr.mxu0 0.0
  %2399 = vmatpush1.msra.mxu0 %v2360
  %2400 = vmatprep.subr.mxu0 0.0
  %2401 = vmatpush1.msra.mxu0 %v2359
  %2402 = vmatprep.subr.mxu0 0.0
  %2403 = vmatpush1.msra.mxu0 %v2358
  %2404 = vmatprep.subr.mxu0 0.0
  %2405 = vmatpush2.msra.mxu0 0.0
  %2406 = vmatprep.subr.mxu0 0.0
  %2407 = vmatpush2.msra.mxu0 0.0
  %2408 = vmatprep.subr.mxu0 0.0
  %2409 = vmatpush2.msra.mxu0 0.0
  %2410 = vmatprep.subr.mxu0 0.0
  %2411 = vmatpush2.msra.mxu0 0.0
  %2412 = vmatprep.subr.mxu0 0.0
  %2413 = vmatpush2.msra.mxu0 0.0
  %2414 = vmatprep.subr.mxu0 0.0
  %2415 = vmatpush2.msra.mxu0 0.0
  %2416 = vmatprep.subr.mxu0 0.0
  %2417 = vmatpush2.msra.mxu0 0.0
  %2418 = vmatprep.subr.mxu0 0.0
  %2419 = vmatpush2.msra.mxu0 0.0
  %2420 = vmatprep.subr.mxu0 0.0
  %2421 = vmatpush2.msra.mxu0 0.0
  %2422 = vmatprep.subr.mxu0 0.0
  %2423 = vmatpush2.msra.mxu0 0.0
  %2424 = vmatprep.subr.mxu0 0.0
  %2425 = vmatpush2.msra.mxu0 0.0
  %2426 = vmatprep.subr.mxu0 0.0
  %2427 = vmatpush2.msra.mxu0 0.0
  %2428 = vmatprep.subr.mxu0 0.0
  %2429 = vmatpush2.msra.mxu0 0.0
  %2430 = vmatprep.subr.mxu0 0.0
  %2431 = vmatpush2.msra.mxu0 0.0
  %2432 = vmatprep.subr.mxu0 0.0
  %2433 = vmatpush2.msra.mxu0 0.0
  %2434 = vmatprep.subr.mxu0 0.0
  %2435 = vmatpush2.msra.mxu0 0.0
  %2436 = vmatprep.mubr.f32.mxu0 0.0
  %2437 = vmatmul.mubr.f32.gmra.mxu0 %v2370
  %v2438 = vpop.f32.mrf.mxu0
  %v2439 = vadd.f32 %v2367, %v2438
  %v2440 = vpop.f32.mrf.mxu0
  %2441 = vdwg.mxu0
  %v2442 = vmax.f32 %v2439, 0.0
  %v2443 = vld [vmem:[%s13] sm:$0xff]
  %v2444 = vld [vmem:[%s13 + $0x8] sm:$0xff]
  %v2445 = vld [vmem:[#allocation3] sm:$0x1]
  %v2447 = vlaneseq
  %v2448 = vshrl.u32 %v2447, 7
  %v2449 = vsub.s32 0, %v2448
  %v2450 = vrot.slane %v2445, %v2449
  %v2453 = vsel %vm76, %v2442, 0
  %2455 = vmatprep.subr.mxu0 0.0
  %2456 = vmatpush1.msra.mxu0 0.0
  %2457 = vmatprep.subr.mxu0 0.0
  %2458 = vmatpush1.msra.mxu0 0.0
  %2459 = vmatprep.subr.mxu0 0.0
  %2460 = vmatpush1.msra.mxu0 0.0
  %2461 = vmatprep.subr.mxu0 0.0
  %2462 = vmatpush1.msra.mxu0 0.0
  %2463 = vmatprep.subr.mxu0 0.0
  %2464 = vmatpush1.msra.mxu0 0.0
  %2465 = vmatprep.subr.mxu0 0.0
  %2466 = vmatpush1.msra.mxu0 0.0
  %2467 = vmatprep.subr.mxu0 0.0
  %2468 = vmatpush1.msra.mxu0 0.0
  %2469 = vmatprep.subr.mxu0 0.0
  %2470 = vmatpush1.msra.mxu0 0.0
  %2471 = vmatprep.subr.mxu0 0.0
  %2472 = vmatpush1.msra.mxu0 0.0
  %2473 = vmatprep.subr.mxu0 0.0
  %2474 = vmatpush1.msra.mxu0 0.0
  %2475 = vmatprep.subr.mxu0 0.0
  %2476 = vmatpush1.msra.mxu0 0.0
  %2477 = vmatprep.subr.mxu0 0.0
  %2478 = vmatpush1.msra.mxu0 0.0
  %2479 = vmatprep.subr.mxu0 0.0
  %2480 = vmatpush1.msra.mxu0 0.0
  %2481 = vmatprep.subr.mxu0 0.0
  %2482 = vmatpush1.msra.mxu0 0.0
  %2483 = vmatprep.subr.mxu0 0.0
  %2484 = vmatpush1.msra.mxu0 %v2444
  %2485 = vmatprep.subr.mxu0 0.0
  %2486 = vmatpush1.msra.mxu0 %v2443
  %2487 = vmatprep.subr.mxu0 0.0
  %2488 = vmatpush2.msra.mxu0 0.0
  %2489 = vmatprep.subr.mxu0 0.0
  %2490 = vmatpush2.msra.mxu0 0.0
  %2491 = vmatprep.subr.mxu0 0.0
  %2492 = vmatpush2.msra.mxu0 0.0
  %2493 = vmatprep.subr.mxu0 0.0
  %2494 = vmatpush2.msra.mxu0 0.0
  %2495 = vmatprep.subr.mxu0 0.0
  %2496 = vmatpush2.msra.mxu0 0.0
  %2497 = vmatprep.subr.mxu0 0.0
  %2498 = vmatpush2.msra.mxu0 0.0
  %2499 = vmatprep.subr.mxu0 0.0
  %2500 = vmatpush2.msra.mxu0 0.0
  %2501 = vmatprep.subr.mxu0 0.0
  %2502 = vmatpush2.msra.mxu0 0.0
  %2503 = vmatprep.subr.mxu0 0.0
  %2504 = vmatpush2.msra.mxu0 0.0
  %2505 = vmatprep.subr.mxu0 0.0
  %2506 = vmatpush2.msra.mxu0 0.0
  %2507 = vmatprep.subr.mxu0 0.0
  %2508 = vmatpush2.msra.mxu0 0.0
  %2509 = vmatprep.subr.mxu0 0.0
  %2510 = vmatpush2.msra.mxu0 0.0
  %2511 = vmatprep.subr.mxu0 0.0
  %2512 = vmatpush2.msra.mxu0 0.0
  %2513 = vmatprep.subr.mxu0 0.0
  %2514 = vmatpush2.msra.mxu0 0.0
  %2515 = vmatprep.subr.mxu0 0.0
  %2516 = vmatpush2.msra.mxu0 0.0
  %2517 = vmatprep.subr.mxu0 0.0
  %2518 = vmatpush2.msra.mxu0 0.0
  %2519 = vmatprep.mubr.f32.mxu0 0.0
  %2520 = vmatmul.mubr.f32.gmra.mxu0 %v2453
  %v2521 = vpop.f32.mrf.mxu0
  %v2522 = vadd.f32 %v2450, %v2521
  %v2523 = vpop.f32.mrf.mxu0
  %2524 = vdwg.mxu0
  %vm2525 = vcmask 7168
  %2526 = vst.msk [vmem:[%s15] sm:$0xff] %vm2525, %v2522
  // Predicated region
  $region62: #{_lambda_.1} parent=0 // pred_check
    _
  $region63: #{_lambda_.1} parent=0 // pred_check_branch
    %2528 = sbr.rel (0) target = $region65
  $region64: #{_lambda_.1} parent=0 // pred_region
    _
  $region65: #{_lambda_.1} parent=0 // pred_fallthru
    _
  // Predicated region
  $region66: #{_lambda_.1} parent=0 // pred_check
    _
  $region67: #{_lambda_.1} parent=0 // pred_check_branch
    %2530 = sbr.rel (0) target = $region69
  $region68: #{_lambda_.1} parent=0 // pred_region
    _
  $region69: #{_lambda_.1} parent=0 // pred_fallthru
    _

</llo_original>
